<compile_context>
chip_gen: v7x
topology: tpu7x:2x2x1
jax: 0.10.0
libtpu: 0.0.40
codegen_flags: <defaults>
</compile_context>

<pallas_src>
import functools

import jax
import jax.numpy as jnp
from jax.experimental import pallas as pl
from jax.experimental.pallas import tpu as pltpu


# --------------------------------------------------------------------------------------
# Fused Pallas kernel: packed k/v projection + masked multi-head neighborhood attention.
# One grid step = one batch/time element (L = S1*S2 query rows).
# --------------------------------------------------------------------------------------
def _gct_fused_kernel(xq_ref, wq_ref, bq_ref, u_ref, wkv_ref, bkv_ref,
                      pool_ref, bias_ref, o_ref, v_scr, lg_scr,
                      *, n_chunks, gp_c, c_dim):

    def lane_class_reduce(x, op):
        # Combine the GP = gp_c // c_dim lane blocks (stride-c_dim classes) of an (L, gp_c)
        # array on the XLU; result is replicated across all lane blocks.  GP is a power of 2.
        s = c_dim
        while s < gp_c:
            x = op(x, pltpu.roll(x, shift=s, axis=1))
            s *= 2
        return x

    # q projection, pre-tiled to gp_c output lanes (bf16 MXU operands, f32 accumulation).
    qt = jnp.dot(xq_ref[...], wq_ref[...],
                 preferred_element_type=jnp.float32) + bq_ref[...]          # (L, gp_c) f32
    pool = pool_ref[...]                                                    # (gp_c, gp_c) bf16

    # Pass 1: block-diagonal packed k/v projection, head-broadcast masked logits, running max.
    run_max = None
    for ci in range(n_chunks):
        kv = jnp.dot(u_ref[ci], wkv_ref[ci],
                     preferred_element_type=jnp.float32) + bkv_ref[ci]      # (L, 2*gp_c) f32
        v_scr[ci] = kv[:, gp_c:].astype(jnp.bfloat16)                       # packed v (bf16)
        logit = jnp.dot((kv[:, :gp_c] * qt).astype(jnp.bfloat16), pool,
                        preferred_element_type=jnp.float32) + bias_ref[ci]  # (L, gp_c) f32
        lg_scr[ci] = logit
        run_max = logit if ci == 0 else jnp.maximum(run_max, logit)
    mx = lane_class_reduce(run_max, jnp.maximum)                            # max over all groups

    # Pass 2: softmax over all neighbor groups + weighted sum of v (all heads jointly).
    l_acc = jnp.zeros_like(mx)
    n_acc = jnp.zeros_like(mx)
    for ci in range(n_chunks):
        e = jnp.exp(lg_scr[ci] - mx)
        l_acc = l_acc + e
        n_acc = n_acc + e * v_scr[ci].astype(jnp.float32)
    l_all = lane_class_reduce(l_acc, jnp.add)
    n_all = lane_class_reduce(n_acc, jnp.add)

    out = n_all[:, :c_dim] * pl.reciprocal(l_all[:, :c_dim], approx=True)   # (L, C) f32
    o_ref[0] = out.T                                                        # (C, L) — no XLA epilogue


# --------------------------------------------------------------------------------------
# Params-only packing (done once, outside the per-forward path).
# --------------------------------------------------------------------------------------
def pack_gct_params(params, *, S1, S2, time_kernel, spatial_kernel, dim_head,
                    groups_per_chunk=4):
    T, K, GP = time_kernel, spatial_kernel, groups_per_chunk
    C = params["Wq"].shape[0]
    G = T * K * K
    NC = -(-G // GP)
    Gpad = NC * GP
    L = S1 * S2
    lk = K // 2
    f32, bf16 = jnp.float32, jnp.bfloat16

    def pad_groups(a):
        if Gpad == G:
            return a.astype(f32)
        z = jnp.zeros((Gpad - G,) + a.shape[1:], f32)
        return jnp.concatenate([a.astype(f32), z], axis=0)

    Wk, Wv = pad_groups(params["Wk"]), pad_groups(params["Wv"])
    bk, bv = pad_groups(params["bk"]), pad_groups(params["bv"])
    eye_gp = jnp.eye(GP, dtype=f32)

    def block_diag(w):                                                       # (Gpad,C,C) -> (NC,GP*C,GP*C)
        wc = w.reshape(NC, GP, C, C)
        return jnp.einsum("ngab,gh->ngahb", wc, eye_gp).reshape(NC, GP * C, GP * C)

    wkv = jnp.concatenate([block_diag(Wk), block_diag(Wv)], axis=-1).astype(bf16)
    bkv = jnp.concatenate([bk.reshape(NC, 1, GP * C),
                           bv.reshape(NC, 1, GP * C)], axis=-1)              # (NC,1,2GP*C) f32

    wq_t = jnp.tile(params["Wq"].astype(f32), (1, GP)).astype(bf16)          # (C, GP*C) bf16
    bq_t = jnp.tile(params["bq"].astype(f32), (1, GP))                       # (1, GP*C) f32

    head = jnp.arange(C) // dim_head
    pool = (head[:, None] == head[None, :]).astype(f32)                      # (C, C) 0/1
    pool_packed = jnp.einsum("ab,gh->gahb", pool, eye_gp).reshape(GP * C, GP * C).astype(bf16)

    # Spatial-validity additive mask (0 valid / -1e30 outside the grid), pre-shaped per chunk.
    s1 = jnp.arange(L) // S2
    s2 = jnp.arange(L) % S2
    kk1 = jnp.arange(K * K) // K
    kk2 = jnp.arange(K * K) % K
    loc1 = s1[:, None] + kk1[None, :] - lk
    loc2 = s2[:, None] + kk2[None, :] - lk
    valid = (loc1 >= 0) & (loc1 < S1) & (loc2 >= 0) & (loc2 < S2)            # (L, K*K)
    bias_lg = jnp.where(jnp.tile(valid, (1, T)), 0.0, -1e30).astype(f32)     # (L, G)
    if Gpad > G:
        bias_lg = jnp.concatenate([bias_lg, jnp.full((L, Gpad - G), -1e30, f32)], axis=1)
    bias_gl = bias_lg.T                                                      # (Gpad, L)
    bias_packed = jnp.broadcast_to(bias_gl.reshape(NC, GP, L, 1), (NC, GP, L, C))
    bias_packed = jnp.transpose(bias_packed, (0, 2, 1, 3)).reshape(NC, L, GP * C)

    return {"wq_t": wq_t, "bq_t": bq_t, "wkv": wkv, "bkv": bkv,
            "pool": pool_packed, "bias": bias_packed}


# --------------------------------------------------------------------------------------
# Forward pass (per-call wrapper: bf16 neighbor-slab packing + the fused pallas_call).
# --------------------------------------------------------------------------------------
def gct_forward(x, packed, *, time_kernel, spatial_kernel):
    N, C, S1, S2 = x.shape
    T, K = time_kernel, spatial_kernel
    L, M, G = S1 * S2, N * S1 * S2, T * K * K
    lt, lk = T // 2, K // 2
    f32, bf16 = jnp.float32, jnp.bfloat16

    wq_t, bq_t = packed["wq_t"], packed["bq_t"]
    wkv, bkv, pool, bias = packed["wkv"], packed["bkv"], packed["pool"], packed["bias"]
    NC, GPC, _ = wkv.shape
    GP = GPC // C

    assert wq_t.shape == (C, GPC)
    assert GP & (GP - 1) == 0, "groups_per_chunk must be a power of two (lane-roll reduce)"
    assert L % 16 == 0 and GPC % 128 == 0
    assert bias.shape == (NC, L, GPC)

    # ---- per-call prologue: one transpose + one pad + bf16 neighbor-slab packing ----
    x_nhwc = jnp.transpose(x, (0, 2, 3, 1)).astype(bf16)                     # (N,S1,S2,C)
    xq = x_nhwc.reshape(M, C)
    xp = jnp.pad(x_nhwc, ((lt, lt), (lk, lk), (lk, lk), (0, 0)))

    def group_slab(g):
        t, r = divmod(g, K * K)
        k1, k2 = divmod(r, K)
        return xp[t:t + N, k1:k1 + S1, k2:k2 + S2, :].reshape(M, C)

    chunks = []
    for ci in range(NC):
        parts = []
        for jj in range(GP):
            g = ci * GP + jj
            parts.append(group_slab(g) if g < G else jnp.zeros((M, C), bf16))
        chunks.append(jnp.concatenate(parts, axis=-1))                       # (M, GP*C)
    u_packed = jnp.stack(chunks, axis=0)                                     # (NC, M, GP*C) bf16

    kernel = functools.partial(_gct_fused_kernel, n_chunks=NC, gp_c=GPC, c_dim=C)

    # Advisory cost estimate for XLA scheduling around the custom call.
    flops = 2 * M * C * GPC + NC * 2 * M * GPC * (2 * GPC) + NC * 2 * M * GPC * GPC
    transc = NC * M * GPC + M * C
    bytes_acc = sum(int(a.size) * a.dtype.itemsize
                    for a in (xq, u_packed, wq_t, bq_t, wkv, bkv, pool, bias)) + N * C * L * 4

    out_ncl = pl.pallas_call(
        kernel,
        out_shape=jax.ShapeDtypeStruct((N, C, L), f32),
        grid_spec=pltpu.PrefetchScalarGridSpec(
            num_scalar_prefetch=0,
            grid=(N,),                                                       # 1 batch elem / step
            in_specs=[
                pl.BlockSpec((L, C), lambda b: (b, 0)),                      # xq rows of batch b
                pl.BlockSpec((C, GPC), lambda b: (0, 0)),                    # Wq (lane-tiled, resident)
                pl.BlockSpec((1, GPC), lambda b: (0, 0)),                    # bq (lane-tiled)
                pl.BlockSpec((NC, L, GPC), lambda b: (0, b, 0)),             # packed neighbors (bf16)
                pl.BlockSpec((NC, GPC, 2 * GPC), lambda b: (0, 0, 0)),       # packed Wk|Wv (resident)
                pl.BlockSpec((NC, 1, 2 * GPC), lambda b: (0, 0, 0)),         # packed bk|bv
                pl.BlockSpec((GPC, GPC), lambda b: (0, 0)),                  # head-pool (bf16)
                pl.BlockSpec((NC, L, GPC), lambda b: (0, 0, 0)),             # neighbor-mask bias
            ],
            out_specs=pl.BlockSpec((1, C, L), lambda b: (b, 0, 0)),
            scratch_shapes=[pltpu.VMEM((NC, L, GPC), bf16),                  # packed v
                            pltpu.VMEM((NC, L, GPC), f32)],                  # packed logits
        ),
        compiler_params=pltpu.CompilerParams(dimension_semantics=("parallel",)),
        cost_estimate=pl.CostEstimate(flops=flops, transcendentals=transc,
                                      bytes_accessed=bytes_acc),
    )(xq, wq_t, bq_t, u_packed, wkv, bkv, pool, bias)

    # (N, C, L) -> (N, C, S1, S2): pure reshape, no transpose.
    return out_ncl.reshape(N, C, S1, S2)


# --------------------------------------------------------------------------------------
# Pure-JAX f32 reference (faithful translation of the PyTorch forward) for correctness.
# --------------------------------------------------------------------------------------
def gct_reference(x, params, *, time_kernel, spatial_kernel, num_head, dim_head):
    N, C, S1, S2 = x.shape
    T, K = time_kernel, spatial_kernel
    L, M, G = S1 * S2, N * S1 * S2, T * K * K
    lt, lk = T // 2, K // 2

    x_nhwc = jnp.transpose(x, (0, 2, 3, 1))
    xq = x_nhwc.reshape(M, C)
    xp = jnp.pad(x_nhwc, ((lt, lt), (lk, lk), (lk, lk), (0, 0)))
    slabs = []
    for t in range(T):
        for k1 in range(K):
            for k2 in range(K):
                slabs.append(xp[t:t + N, k1:k1 + S1, k2:k2 + S2, :].reshape(M, C))
    u = jnp.stack(slabs, axis=0)                                            # (G, M, C)

    s1 = jnp.arange(L) // S2
    s2 = jnp.arange(L) % S2
    kk1 = jnp.arange(K * K) // K
    kk2 = jnp.arange(K * K) % K
    loc1 = s1[:, None] + kk1[None, :] - lk
    loc2 = s2[:, None] + kk2[None, :] - lk
    valid = (loc1 >= 0) & (loc1 < S1) & (loc2 >= 0) & (loc2 < S2)           # (L, K*K)
    bias = jnp.where(jnp.tile(valid, (1, T)), 0.0, -1e30).astype(jnp.float32).T  # (G, L)

    q = xq @ params["Wq"] + params["bq"][0]                                 # (M, C)
    k = jnp.einsum("gmc,gcd->gmd", u, params["Wk"]) + params["bk"]          # (G, M, C)
    v = jnp.einsum("gmc,gcd->gmd", u, params["Wv"]) + params["bv"]          # (G, M, C)

    qh = q.reshape(M, num_head, dim_head)
    kh = k.reshape(G, M, num_head, dim_head)
    vh = v.reshape(G, M, num_head, dim_head)
    logits = jnp.einsum("gmhd,mhd->gmh", kh, qh)
    logits = logits + jnp.tile(bias, (1, N))[:, :, None]
    p = jax.nn.softmax(logits, axis=0)
    out = jnp.einsum("gmh,gmhd->mhd", p, vh).reshape(M, C)
    return jnp.transpose(out.reshape(N, S1, S2, C), (0, 3, 1, 2))


# --------------------------------------------------------------------------------------
if __name__ == "__main__":
    # args: dim_hidden=32, num_head=4, dim_head=8, spatial_kernel_side_length=3, Time_kernel=3
    N, C, S1, S2 = 6, 32, 8, 8
    T, K = 3, 3
    H, Dh = 4, 8
    assert C == H * Dh
    G = T * K * K

    key = jax.random.PRNGKey(0)
    kx, kwq, kbq, kwk, kbk, kwv, kbv = jax.random.split(key, 7)

    def bf16_round(a):
        # The kernel feeds its MXU operands in bf16 (per perf review).  Rounding the test
        # data to bf16-representable values makes the bf16 casts inside the kernel lossless,
        # so the f32 reference comparison checks kernel logic rather than dtype choice.
        return a.astype(jnp.bfloat16).astype(jnp.float32)

    scale = 1.0 / (C ** 0.5)
    x = bf16_round(jax.random.normal(kx, (N, C, S1, S2), jnp.float32))
    params = {
        "Wq": bf16_round(jax.random.normal(kwq, (C, C), jnp.float32) * scale),
        "bq": jax.random.normal(kbq, (1, C), jnp.float32) * 0.01,
        "Wk": bf16_round(jax.random.normal(kwk, (G, C, C), jnp.float32) * scale),
        "bk": jax.random.normal(kbk, (G, 1, C), jnp.float32) * 0.01,
        "Wv": bf16_round(jax.random.normal(kwv, (G, C, C), jnp.float32) * scale),
        "bv": jax.random.normal(kbv, (G, 1, C), jnp.float32) * 0.01,
    }

    # Params-only packing: done once, outside the per-forward hot path.
    packed = pack_gct_params(params, S1=S1, S2=S2, time_kernel=T, spatial_kernel=K,
                             dim_head=Dh, groups_per_chunk=4)

    fwd = jax.jit(functools.partial(gct_forward, time_kernel=T, spatial_kernel=K))
    out = fwd(x, packed)
    jax.block_until_ready(out)

    ref = gct_reference(x, params, time_kernel=T, spatial_kernel=K,
                        num_head=H, dim_head=Dh)
    assert out.shape == (N, C, S1, S2)
    assert bool(jnp.all(jnp.isfinite(out)))
    assert bool(jnp.allclose(out, ref, atol=2e-2, rtol=2e-2))
    print("KERNEL_OK")
</pallas_src>

<mosaic_0001>
module attributes {stable_mosaic.version = 11 : i64} {
  func.func @_gct_fused_kernel(%arg0: i32, %arg1: memref<64x32xbf16, #tpu.memory_space<vmem>>, %arg2: memref<32x128xbf16, #tpu.memory_space<vmem>>, %arg3: memref<1x128xf32, #tpu.memory_space<vmem>>, %arg4: memref<7x64x128xbf16, #tpu.memory_space<vmem>>, %arg5: memref<7x128x256xbf16, #tpu.memory_space<vmem>>, %arg6: memref<7x1x256xf32, #tpu.memory_space<vmem>>, %arg7: memref<128x128xbf16, #tpu.memory_space<vmem>>, %arg8: memref<7x64x128xf32, #tpu.memory_space<vmem>>, %arg9: memref<1x32x64xf32, #tpu.memory_space<vmem>>, %arg10: memref<7x64x128xbf16, #tpu.memory_space<vmem>>, %arg11: memref<7x64x128xf32, #tpu.memory_space<vmem>>) attributes {dimension_semantics = [#tpu.dimension_semantics<parallel>], iteration_bounds = array<i64: 6>, scalar_prefetch = 0 : i64, scratch_operands = 2 : i64, tpu.core_type = #tpu.core_type<tc>, window_params = [{transform_indices = @transform_0, window_bounds = array<i64: 64, 32>}, {pipeline_mode = #tpu.pipeline_mode<synchronous>, transform_indices = @transform_1, window_bounds = array<i64: 32, 128>}, {pipeline_mode = #tpu.pipeline_mode<synchronous>, transform_indices = @transform_2, window_bounds = array<i64: 1, 128>}, {transform_indices = @transform_3, window_bounds = array<i64: 7, 64, 128>}, {pipeline_mode = #tpu.pipeline_mode<synchronous>, transform_indices = @transform_4, window_bounds = array<i64: 7, 128, 256>}, {pipeline_mode = #tpu.pipeline_mode<synchronous>, transform_indices = @transform_5, window_bounds = array<i64: 7, 1, 256>}, {pipeline_mode = #tpu.pipeline_mode<synchronous>, transform_indices = @transform_6, window_bounds = array<i64: 128, 128>}, {pipeline_mode = #tpu.pipeline_mode<synchronous>, transform_indices = @transform_7, window_bounds = array<i64: 7, 64, 128>}, {transform_indices = @transform_8, window_bounds = array<i64: 1, 32, 64>}]} {
    %c0 = arith.constant 0 : index
    %c0_0 = arith.constant 0 : index
    %0 = vector.load %arg1[%c0, %c0_0] : memref<64x32xbf16, #tpu.memory_space<vmem>>, vector<64x32xbf16>
    %c0_1 = arith.constant 0 : index
    %c0_2 = arith.constant 0 : index
    %1 = vector.load %arg2[%c0_1, %c0_2] : memref<32x128xbf16, #tpu.memory_space<vmem>>, vector<32x128xbf16>
    %cst = arith.constant dense<0.000000e+00> : vector<64x128xf32>
    %2 = tpu.matmul %0, %1, %cst {dimension_numbers = #tpu.dot_dimension_numbers<[1], [0], [0], [1], [0, 0, 1, 1], [], []>} : vector<64x32xbf16>, vector<32x128xbf16>, vector<64x128xf32> -> vector<64x128xf32>
    %c0_3 = arith.constant 0 : index
    %c0_4 = arith.constant 0 : index
    %3 = vector.load %arg3[%c0_3, %c0_4] : memref<1x128xf32, #tpu.memory_space<vmem>>, vector<1x128xf32>
    %4 = vector.broadcast %3 : vector<1x128xf32> to vector<64x128xf32>
    %5 = arith.addf %2, %4 : vector<64x128xf32>
    %c0_5 = arith.constant 0 : index
    %c0_6 = arith.constant 0 : index
    %6 = vector.load %arg7[%c0_5, %c0_6] : memref<128x128xbf16, #tpu.memory_space<vmem>>, vector<128x128xbf16>
    %c0_7 = arith.constant 0 : index
    %c0_8 = arith.constant 0 : index
    %c0_9 = arith.constant 0 : index
    %7 = vector.load %arg4[%c0_7, %c0_8, %c0_9] : memref<7x64x128xbf16, #tpu.memory_space<vmem>>, vector<1x64x128xbf16>
    %8 = vector.shape_cast %7 : vector<1x64x128xbf16> to vector<64x128xbf16>
    %c0_10 = arith.constant 0 : index
    %c0_11 = arith.constant 0 : index
    %c0_12 = arith.constant 0 : index
    %9 = vector.load %arg5[%c0_10, %c0_11, %c0_12] : memref<7x128x256xbf16, #tpu.memory_space<vmem>>, vector<1x128x256xbf16>
    %10 = vector.shape_cast %9 : vector<1x128x256xbf16> to vector<128x256xbf16>
    %cst_13 = arith.constant dense<0.000000e+00> : vector<64x256xf32>
    %11 = tpu.matmul %8, %10, %cst_13 {dimension_numbers = #tpu.dot_dimension_numbers<[1], [0], [0], [1], [0, 0, 1, 1], [], []>} : vector<64x128xbf16>, vector<128x256xbf16>, vector<64x256xf32> -> vector<64x256xf32>
    %c0_14 = arith.constant 0 : index
    %c0_15 = arith.constant 0 : index
    %c0_16 = arith.constant 0 : index
    %12 = vector.load %arg6[%c0_14, %c0_15, %c0_16] : memref<7x1x256xf32, #tpu.memory_space<vmem>>, vector<1x1x256xf32>
    %13 = vector.shape_cast %12 : vector<1x1x256xf32> to vector<1x256xf32>
    %14 = vector.broadcast %13 : vector<1x256xf32> to vector<64x256xf32>
    %15 = arith.addf %11, %14 : vector<64x256xf32>
    %16 = vector.extract_strided_slice %15 {offsets = [0, 128], sizes = [64, 128], strides = [1, 1]} : vector<64x256xf32> to vector<64x128xf32>
    %17 = arith.truncf %16 : vector<64x128xf32> to vector<64x128xbf16>
    %c0_17 = arith.constant 0 : index
    %c0_18 = arith.constant 0 : index
    %c0_19 = arith.constant 0 : index
    %18 = vector.load %arg10[%c0_17, %c0_18, %c0_19] : memref<7x64x128xbf16, #tpu.memory_space<vmem>>, vector<1x64x128xbf16>
    %19 = vector.shape_cast %18 : vector<1x64x128xbf16> to vector<64x128xbf16>
    %20 = vector.shape_cast %17 : vector<64x128xbf16> to vector<1x64x128xbf16>
    tpu.vector_store %arg10[%c0_17, %c0_18, %c0_19], %20 {strides = array<i32>} : memref<7x64x128xbf16, #tpu.memory_space<vmem>>, vector<1x64x128xbf16>,
    %21 = vector.extract_strided_slice %15 {offsets = [0, 0], sizes = [64, 128], strides = [1, 1]} : vector<64x256xf32> to vector<64x128xf32>
    %22 = arith.mulf %21, %5 : vector<64x128xf32>
    %23 = arith.truncf %22 : vector<64x128xf32> to vector<64x128xbf16>
    %cst_20 = arith.constant dense<0.000000e+00> : vector<64x128xf32>
    %24 = tpu.matmul %23, %6, %cst_20 {dimension_numbers = #tpu.dot_dimension_numbers<[1], [0], [0], [1], [0, 0, 1, 1], [], []>} : vector<64x128xbf16>, vector<128x128xbf16>, vector<64x128xf32> -> vector<64x128xf32>
    %c0_21 = arith.constant 0 : index
    %c0_22 = arith.constant 0 : index
    %c0_23 = arith.constant 0 : index
    %25 = vector.load %arg8[%c0_21, %c0_22, %c0_23] : memref<7x64x128xf32, #tpu.memory_space<vmem>>, vector<1x64x128xf32>
    %26 = vector.shape_cast %25 : vector<1x64x128xf32> to vector<64x128xf32>
    %27 = arith.addf %24, %26 : vector<64x128xf32>
    %c0_24 = arith.constant 0 : index
    %c0_25 = arith.constant 0 : index
    %c0_26 = arith.constant 0 : index
    %28 = vector.load %arg11[%c0_24, %c0_25, %c0_26] : memref<7x64x128xf32, #tpu.memory_space<vmem>>, vector<1x64x128xf32>
    %29 = vector.shape_cast %28 : vector<1x64x128xf32> to vector<64x128xf32>
    %30 = vector.shape_cast %27 : vector<64x128xf32> to vector<1x64x128xf32>
    tpu.vector_store %arg11[%c0_24, %c0_25, %c0_26], %30 {strides = array<i32>} : memref<7x64x128xf32, #tpu.memory_space<vmem>>, vector<1x64x128xf32>,
    %c1 = arith.constant 1 : index
    %c0_27 = arith.constant 0 : index
    %c0_28 = arith.constant 0 : index
    %31 = vector.load %arg4[%c1, %c0_27, %c0_28] : memref<7x64x128xbf16, #tpu.memory_space<vmem>>, vector<1x64x128xbf16>
    %32 = vector.shape_cast %31 : vector<1x64x128xbf16> to vector<64x128xbf16>
    %c1_29 = arith.constant 1 : index
    %c0_30 = arith.constant 0 : index
    %c0_31 = arith.constant 0 : index
    %33 = vector.load %arg5[%c1_29, %c0_30, %c0_31] : memref<7x128x256xbf16, #tpu.memory_space<vmem>>, vector<1x128x256xbf16>
    %34 = vector.shape_cast %33 : vector<1x128x256xbf16> to vector<128x256xbf16>
    %cst_32 = arith.constant dense<0.000000e+00> : vector<64x256xf32>
    %35 = tpu.matmul %32, %34, %cst_32 {dimension_numbers = #tpu.dot_dimension_numbers<[1], [0], [0], [1], [0, 0, 1, 1], [], []>} : vector<64x128xbf16>, vector<128x256xbf16>, vector<64x256xf32> -> vector<64x256xf32>
    %c1_33 = arith.constant 1 : index
    %c0_34 = arith.constant 0 : index
    %c0_35 = arith.constant 0 : index
    %36 = vector.load %arg6[%c1_33, %c0_34, %c0_35] : memref<7x1x256xf32, #tpu.memory_space<vmem>>, vector<1x1x256xf32>
    %37 = vector.shape_cast %36 : vector<1x1x256xf32> to vector<1x256xf32>
    %38 = vector.broadcast %37 : vector<1x256xf32> to vector<64x256xf32>
    %39 = arith.addf %35, %38 : vector<64x256xf32>
    %40 = vector.extract_strided_slice %39 {offsets = [0, 128], sizes = [64, 128], strides = [1, 1]} : vector<64x256xf32> to vector<64x128xf32>
    %41 = arith.truncf %40 : vector<64x128xf32> to vector<64x128xbf16>
    %c1_36 = arith.constant 1 : index
    %c0_37 = arith.constant 0 : index
    %c0_38 = arith.constant 0 : index
    %42 = vector.load %arg10[%c1_36, %c0_37, %c0_38] : memref<7x64x128xbf16, #tpu.memory_space<vmem>>, vector<1x64x128xbf16>
    %43 = vector.shape_cast %42 : vector<1x64x128xbf16> to vector<64x128xbf16>
    %44 = vector.shape_cast %41 : vector<64x128xbf16> to vector<1x64x128xbf16>
    tpu.vector_store %arg10[%c1_36, %c0_37, %c0_38], %44 {strides = array<i32>} : memref<7x64x128xbf16, #tpu.memory_space<vmem>>, vector<1x64x128xbf16>,
    %45 = vector.extract_strided_slice %39 {offsets = [0, 0], sizes = [64, 128], strides = [1, 1]} : vector<64x256xf32> to vector<64x128xf32>
    %46 = arith.mulf %45, %5 : vector<64x128xf32>
    %47 = arith.truncf %46 : vector<64x128xf32> to vector<64x128xbf16>
    %cst_39 = arith.constant dense<0.000000e+00> : vector<64x128xf32>
    %48 = tpu.matmul %47, %6, %cst_39 {dimension_numbers = #tpu.dot_dimension_numbers<[1], [0], [0], [1], [0, 0, 1, 1], [], []>} : vector<64x128xbf16>, vector<128x128xbf16>, vector<64x128xf32> -> vector<64x128xf32>
    %c1_40 = arith.constant 1 : index
    %c0_41 = arith.constant 0 : index
    %c0_42 = arith.constant 0 : index
    %49 = vector.load %arg8[%c1_40, %c0_41, %c0_42] : memref<7x64x128xf32, #tpu.memory_space<vmem>>, vector<1x64x128xf32>
    %50 = vector.shape_cast %49 : vector<1x64x128xf32> to vector<64x128xf32>
    %51 = arith.addf %48, %50 : vector<64x128xf32>
    %c1_43 = arith.constant 1 : index
    %c0_44 = arith.constant 0 : index
    %c0_45 = arith.constant 0 : index
    %52 = vector.load %arg11[%c1_43, %c0_44, %c0_45] : memref<7x64x128xf32, #tpu.memory_space<vmem>>, vector<1x64x128xf32>
    %53 = vector.shape_cast %52 : vector<1x64x128xf32> to vector<64x128xf32>
    %54 = vector.shape_cast %51 : vector<64x128xf32> to vector<1x64x128xf32>
    tpu.vector_store %arg11[%c1_43, %c0_44, %c0_45], %54 {strides = array<i32>} : memref<7x64x128xf32, #tpu.memory_space<vmem>>, vector<1x64x128xf32>,
    %55 = arith.maximumf %27, %51 : vector<64x128xf32>
    %c2 = arith.constant 2 : index
    %c0_46 = arith.constant 0 : index
    %c0_47 = arith.constant 0 : index
    %56 = vector.load %arg4[%c2, %c0_46, %c0_47] : memref<7x64x128xbf16, #tpu.memory_space<vmem>>, vector<1x64x128xbf16>
    %57 = vector.shape_cast %56 : vector<1x64x128xbf16> to vector<64x128xbf16>
    %c2_48 = arith.constant 2 : index
    %c0_49 = arith.constant 0 : index
    %c0_50 = arith.constant 0 : index
    %58 = vector.load %arg5[%c2_48, %c0_49, %c0_50] : memref<7x128x256xbf16, #tpu.memory_space<vmem>>, vector<1x128x256xbf16>
    %59 = vector.shape_cast %58 : vector<1x128x256xbf16> to vector<128x256xbf16>
    %cst_51 = arith.constant dense<0.000000e+00> : vector<64x256xf32>
    %60 = tpu.matmul %57, %59, %cst_51 {dimension_numbers = #tpu.dot_dimension_numbers<[1], [0], [0], [1], [0, 0, 1, 1], [], []>} : vector<64x128xbf16>, vector<128x256xbf16>, vector<64x256xf32> -> vector<64x256xf32>
    %c2_52 = arith.constant 2 : index
    %c0_53 = arith.constant 0 : index
    %c0_54 = arith.constant 0 : index
    %61 = vector.load %arg6[%c2_52, %c0_53, %c0_54] : memref<7x1x256xf32, #tpu.memory_space<vmem>>, vector<1x1x256xf32>
    %62 = vector.shape_cast %61 : vector<1x1x256xf32> to vector<1x256xf32>
    %63 = vector.broadcast %62 : vector<1x256xf32> to vector<64x256xf32>
    %64 = arith.addf %60, %63 : vector<64x256xf32>
    %65 = vector.extract_strided_slice %64 {offsets = [0, 128], sizes = [64, 128], strides = [1, 1]} : vector<64x256xf32> to vector<64x128xf32>
    %66 = arith.truncf %65 : vector<64x128xf32> to vector<64x128xbf16>
    %c2_55 = arith.constant 2 : index
    %c0_56 = arith.constant 0 : index
    %c0_57 = arith.constant 0 : index
    %67 = vector.load %arg10[%c2_55, %c0_56, %c0_57] : memref<7x64x128xbf16, #tpu.memory_space<vmem>>, vector<1x64x128xbf16>
    %68 = vector.shape_cast %67 : vector<1x64x128xbf16> to vector<64x128xbf16>
    %69 = vector.shape_cast %66 : vector<64x128xbf16> to vector<1x64x128xbf16>
    tpu.vector_store %arg10[%c2_55, %c0_56, %c0_57], %69 {strides = array<i32>} : memref<7x64x128xbf16, #tpu.memory_space<vmem>>, vector<1x64x128xbf16>,
    %70 = vector.extract_strided_slice %64 {offsets = [0, 0], sizes = [64, 128], strides = [1, 1]} : vector<64x256xf32> to vector<64x128xf32>
    %71 = arith.mulf %70, %5 : vector<64x128xf32>
    %72 = arith.truncf %71 : vector<64x128xf32> to vector<64x128xbf16>
    %cst_58 = arith.constant dense<0.000000e+00> : vector<64x128xf32>
    %73 = tpu.matmul %72, %6, %cst_58 {dimension_numbers = #tpu.dot_dimension_numbers<[1], [0], [0], [1], [0, 0, 1, 1], [], []>} : vector<64x128xbf16>, vector<128x128xbf16>, vector<64x128xf32> -> vector<64x128xf32>
    %c2_59 = arith.constant 2 : index
    %c0_60 = arith.constant 0 : index
    %c0_61 = arith.constant 0 : index
    %74 = vector.load %arg8[%c2_59, %c0_60, %c0_61] : memref<7x64x128xf32, #tpu.memory_space<vmem>>, vector<1x64x128xf32>
    %75 = vector.shape_cast %74 : vector<1x64x128xf32> to vector<64x128xf32>
    %76 = arith.addf %73, %75 : vector<64x128xf32>
    %c2_62 = arith.constant 2 : index
    %c0_63 = arith.constant 0 : index
    %c0_64 = arith.constant 0 : index
    %77 = vector.load %arg11[%c2_62, %c0_63, %c0_64] : memref<7x64x128xf32, #tpu.memory_space<vmem>>, vector<1x64x128xf32>
    %78 = vector.shape_cast %77 : vector<1x64x128xf32> to vector<64x128xf32>
    %79 = vector.shape_cast %76 : vector<64x128xf32> to vector<1x64x128xf32>
    tpu.vector_store %arg11[%c2_62, %c0_63, %c0_64], %79 {strides = array<i32>} : memref<7x64x128xf32, #tpu.memory_space<vmem>>, vector<1x64x128xf32>,
    %80 = arith.maximumf %55, %76 : vector<64x128xf32>
    %c3 = arith.constant 3 : index
    %c0_65 = arith.constant 0 : index
    %c0_66 = arith.constant 0 : index
    %81 = vector.load %arg4[%c3, %c0_65, %c0_66] : memref<7x64x128xbf16, #tpu.memory_space<vmem>>, vector<1x64x128xbf16>
    %82 = vector.shape_cast %81 : vector<1x64x128xbf16> to vector<64x128xbf16>
    %c3_67 = arith.constant 3 : index
    %c0_68 = arith.constant 0 : index
    %c0_69 = arith.constant 0 : index
    %83 = vector.load %arg5[%c3_67, %c0_68, %c0_69] : memref<7x128x256xbf16, #tpu.memory_space<vmem>>, vector<1x128x256xbf16>
    %84 = vector.shape_cast %83 : vector<1x128x256xbf16> to vector<128x256xbf16>
    %cst_70 = arith.constant dense<0.000000e+00> : vector<64x256xf32>
    %85 = tpu.matmul %82, %84, %cst_70 {dimension_numbers = #tpu.dot_dimension_numbers<[1], [0], [0], [1], [0, 0, 1, 1], [], []>} : vector<64x128xbf16>, vector<128x256xbf16>, vector<64x256xf32> -> vector<64x256xf32>
    %c3_71 = arith.constant 3 : index
    %c0_72 = arith.constant 0 : index
    %c0_73 = arith.constant 0 : index
    %86 = vector.load %arg6[%c3_71, %c0_72, %c0_73] : memref<7x1x256xf32, #tpu.memory_space<vmem>>, vector<1x1x256xf32>
    %87 = vector.shape_cast %86 : vector<1x1x256xf32> to vector<1x256xf32>
    %88 = vector.broadcast %87 : vector<1x256xf32> to vector<64x256xf32>
    %89 = arith.addf %85, %88 : vector<64x256xf32>
    %90 = vector.extract_strided_slice %89 {offsets = [0, 128], sizes = [64, 128], strides = [1, 1]} : vector<64x256xf32> to vector<64x128xf32>
    %91 = arith.truncf %90 : vector<64x128xf32> to vector<64x128xbf16>
    %c3_74 = arith.constant 3 : index
    %c0_75 = arith.constant 0 : index
    %c0_76 = arith.constant 0 : index
    %92 = vector.load %arg10[%c3_74, %c0_75, %c0_76] : memref<7x64x128xbf16, #tpu.memory_space<vmem>>, vector<1x64x128xbf16>
    %93 = vector.shape_cast %92 : vector<1x64x128xbf16> to vector<64x128xbf16>
    %94 = vector.shape_cast %91 : vector<64x128xbf16> to vector<1x64x128xbf16>
    tpu.vector_store %arg10[%c3_74, %c0_75, %c0_76], %94 {strides = array<i32>} : memref<7x64x128xbf16, #tpu.memory_space<vmem>>, vector<1x64x128xbf16>,
    %95 = vector.extract_strided_slice %89 {offsets = [0, 0], sizes = [64, 128], strides = [1, 1]} : vector<64x256xf32> to vector<64x128xf32>
    %96 = arith.mulf %95, %5 : vector<64x128xf32>
    %97 = arith.truncf %96 : vector<64x128xf32> to vector<64x128xbf16>
    %cst_77 = arith.constant dense<0.000000e+00> : vector<64x128xf32>
    %98 = tpu.matmul %97, %6, %cst_77 {dimension_numbers = #tpu.dot_dimension_numbers<[1], [0], [0], [1], [0, 0, 1, 1], [], []>} : vector<64x128xbf16>, vector<128x128xbf16>, vector<64x128xf32> -> vector<64x128xf32>
    %c3_78 = arith.constant 3 : index
    %c0_79 = arith.constant 0 : index
    %c0_80 = arith.constant 0 : index
    %99 = vector.load %arg8[%c3_78, %c0_79, %c0_80] : memref<7x64x128xf32, #tpu.memory_space<vmem>>, vector<1x64x128xf32>
    %100 = vector.shape_cast %99 : vector<1x64x128xf32> to vector<64x128xf32>
    %101 = arith.addf %98, %100 : vector<64x128xf32>
    %c3_81 = arith.constant 3 : index
    %c0_82 = arith.constant 0 : index
    %c0_83 = arith.constant 0 : index
    %102 = vector.load %arg11[%c3_81, %c0_82, %c0_83] : memref<7x64x128xf32, #tpu.memory_space<vmem>>, vector<1x64x128xf32>
    %103 = vector.shape_cast %102 : vector<1x64x128xf32> to vector<64x128xf32>
    %104 = vector.shape_cast %101 : vector<64x128xf32> to vector<1x64x128xf32>
    tpu.vector_store %arg11[%c3_81, %c0_82, %c0_83], %104 {strides = array<i32>} : memref<7x64x128xf32, #tpu.memory_space<vmem>>, vector<1x64x128xf32>,
    %105 = arith.maximumf %80, %101 : vector<64x128xf32>
    %c4 = arith.constant 4 : index
    %c0_84 = arith.constant 0 : index
    %c0_85 = arith.constant 0 : index
    %106 = vector.load %arg4[%c4, %c0_84, %c0_85] : memref<7x64x128xbf16, #tpu.memory_space<vmem>>, vector<1x64x128xbf16>
    %107 = vector.shape_cast %106 : vector<1x64x128xbf16> to vector<64x128xbf16>
    %c4_86 = arith.constant 4 : index
    %c0_87 = arith.constant 0 : index
    %c0_88 = arith.constant 0 : index
    %108 = vector.load %arg5[%c4_86, %c0_87, %c0_88] : memref<7x128x256xbf16, #tpu.memory_space<vmem>>, vector<1x128x256xbf16>
    %109 = vector.shape_cast %108 : vector<1x128x256xbf16> to vector<128x256xbf16>
    %cst_89 = arith.constant dense<0.000000e+00> : vector<64x256xf32>
    %110 = tpu.matmul %107, %109, %cst_89 {dimension_numbers = #tpu.dot_dimension_numbers<[1], [0], [0], [1], [0, 0, 1, 1], [], []>} : vector<64x128xbf16>, vector<128x256xbf16>, vector<64x256xf32> -> vector<64x256xf32>
    %c4_90 = arith.constant 4 : index
    %c0_91 = arith.constant 0 : index
    %c0_92 = arith.constant 0 : index
    %111 = vector.load %arg6[%c4_90, %c0_91, %c0_92] : memref<7x1x256xf32, #tpu.memory_space<vmem>>, vector<1x1x256xf32>
    %112 = vector.shape_cast %111 : vector<1x1x256xf32> to vector<1x256xf32>
    %113 = vector.broadcast %112 : vector<1x256xf32> to vector<64x256xf32>
    %114 = arith.addf %110, %113 : vector<64x256xf32>
    %115 = vector.extract_strided_slice %114 {offsets = [0, 128], sizes = [64, 128], strides = [1, 1]} : vector<64x256xf32> to vector<64x128xf32>
    %116 = arith.truncf %115 : vector<64x128xf32> to vector<64x128xbf16>
    %c4_93 = arith.constant 4 : index
    %c0_94 = arith.constant 0 : index
    %c0_95 = arith.constant 0 : index
    %117 = vector.load %arg10[%c4_93, %c0_94, %c0_95] : memref<7x64x128xbf16, #tpu.memory_space<vmem>>, vector<1x64x128xbf16>
    %118 = vector.shape_cast %117 : vector<1x64x128xbf16> to vector<64x128xbf16>
    %119 = vector.shape_cast %116 : vector<64x128xbf16> to vector<1x64x128xbf16>
    tpu.vector_store %arg10[%c4_93, %c0_94, %c0_95], %119 {strides = array<i32>} : memref<7x64x128xbf16, #tpu.memory_space<vmem>>, vector<1x64x128xbf16>,
    %120 = vector.extract_strided_slice %114 {offsets = [0, 0], sizes = [64, 128], strides = [1, 1]} : vector<64x256xf32> to vector<64x128xf32>
    %121 = arith.mulf %120, %5 : vector<64x128xf32>
    %122 = arith.truncf %121 : vector<64x128xf32> to vector<64x128xbf16>
    %cst_96 = arith.constant dense<0.000000e+00> : vector<64x128xf32>
    %123 = tpu.matmul %122, %6, %cst_96 {dimension_numbers = #tpu.dot_dimension_numbers<[1], [0], [0], [1], [0, 0, 1, 1], [], []>} : vector<64x128xbf16>, vector<128x128xbf16>, vector<64x128xf32> -> vector<64x128xf32>
    %c4_97 = arith.constant 4 : index
    %c0_98 = arith.constant 0 : index
    %c0_99 = arith.constant 0 : index
    %124 = vector.load %arg8[%c4_97, %c0_98, %c0_99] : memref<7x64x128xf32, #tpu.memory_space<vmem>>, vector<1x64x128xf32>
    %125 = vector.shape_cast %124 : vector<1x64x128xf32> to vector<64x128xf32>
    %126 = arith.addf %123, %125 : vector<64x128xf32>
    %c4_100 = arith.constant 4 : index
    %c0_101 = arith.constant 0 : index
    %c0_102 = arith.constant 0 : index
    %127 = vector.load %arg11[%c4_100, %c0_101, %c0_102] : memref<7x64x128xf32, #tpu.memory_space<vmem>>, vector<1x64x128xf32>
    %128 = vector.shape_cast %127 : vector<1x64x128xf32> to vector<64x128xf32>
    %129 = vector.shape_cast %126 : vector<64x128xf32> to vector<1x64x128xf32>
    tpu.vector_store %arg11[%c4_100, %c0_101, %c0_102], %129 {strides = array<i32>} : memref<7x64x128xf32, #tpu.memory_space<vmem>>, vector<1x64x128xf32>,
    %130 = arith.maximumf %105, %126 : vector<64x128xf32>
    %c5 = arith.constant 5 : index
    %c0_103 = arith.constant 0 : index
    %c0_104 = arith.constant 0 : index
    %131 = vector.load %arg4[%c5, %c0_103, %c0_104] : memref<7x64x128xbf16, #tpu.memory_space<vmem>>, vector<1x64x128xbf16>
    %132 = vector.shape_cast %131 : vector<1x64x128xbf16> to vector<64x128xbf16>
    %c5_105 = arith.constant 5 : index
    %c0_106 = arith.constant 0 : index
    %c0_107 = arith.constant 0 : index
    %133 = vector.load %arg5[%c5_105, %c0_106, %c0_107] : memref<7x128x256xbf16, #tpu.memory_space<vmem>>, vector<1x128x256xbf16>
    %134 = vector.shape_cast %133 : vector<1x128x256xbf16> to vector<128x256xbf16>
    %cst_108 = arith.constant dense<0.000000e+00> : vector<64x256xf32>
    %135 = tpu.matmul %132, %134, %cst_108 {dimension_numbers = #tpu.dot_dimension_numbers<[1], [0], [0], [1], [0, 0, 1, 1], [], []>} : vector<64x128xbf16>, vector<128x256xbf16>, vector<64x256xf32> -> vector<64x256xf32>
    %c5_109 = arith.constant 5 : index
    %c0_110 = arith.constant 0 : index
    %c0_111 = arith.constant 0 : index
    %136 = vector.load %arg6[%c5_109, %c0_110, %c0_111] : memref<7x1x256xf32, #tpu.memory_space<vmem>>, vector<1x1x256xf32>
    %137 = vector.shape_cast %136 : vector<1x1x256xf32> to vector<1x256xf32>
    %138 = vector.broadcast %137 : vector<1x256xf32> to vector<64x256xf32>
    %139 = arith.addf %135, %138 : vector<64x256xf32>
    %140 = vector.extract_strided_slice %139 {offsets = [0, 128], sizes = [64, 128], strides = [1, 1]} : vector<64x256xf32> to vector<64x128xf32>
    %141 = arith.truncf %140 : vector<64x128xf32> to vector<64x128xbf16>
    %c5_112 = arith.constant 5 : index
    %c0_113 = arith.constant 0 : index
    %c0_114 = arith.constant 0 : index
    %142 = vector.load %arg10[%c5_112, %c0_113, %c0_114] : memref<7x64x128xbf16, #tpu.memory_space<vmem>>, vector<1x64x128xbf16>
    %143 = vector.shape_cast %142 : vector<1x64x128xbf16> to vector<64x128xbf16>
    %144 = vector.shape_cast %141 : vector<64x128xbf16> to vector<1x64x128xbf16>
    tpu.vector_store %arg10[%c5_112, %c0_113, %c0_114], %144 {strides = array<i32>} : memref<7x64x128xbf16, #tpu.memory_space<vmem>>, vector<1x64x128xbf16>,
    %145 = vector.extract_strided_slice %139 {offsets = [0, 0], sizes = [64, 128], strides = [1, 1]} : vector<64x256xf32> to vector<64x128xf32>
    %146 = arith.mulf %145, %5 : vector<64x128xf32>
    %147 = arith.truncf %146 : vector<64x128xf32> to vector<64x128xbf16>
    %cst_115 = arith.constant dense<0.000000e+00> : vector<64x128xf32>
    %148 = tpu.matmul %147, %6, %cst_115 {dimension_numbers = #tpu.dot_dimension_numbers<[1], [0], [0], [1], [0, 0, 1, 1], [], []>} : vector<64x128xbf16>, vector<128x128xbf16>, vector<64x128xf32> -> vector<64x128xf32>
    %c5_116 = arith.constant 5 : index
    %c0_117 = arith.constant 0 : index
    %c0_118 = arith.constant 0 : index
    %149 = vector.load %arg8[%c5_116, %c0_117, %c0_118] : memref<7x64x128xf32, #tpu.memory_space<vmem>>, vector<1x64x128xf32>
    %150 = vector.shape_cast %149 : vector<1x64x128xf32> to vector<64x128xf32>
    %151 = arith.addf %148, %150 : vector<64x128xf32>
    %c5_119 = arith.constant 5 : index
    %c0_120 = arith.constant 0 : index
    %c0_121 = arith.constant 0 : index
    %152 = vector.load %arg11[%c5_119, %c0_120, %c0_121] : memref<7x64x128xf32, #tpu.memory_space<vmem>>, vector<1x64x128xf32>
    %153 = vector.shape_cast %152 : vector<1x64x128xf32> to vector<64x128xf32>
    %154 = vector.shape_cast %151 : vector<64x128xf32> to vector<1x64x128xf32>
    tpu.vector_store %arg11[%c5_119, %c0_120, %c0_121], %154 {strides = array<i32>} : memref<7x64x128xf32, #tpu.memory_space<vmem>>, vector<1x64x128xf32>,
    %155 = arith.maximumf %130, %151 : vector<64x128xf32>
    %c6 = arith.constant 6 : index
    %c0_122 = arith.constant 0 : index
    %c0_123 = arith.constant 0 : index
    %156 = vector.load %arg4[%c6, %c0_122, %c0_123] : memref<7x64x128xbf16, #tpu.memory_space<vmem>>, vector<1x64x128xbf16>
    %157 = vector.shape_cast %156 : vector<1x64x128xbf16> to vector<64x128xbf16>
    %c6_124 = arith.constant 6 : index
    %c0_125 = arith.constant 0 : index
    %c0_126 = arith.constant 0 : index
    %158 = vector.load %arg5[%c6_124, %c0_125, %c0_126] : memref<7x128x256xbf16, #tpu.memory_space<vmem>>, vector<1x128x256xbf16>
    %159 = vector.shape_cast %158 : vector<1x128x256xbf16> to vector<128x256xbf16>
    %cst_127 = arith.constant dense<0.000000e+00> : vector<64x256xf32>
    %160 = tpu.matmul %157, %159, %cst_127 {dimension_numbers = #tpu.dot_dimension_numbers<[1], [0], [0], [1], [0, 0, 1, 1], [], []>} : vector<64x128xbf16>, vector<128x256xbf16>, vector<64x256xf32> -> vector<64x256xf32>
    %c6_128 = arith.constant 6 : index
    %c0_129 = arith.constant 0 : index
    %c0_130 = arith.constant 0 : index
    %161 = vector.load %arg6[%c6_128, %c0_129, %c0_130] : memref<7x1x256xf32, #tpu.memory_space<vmem>>, vector<1x1x256xf32>
    %162 = vector.shape_cast %161 : vector<1x1x256xf32> to vector<1x256xf32>
    %163 = vector.broadcast %162 : vector<1x256xf32> to vector<64x256xf32>
    %164 = arith.addf %160, %163 : vector<64x256xf32>
    %165 = vector.extract_strided_slice %164 {offsets = [0, 128], sizes = [64, 128], strides = [1, 1]} : vector<64x256xf32> to vector<64x128xf32>
    %166 = arith.truncf %165 : vector<64x128xf32> to vector<64x128xbf16>
    %c6_131 = arith.constant 6 : index
    %c0_132 = arith.constant 0 : index
    %c0_133 = arith.constant 0 : index
    %167 = vector.load %arg10[%c6_131, %c0_132, %c0_133] : memref<7x64x128xbf16, #tpu.memory_space<vmem>>, vector<1x64x128xbf16>
    %168 = vector.shape_cast %167 : vector<1x64x128xbf16> to vector<64x128xbf16>
    %169 = vector.shape_cast %166 : vector<64x128xbf16> to vector<1x64x128xbf16>
    tpu.vector_store %arg10[%c6_131, %c0_132, %c0_133], %169 {strides = array<i32>} : memref<7x64x128xbf16, #tpu.memory_space<vmem>>, vector<1x64x128xbf16>,
    %170 = vector.extract_strided_slice %164 {offsets = [0, 0], sizes = [64, 128], strides = [1, 1]} : vector<64x256xf32> to vector<64x128xf32>
    %171 = arith.mulf %170, %5 : vector<64x128xf32>
    %172 = arith.truncf %171 : vector<64x128xf32> to vector<64x128xbf16>
    %cst_134 = arith.constant dense<0.000000e+00> : vector<64x128xf32>
    %173 = tpu.matmul %172, %6, %cst_134 {dimension_numbers = #tpu.dot_dimension_numbers<[1], [0], [0], [1], [0, 0, 1, 1], [], []>} : vector<64x128xbf16>, vector<128x128xbf16>, vector<64x128xf32> -> vector<64x128xf32>
    %c6_135 = arith.constant 6 : index
    %c0_136 = arith.constant 0 : index
    %c0_137 = arith.constant 0 : index
    %174 = vector.load %arg8[%c6_135, %c0_136, %c0_137] : memref<7x64x128xf32, #tpu.memory_space<vmem>>, vector<1x64x128xf32>
    %175 = vector.shape_cast %174 : vector<1x64x128xf32> to vector<64x128xf32>
    %176 = arith.addf %173, %175 : vector<64x128xf32>
    %c6_138 = arith.constant 6 : index
    %c0_139 = arith.constant 0 : index
    %c0_140 = arith.constant 0 : index
    %177 = vector.load %arg11[%c6_138, %c0_139, %c0_140] : memref<7x64x128xf32, #tpu.memory_space<vmem>>, vector<1x64x128xf32>
    %178 = vector.shape_cast %177 : vector<1x64x128xf32> to vector<64x128xf32>
    %179 = vector.shape_cast %176 : vector<64x128xf32> to vector<1x64x128xf32>
    tpu.vector_store %arg11[%c6_138, %c0_139, %c0_140], %179 {strides = array<i32>} : memref<7x64x128xf32, #tpu.memory_space<vmem>>, vector<1x64x128xf32>,
    %180 = arith.maximumf %155, %176 : vector<64x128xf32>
    %c32_i32 = arith.constant 32 : i32
    %181 = tpu.dynamic_rotate %180 by %c32_i32 dim 1 : vector<64x128xf32>, i32 -> vector<64x128xf32>
    %182 = arith.maximumf %180, %181 : vector<64x128xf32>
    %c64_i32 = arith.constant 64 : i32
    %183 = tpu.dynamic_rotate %182 by %c64_i32 dim 1 : vector<64x128xf32>, i32 -> vector<64x128xf32>
    %184 = arith.maximumf %182, %183 : vector<64x128xf32>
    %cst_141 = arith.constant 0.000000e+00 : f32
    %185 = vector.broadcast %cst_141 : f32 to vector<64x128xf32>
    %cst_142 = arith.constant 0.000000e+00 : f32
    %186 = vector.broadcast %cst_142 : f32 to vector<64x128xf32>
    %c0_143 = arith.constant 0 : index
    %c0_144 = arith.constant 0 : index
    %c0_145 = arith.constant 0 : index
    %187 = vector.load %arg11[%c0_143, %c0_144, %c0_145] : memref<7x64x128xf32, #tpu.memory_space<vmem>>, vector<1x64x128xf32>
    %188 = vector.shape_cast %187 : vector<1x64x128xf32> to vector<64x128xf32>
    %189 = arith.subf %188, %184 : vector<64x128xf32>
    %190 = math.exp %189 : vector<64x128xf32>
    %191 = arith.addf %185, %190 : vector<64x128xf32>
    %c0_146 = arith.constant 0 : index
    %c0_147 = arith.constant 0 : index
    %c0_148 = arith.constant 0 : index
    %192 = vector.load %arg10[%c0_146, %c0_147, %c0_148] : memref<7x64x128xbf16, #tpu.memory_space<vmem>>, vector<1x64x128xbf16>
    %193 = vector.shape_cast %192 : vector<1x64x128xbf16> to vector<64x128xbf16>
    %194 = arith.extf %193 : vector<64x128xbf16> to vector<64x128xf32>
    %195 = arith.mulf %190, %194 : vector<64x128xf32>
    %196 = arith.addf %186, %195 : vector<64x128xf32>
    %c1_149 = arith.constant 1 : index
    %c0_150 = arith.constant 0 : index
    %c0_151 = arith.constant 0 : index
    %197 = vector.load %arg11[%c1_149, %c0_150, %c0_151] : memref<7x64x128xf32, #tpu.memory_space<vmem>>, vector<1x64x128xf32>
    %198 = vector.shape_cast %197 : vector<1x64x128xf32> to vector<64x128xf32>
    %199 = arith.subf %198, %184 : vector<64x128xf32>
    %200 = math.exp %199 : vector<64x128xf32>
    %201 = arith.addf %191, %200 : vector<64x128xf32>
    %c1_152 = arith.constant 1 : index
    %c0_153 = arith.constant 0 : index
    %c0_154 = arith.constant 0 : index
    %202 = vector.load %arg10[%c1_152, %c0_153, %c0_154] : memref<7x64x128xbf16, #tpu.memory_space<vmem>>, vector<1x64x128xbf16>
    %203 = vector.shape_cast %202 : vector<1x64x128xbf16> to vector<64x128xbf16>
    %204 = arith.extf %203 : vector<64x128xbf16> to vector<64x128xf32>
    %205 = arith.mulf %200, %204 : vector<64x128xf32>
    %206 = arith.addf %196, %205 : vector<64x128xf32>
    %c2_155 = arith.constant 2 : index
    %c0_156 = arith.constant 0 : index
    %c0_157 = arith.constant 0 : index
    %207 = vector.load %arg11[%c2_155, %c0_156, %c0_157] : memref<7x64x128xf32, #tpu.memory_space<vmem>>, vector<1x64x128xf32>
    %208 = vector.shape_cast %207 : vector<1x64x128xf32> to vector<64x128xf32>
    %209 = arith.subf %208, %184 : vector<64x128xf32>
    %210 = math.exp %209 : vector<64x128xf32>
    %211 = arith.addf %201, %210 : vector<64x128xf32>
    %c2_158 = arith.constant 2 : index
    %c0_159 = arith.constant 0 : index
    %c0_160 = arith.constant 0 : index
    %212 = vector.load %arg10[%c2_158, %c0_159, %c0_160] : memref<7x64x128xbf16, #tpu.memory_space<vmem>>, vector<1x64x128xbf16>
    %213 = vector.shape_cast %212 : vector<1x64x128xbf16> to vector<64x128xbf16>
    %214 = arith.extf %213 : vector<64x128xbf16> to vector<64x128xf32>
    %215 = arith.mulf %210, %214 : vector<64x128xf32>
    %216 = arith.addf %206, %215 : vector<64x128xf32>
    %c3_161 = arith.constant 3 : index
    %c0_162 = arith.constant 0 : index
    %c0_163 = arith.constant 0 : index
    %217 = vector.load %arg11[%c3_161, %c0_162, %c0_163] : memref<7x64x128xf32, #tpu.memory_space<vmem>>, vector<1x64x128xf32>
    %218 = vector.shape_cast %217 : vector<1x64x128xf32> to vector<64x128xf32>
    %219 = arith.subf %218, %184 : vector<64x128xf32>
    %220 = math.exp %219 : vector<64x128xf32>
    %221 = arith.addf %211, %220 : vector<64x128xf32>
    %c3_164 = arith.constant 3 : index
    %c0_165 = arith.constant 0 : index
    %c0_166 = arith.constant 0 : index
    %222 = vector.load %arg10[%c3_164, %c0_165, %c0_166] : memref<7x64x128xbf16, #tpu.memory_space<vmem>>, vector<1x64x128xbf16>
    %223 = vector.shape_cast %222 : vector<1x64x128xbf16> to vector<64x128xbf16>
    %224 = arith.extf %223 : vector<64x128xbf16> to vector<64x128xf32>
    %225 = arith.mulf %220, %224 : vector<64x128xf32>
    %226 = arith.addf %216, %225 : vector<64x128xf32>
    %c4_167 = arith.constant 4 : index
    %c0_168 = arith.constant 0 : index
    %c0_169 = arith.constant 0 : index
    %227 = vector.load %arg11[%c4_167, %c0_168, %c0_169] : memref<7x64x128xf32, #tpu.memory_space<vmem>>, vector<1x64x128xf32>
    %228 = vector.shape_cast %227 : vector<1x64x128xf32> to vector<64x128xf32>
    %229 = arith.subf %228, %184 : vector<64x128xf32>
    %230 = math.exp %229 : vector<64x128xf32>
    %231 = arith.addf %221, %230 : vector<64x128xf32>
    %c4_170 = arith.constant 4 : index
    %c0_171 = arith.constant 0 : index
    %c0_172 = arith.constant 0 : index
    %232 = vector.load %arg10[%c4_170, %c0_171, %c0_172] : memref<7x64x128xbf16, #tpu.memory_space<vmem>>, vector<1x64x128xbf16>
    %233 = vector.shape_cast %232 : vector<1x64x128xbf16> to vector<64x128xbf16>
    %234 = arith.extf %233 : vector<64x128xbf16> to vector<64x128xf32>
    %235 = arith.mulf %230, %234 : vector<64x128xf32>
    %236 = arith.addf %226, %235 : vector<64x128xf32>
    %c5_173 = arith.constant 5 : index
    %c0_174 = arith.constant 0 : index
    %c0_175 = arith.constant 0 : index
    %237 = vector.load %arg11[%c5_173, %c0_174, %c0_175] : memref<7x64x128xf32, #tpu.memory_space<vmem>>, vector<1x64x128xf32>
    %238 = vector.shape_cast %237 : vector<1x64x128xf32> to vector<64x128xf32>
    %239 = arith.subf %238, %184 : vector<64x128xf32>
    %240 = math.exp %239 : vector<64x128xf32>
    %241 = arith.addf %231, %240 : vector<64x128xf32>
    %c5_176 = arith.constant 5 : index
    %c0_177 = arith.constant 0 : index
    %c0_178 = arith.constant 0 : index
    %242 = vector.load %arg10[%c5_176, %c0_177, %c0_178] : memref<7x64x128xbf16, #tpu.memory_space<vmem>>, vector<1x64x128xbf16>
    %243 = vector.shape_cast %242 : vector<1x64x128xbf16> to vector<64x128xbf16>
    %244 = arith.extf %243 : vector<64x128xbf16> to vector<64x128xf32>
    %245 = arith.mulf %240, %244 : vector<64x128xf32>
    %246 = arith.addf %236, %245 : vector<64x128xf32>
    %c6_179 = arith.constant 6 : index
    %c0_180 = arith.constant 0 : index
    %c0_181 = arith.constant 0 : index
    %247 = vector.load %arg11[%c6_179, %c0_180, %c0_181] : memref<7x64x128xf32, #tpu.memory_space<vmem>>, vector<1x64x128xf32>
    %248 = vector.shape_cast %247 : vector<1x64x128xf32> to vector<64x128xf32>
    %249 = arith.subf %248, %184 : vector<64x128xf32>
    %250 = math.exp %249 : vector<64x128xf32>
    %251 = arith.addf %241, %250 : vector<64x128xf32>
    %c6_182 = arith.constant 6 : index
    %c0_183 = arith.constant 0 : index
    %c0_184 = arith.constant 0 : index
    %252 = vector.load %arg10[%c6_182, %c0_183, %c0_184] : memref<7x64x128xbf16, #tpu.memory_space<vmem>>, vector<1x64x128xbf16>
    %253 = vector.shape_cast %252 : vector<1x64x128xbf16> to vector<64x128xbf16>
    %254 = arith.extf %253 : vector<64x128xbf16> to vector<64x128xf32>
    %255 = arith.mulf %250, %254 : vector<64x128xf32>
    %256 = arith.addf %246, %255 : vector<64x128xf32>
    %c32_i32_185 = arith.constant 32 : i32
    %257 = tpu.dynamic_rotate %251 by %c32_i32_185 dim 1 : vector<64x128xf32>, i32 -> vector<64x128xf32>
    %258 = arith.addf %251, %257 : vector<64x128xf32>
    %c64_i32_186 = arith.constant 64 : i32
    %259 = tpu.dynamic_rotate %258 by %c64_i32_186 dim 1 : vector<64x128xf32>, i32 -> vector<64x128xf32>
    %260 = arith.addf %258, %259 : vector<64x128xf32>
    %c32_i32_187 = arith.constant 32 : i32
    %261 = tpu.dynamic_rotate %256 by %c32_i32_187 dim 1 : vector<64x128xf32>, i32 -> vector<64x128xf32>
    %262 = arith.addf %256, %261 : vector<64x128xf32>
    %c64_i32_188 = arith.constant 64 : i32
    %263 = tpu.dynamic_rotate %262 by %c64_i32_188 dim 1 : vector<64x128xf32>, i32 -> vector<64x128xf32>
    %264 = arith.addf %262, %263 : vector<64x128xf32>
    %265 = vector.extract_strided_slice %264 {offsets = [0, 0], sizes = [64, 32], strides = [1, 1]} : vector<64x128xf32> to vector<64x32xf32>
    %266 = vector.extract_strided_slice %260 {offsets = [0, 0], sizes = [64, 32], strides = [1, 1]} : vector<64x128xf32> to vector<64x32xf32>
    %267 = tpu.reciprocal %266 {approx = true} : vector<64x32xf32> -> vector<64x32xf32>
    %268 = arith.mulf %265, %267 : vector<64x32xf32>
    %269 = tpu.transpose %268, [1, 0] : vector<64x32xf32> -> vector<32x64xf32>
    %c0_189 = arith.constant 0 : index
    %c0_190 = arith.constant 0 : index
    %c0_191 = arith.constant 0 : index
    %270 = vector.load %arg9[%c0_189, %c0_190, %c0_191] : memref<1x32x64xf32, #tpu.memory_space<vmem>>, vector<1x32x64xf32>
    %271 = vector.shape_cast %270 : vector<1x32x64xf32> to vector<32x64xf32>
    %272 = vector.shape_cast %269 : vector<32x64xf32> to vector<1x32x64xf32>
    tpu.vector_store %arg9[%c0_189, %c0_190, %c0_191], %272 {strides = array<i32>} : memref<1x32x64xf32, #tpu.memory_space<vmem>>, vector<1x32x64xf32>,
    return
  }
  func.func @transform_0(%arg0: i32) -> (i32, i32) {
    %c0_i32 = arith.constant 0 : i32
    %c0_i32_0 = arith.constant 0 : i32
    return %arg0, %c0_i32 : i32, i32
  }
  func.func @transform_1(%arg0: i32) -> (i32, i32) {
    %c0_i32 = arith.constant 0 : i32
    %c0_i32_0 = arith.constant 0 : i32
    %c0_i32_1 = arith.constant 0 : i32
    return %c0_i32, %c0_i32_0 : i32, i32
  }
  func.func @transform_2(%arg0: i32) -> (i32, i32) {
    %c0_i32 = arith.constant 0 : i32
    %c0_i32_0 = arith.constant 0 : i32
    %c0_i32_1 = arith.constant 0 : i32
    return %c0_i32, %c0_i32_0 : i32, i32
  }
  func.func @transform_3(%arg0: i32) -> (i32, i32, i32) {
    %c0_i32 = arith.constant 0 : i32
    %c0_i32_0 = arith.constant 0 : i32
    %c0_i32_1 = arith.constant 0 : i32
    return %c0_i32, %arg0, %c0_i32_0 : i32, i32, i32
  }
  func.func @transform_4(%arg0: i32) -> (i32, i32, i32) {
    %c0_i32 = arith.constant 0 : i32
    %c0_i32_0 = arith.constant 0 : i32
    %c0_i32_1 = arith.constant 0 : i32
    %c0_i32_2 = arith.constant 0 : i32
    return %c0_i32, %c0_i32_0, %c0_i32_1 : i32, i32, i32
  }
  func.func @transform_5(%arg0: i32) -> (i32, i32, i32) {
    %c0_i32 = arith.constant 0 : i32
    %c0_i32_0 = arith.constant 0 : i32
    %c0_i32_1 = arith.constant 0 : i32
    %c0_i32_2 = arith.constant 0 : i32
    return %c0_i32, %c0_i32_0, %c0_i32_1 : i32, i32, i32
  }
  func.func @transform_6(%arg0: i32) -> (i32, i32) {
    %c0_i32 = arith.constant 0 : i32
    %c0_i32_0 = arith.constant 0 : i32
    %c0_i32_1 = arith.constant 0 : i32
    return %c0_i32, %c0_i32_0 : i32, i32
  }
  func.func @transform_7(%arg0: i32) -> (i32, i32, i32) {
    %c0_i32 = arith.constant 0 : i32
    %c0_i32_0 = arith.constant 0 : i32
    %c0_i32_1 = arith.constant 0 : i32
    %c0_i32_2 = arith.constant 0 : i32
    return %c0_i32, %c0_i32_0, %c0_i32_1 : i32, i32, i32
  }
  func.func @transform_8(%arg0: i32) -> (i32, i32, i32) {
    %c0_i32 = arith.constant 0 : i32
    %c0_i32_0 = arith.constant 0 : i32
    %c0_i32_1 = arith.constant 0 : i32
    return %arg0, %c0_i32, %c0_i32_0 : i32, i32, i32
  }
}

</mosaic_0001>

<llo_original>
// kernel: gct_forward.1
$region0: #{gct_forward.1}
  #allocation0 [shape = 'u32[]', space=smem, size = 0x4, offset = 0x4, fixed_abs, tag = 'smem constant byte address 0x4 - core index']
  #allocation1 [shape = 'u32[144,128]{1,0:T(1,128)}', space=vmem, size = 0x12000, scoped, tag = 'internal scratch']
  #allocation2 [shape = 'bf16[7,64,128]{2,1,0:T(16,128)(2,1)}', space=vmem, size = 0x1c000, scoped, tag = 'scratch operand']
  #allocation3 [shape = 'f32[7,64,128]{2,1,0:T(8,128)}', space=vmem, size = 0x38000, scoped, tag = 'scratch operand']
  %s0 = inlined_call_operand.vmem [shape: bf16[384,32], index: 0, kind: input, shape index: {}]
  %s1 = inlined_call_operand.vmem [shape: bf16[32,128], index: 1, kind: input, shape index: {}]
  %s2 = inlined_call_operand.vmem [shape: f32[1,128], index: 2, kind: input, shape index: {}]
  %s3 = inlined_call_operand.vmem [shape: bf16[7,384,128], index: 3, kind: input, shape index: {}]
  %s4 = inlined_call_operand.vmem [shape: bf16[7,128,256], index: 4, kind: input, shape index: {}]
  %s5 = inlined_call_operand.vmem [shape: f32[7,1,256], index: 5, kind: input, shape index: {}]
  %s6 = inlined_call_operand.vmem [shape: bf16[128,128], index: 6, kind: input, shape index: {}]
  %s7 = inlined_call_operand.vmem [shape: f32[7,64,128], index: 7, kind: input, shape index: {}]
  %s8 = inlined_call_operand.vmem [shape: f32[6,32,64], index: 8, kind: output, shape index: {}]
  %s9 = sld [smem:[#allocation0]]
  $region106: #{gct_forward.1} parent=0
    _
  %s11 = ssub.s32 1, %s9
  %s12 = scalar_select 0, %s11, %s9
  $region1: #{gct_forward.1} parent=0
    #allocation4 [shape = 'u8[229376]{0}', space=vmem, size = 0x38000, scoped, tag = 'input window, operand 3']
    loop: start=0, step=1, limit=8
    $region2: #{gct_forward.1} parent=1 // loop_pre_header
      _
    $region3: #{gct_forward.1} parent=1 // loop_header
      %s14 = sphi 0, %s18
      %p15 = scmp.ge.s32.totalorder %s14, 8
      %s24 = sphi 0, %s26
      %s27 = sphi 0, %s24
      %s28 = sphi 0, %s27
      %s44 = sphi 0, %s28
      %s48 = sphi 0, %s48
      %s50 = sphi 0, %s48
      %s51 = sphi 0, %s50
      %s65 = sphi 0, %s51
      %s69 = sphi 0, %s69
      %s71 = sphi 0, %s69
      %s72 = sphi 0, %s71
      %s86 = sphi 0, %s72
      %s92 = sphi 0, %s94
      %s95 = sphi 0, %s92
      %s96 = sphi 0, %s95
      %s112 = sphi 0, %s96
      %s116 = sphi 0, %s116
      %s118 = sphi 0, %s116
      %s119 = sphi 0, %s118
      %s133 = sphi 0, %s119
      %s137 = sphi 0, %s137
      %s139 = sphi 0, %s137
      %s140 = sphi 0, %s139
      %s154 = sphi 0, %s140
      %s158 = sphi 0, %s158
      %s160 = sphi 0, %s158
      %s161 = sphi 0, %s160
      %s175 = sphi 0, %s161
      %s179 = sphi 0, %s179
      %s181 = sphi 0, %s179
      %s182 = sphi 0, %s181
      %s196 = sphi 0, %s182
      %s202 = sphi 0, %s204
      %s205 = sphi 0, %s202
      %s206 = sphi 0, %s205
      %s222 = sphi 0, %s206
    $region4: #{gct_forward.1} parent=1 // loop_header_branch
      %17 = sbr.rel (%p15) target = $region8
    $region5: #{gct_forward.1} parent=1 // loop_body
      %s19 = ssub.s32 %s14, 1
      %s20 = ssub.s32 %s14, 2
      %s21 = sadd.s32 %s14, 1
      %s22 = ssub.s32 %s14, %s21
      %p23 = scmp.eq.s32.totalorder %s22, 0
      %s25 = sadd.s32 %s24, 1
      %s26 = scalar_select %p23, %s24, %s25
      %p29 = pneg %p23
      %p30 = scmp.eq.s32.totalorder %s14, 5
      %p31 = por %p29, %p30
      %p32 = scmp.ne.s32.totalorder %s24, %s27
      %p33 = scmp.eq.s32.totalorder %s14, 0
      %p34 = por %p32, %p33
      %p35 = scmp.ne.s32.totalorder %s24, %s27
      %p36 = scmp.eq.s32.totalorder %s19, 5
      %p37 = por %p35, %p36
      %p38 = scmp.ne.s32.totalorder %s27, %s28
      %p39 = scmp.eq.s32.totalorder %s19, 0
      %p40 = por %p38, %p39
      %p41 = scmp.ne.s32.totalorder %s27, %s28
      %p42 = scmp.eq.s32.totalorder %s20, 5
      %p43 = por %p41, %p42
      %p45 = scmp.ne.s32.totalorder %s28, %s44
      %p46 = scmp.eq.s32.totalorder %s20, 0
      %p47 = por %p45, %p46
      %s49 = sadd.s32 %s48, 1
      %p52 = scmp.eq.s32.totalorder %s14, 5
      %p53 = scmp.ne.s32.totalorder %s48, %s50
      %p54 = scmp.eq.s32.totalorder %s14, 0
      %p55 = por %p53, %p54
      %p56 = scmp.ne.s32.totalorder %s48, %s50
      %p57 = scmp.eq.s32.totalorder %s19, 5
      %p58 = por %p56, %p57
      %p59 = scmp.ne.s32.totalorder %s50, %s51
      %p60 = scmp.eq.s32.totalorder %s19, 0
      %p61 = por %p59, %p60
      %p62 = scmp.ne.s32.totalorder %s50, %s51
      %p63 = scmp.eq.s32.totalorder %s20, 5
      %p64 = por %p62, %p63
      %p66 = scmp.ne.s32.totalorder %s51, %s65
      %p67 = scmp.eq.s32.totalorder %s20, 0
      %p68 = por %p66, %p67
      %s70 = sadd.s32 %s69, 1
      %p73 = scmp.eq.s32.totalorder %s14, 5
      %p74 = scmp.ne.s32.totalorder %s69, %s71
      %p75 = scmp.eq.s32.totalorder %s14, 0
      %p76 = por %p74, %p75
      %p77 = scmp.ne.s32.totalorder %s69, %s71
      %p78 = scmp.eq.s32.totalorder %s19, 5
      %p79 = por %p77, %p78
      %p80 = scmp.ne.s32.totalorder %s71, %s72
      %p81 = scmp.eq.s32.totalorder %s19, 0
      %p82 = por %p80, %p81
      %p83 = scmp.ne.s32.totalorder %s71, %s72
      %p84 = scmp.eq.s32.totalorder %s20, 5
      %p85 = por %p83, %p84
      %p87 = scmp.ne.s32.totalorder %s72, %s86
      %p88 = scmp.eq.s32.totalorder %s20, 0
      %p89 = por %p87, %p88
      %s90 = ssub.s32 %s14, %s21
      %p91 = scmp.eq.s32.totalorder %s90, 0
      %s93 = sadd.s32 %s92, 1
      %s94 = scalar_select %p91, %s92, %s93
      %p97 = pneg %p91
      %p98 = scmp.eq.s32.totalorder %s14, 5
      %p99 = por %p97, %p98
      %p100 = scmp.ne.s32.totalorder %s92, %s95
      %p101 = scmp.eq.s32.totalorder %s14, 0
      %p102 = por %p100, %p101
      %p103 = scmp.ne.s32.totalorder %s92, %s95
      %p104 = scmp.eq.s32.totalorder %s19, 5
      %p105 = por %p103, %p104
      %p106 = scmp.ne.s32.totalorder %s95, %s96
      %p107 = scmp.eq.s32.totalorder %s19, 0
      %p108 = por %p106, %p107
      %p109 = scmp.ne.s32.totalorder %s95, %s96
      %p110 = scmp.eq.s32.totalorder %s20, 5
      %p111 = por %p109, %p110
      %p113 = scmp.ne.s32.totalorder %s96, %s112
      %p114 = scmp.eq.s32.totalorder %s20, 0
      %p115 = por %p113, %p114
      %s117 = sadd.s32 %s116, 1
      %p120 = scmp.eq.s32.totalorder %s14, 5
      %p121 = scmp.ne.s32.totalorder %s116, %s118
      %p122 = scmp.eq.s32.totalorder %s14, 0
      %p123 = por %p121, %p122
      %p124 = scmp.ne.s32.totalorder %s116, %s118
      %p125 = scmp.eq.s32.totalorder %s19, 5
      %p126 = por %p124, %p125
      %p127 = scmp.ne.s32.totalorder %s118, %s119
      %p128 = scmp.eq.s32.totalorder %s19, 0
      %p129 = por %p127, %p128
      %p130 = scmp.ne.s32.totalorder %s118, %s119
      %p131 = scmp.eq.s32.totalorder %s20, 5
      %p132 = por %p130, %p131
      %p134 = scmp.ne.s32.totalorder %s119, %s133
      %p135 = scmp.eq.s32.totalorder %s20, 0
      %p136 = por %p134, %p135
      %s138 = sadd.s32 %s137, 1
      %p141 = scmp.eq.s32.totalorder %s14, 5
      %p142 = scmp.ne.s32.totalorder %s137, %s139
      %p143 = scmp.eq.s32.totalorder %s14, 0
      %p144 = por %p142, %p143
      %p145 = scmp.ne.s32.totalorder %s137, %s139
      %p146 = scmp.eq.s32.totalorder %s19, 5
      %p147 = por %p145, %p146
      %p148 = scmp.ne.s32.totalorder %s139, %s140
      %p149 = scmp.eq.s32.totalorder %s19, 0
      %p150 = por %p148, %p149
      %p151 = scmp.ne.s32.totalorder %s139, %s140
      %p152 = scmp.eq.s32.totalorder %s20, 5
      %p153 = por %p151, %p152
      %p155 = scmp.ne.s32.totalorder %s140, %s154
      %p156 = scmp.eq.s32.totalorder %s20, 0
      %p157 = por %p155, %p156
      %s159 = sadd.s32 %s158, 1
      %p162 = scmp.eq.s32.totalorder %s14, 5
      %p163 = scmp.ne.s32.totalorder %s158, %s160
      %p164 = scmp.eq.s32.totalorder %s14, 0
      %p165 = por %p163, %p164
      %p166 = scmp.ne.s32.totalorder %s158, %s160
      %p167 = scmp.eq.s32.totalorder %s19, 5
      %p168 = por %p166, %p167
      %p169 = scmp.ne.s32.totalorder %s160, %s161
      %p170 = scmp.eq.s32.totalorder %s19, 0
      %p171 = por %p169, %p170
      %p172 = scmp.ne.s32.totalorder %s160, %s161
      %p173 = scmp.eq.s32.totalorder %s20, 5
      %p174 = por %p172, %p173
      %p176 = scmp.ne.s32.totalorder %s161, %s175
      %p177 = scmp.eq.s32.totalorder %s20, 0
      %p178 = por %p176, %p177
      %s180 = sadd.s32 %s179, 1
      %p183 = scmp.eq.s32.totalorder %s14, 5
      %p184 = scmp.ne.s32.totalorder %s179, %s181
      %p185 = scmp.eq.s32.totalorder %s14, 0
      %p186 = por %p184, %p185
      %p187 = scmp.ne.s32.totalorder %s179, %s181
      %p188 = scmp.eq.s32.totalorder %s19, 5
      %p189 = por %p187, %p188
      %p190 = scmp.ne.s32.totalorder %s181, %s182
      %p191 = scmp.eq.s32.totalorder %s19, 0
      %p192 = por %p190, %p191
      %p193 = scmp.ne.s32.totalorder %s181, %s182
      %p194 = scmp.eq.s32.totalorder %s20, 5
      %p195 = por %p193, %p194
      %p197 = scmp.ne.s32.totalorder %s182, %s196
      %p198 = scmp.eq.s32.totalorder %s20, 0
      %p199 = por %p197, %p198
      %s200 = ssub.s32 %s14, %s21
      %p201 = scmp.eq.s32.totalorder %s200, 0
      %s203 = sadd.s32 %s202, 1
      %s204 = scalar_select %p201, %s202, %s203
      %p207 = pneg %p201
      %p208 = scmp.eq.s32.totalorder %s14, 5
      %p209 = por %p207, %p208
      %p210 = scmp.ne.s32.totalorder %s202, %s205
      %p211 = scmp.eq.s32.totalorder %s14, 0
      %p212 = por %p210, %p211
      %p213 = scmp.ne.s32.totalorder %s202, %s205
      %p214 = scmp.eq.s32.totalorder %s19, 5
      %p215 = por %p213, %p214
      %p216 = scmp.ne.s32.totalorder %s205, %s206
      %p217 = scmp.eq.s32.totalorder %s19, 0
      %p218 = por %p216, %p217
      %p219 = scmp.ne.s32.totalorder %s205, %s206
      %p220 = scmp.eq.s32.totalorder %s20, 5
      %p221 = por %p219, %p220
      %p223 = scmp.ne.s32.totalorder %s206, %s222
      %p224 = scmp.eq.s32.totalorder %s20, 0
      %p225 = por %p223, %p224
      %p226 = scmp.le.s32.totalorder 1, %s14
      %p227 = scmp.lt.s32.totalorder %s14, 7
      %p228 = pnand %p226, %p227
      %p229 = pneg %p228
      // Predicated region
      $region9: #{gct_forward.1} parent=5 // pred_check
        _
      $region10: #{gct_forward.1} parent=5 // pred_check_branch
        %231 = sbr.rel (%p228) target = $region12
      $region11: #{gct_forward.1} parent=5 // pred_region
        %s232 = ssub.s32 %s14, 1
        // Predicated region
        $region13: #{gct_forward.1} parent=11 // pred_check
          %p233 = pneg %p61
        $region14: #{gct_forward.1} parent=11 // pred_check_branch
          %235 = sbr.rel (%p233) target = $region16
        $region15: #{gct_forward.1} parent=11 // pred_region
          _
        $region16: #{gct_forward.1} parent=11 // pred_fallthru
          _
        // Predicated region
        $region17: #{gct_forward.1} parent=11 // pred_check
          %p236 = pneg %p82
        $region18: #{gct_forward.1} parent=11 // pred_check_branch
          %238 = sbr.rel (%p236) target = $region20
        $region19: #{gct_forward.1} parent=11 // pred_region
          _
        $region20: #{gct_forward.1} parent=11 // pred_fallthru
          _
        // Predicated region
        $region21: #{gct_forward.1} parent=11 // pred_check
          %p239 = pneg %p129
        $region22: #{gct_forward.1} parent=11 // pred_check_branch
          %241 = sbr.rel (%p239) target = $region24
        $region23: #{gct_forward.1} parent=11 // pred_region
          _
        $region24: #{gct_forward.1} parent=11 // pred_fallthru
          _
        // Predicated region
        $region25: #{gct_forward.1} parent=11 // pred_check
          %p242 = pneg %p150
        $region26: #{gct_forward.1} parent=11 // pred_check_branch
          %244 = sbr.rel (%p242) target = $region28
        $region27: #{gct_forward.1} parent=11 // pred_region
          _
        $region28: #{gct_forward.1} parent=11 // pred_fallthru
          _
        // Predicated region
        $region29: #{gct_forward.1} parent=11 // pred_check
          %p245 = pneg %p171
        $region30: #{gct_forward.1} parent=11 // pred_check_branch
          %247 = sbr.rel (%p245) target = $region32
        $region31: #{gct_forward.1} parent=11 // pred_region
          _
        $region32: #{gct_forward.1} parent=11 // pred_fallthru
          _
        // Predicated region
        $region33: #{gct_forward.1} parent=11 // pred_check
          %p248 = pneg %p192
        $region34: #{gct_forward.1} parent=11 // pred_check_branch
          %250 = sbr.rel (%p248) target = $region36
        $region35: #{gct_forward.1} parent=11 // pred_region
          _
        $region36: #{gct_forward.1} parent=11 // pred_fallthru
          _
      $region12: #{gct_forward.1} parent=5 // pred_fallthru
        _
      %p251 = scmp.lt.s32.totalorder %s14, 6
      // Predicated region
      $region37: #{gct_forward.1} parent=5 // pred_check
        %p252 = pneg %p251
      $region38: #{gct_forward.1} parent=5 // pred_check_branch
        %254 = sbr.rel (%p252) target = $region40
      $region39: #{gct_forward.1} parent=5 // pred_region
        // Predicated region
        $region41: #{gct_forward.1} parent=39 // pred_check
          %p255 = pneg %p34
        $region42: #{gct_forward.1} parent=39 // pred_check_branch
          %257 = sbr.rel (%p255) target = $region44
        $region43: #{gct_forward.1} parent=39 // pred_region
          %s258 = smul.u32 8, %s14
          %p259 = scmp.lt.s32.totalorder %s258, 47
          %s260 = scalar_select %p259, %s258, 47
          %s261 = smul.addr %s260, 4
          %s262 = scalar_lea.vmem %s0, %s261
          %s263 = smul.u32 8, %s14
        $region44: #{gct_forward.1} parent=39 // pred_fallthru
          _
        // Predicated region
        $region45: #{gct_forward.1} parent=39 // pred_check
          %p264 = pneg %p102
        $region46: #{gct_forward.1} parent=39 // pred_check_branch
          %266 = sbr.rel (%p264) target = $region48
        $region47: #{gct_forward.1} parent=39 // pred_region
          %s267 = sand.u32 %s92, 1
          %s268 = sand.u32 %s92, 1
          %s269 = smul.addr %s268, 224
          %s270 = scalar_lea.vmem [#allocation4], %s269
          %s271 = smul.u32 8, %s14
          %s272 = smul.addr %s271, 4
          %s273 = scalar_lea.vmem %s3, %s272
          // Predicated region
          $region49: #{gct_forward.1} parent=47 // pred_check
            _
          $region50: #{gct_forward.1} parent=47 // pred_check_branch
            %275 = sbr.rel (0) target = $region52
          $region51: #{gct_forward.1} parent=47 // pred_region
            // Predicated region
            $region53: #{gct_forward.1} parent=51 // pred_check
              _
            $region54: #{gct_forward.1} parent=51 // pred_check_branch
              %277 = sbr.rel target = $region56
            $region55: #{gct_forward.1} parent=51 // pred_region
              // Predicated region
              $region68: #{gct_forward.1} parent=55 // pred_check
                _
              $region69: #{gct_forward.1} parent=55 // pred_check_branch
                %402 = sbr.rel (0) target = $region71
              $region70: #{gct_forward.1} parent=55 // pred_region
                loop: start=0, step=1, limit=1
                $region72: #{gct_forward.1} parent=70 // loop_pre_header
                  _
                $region73: #{gct_forward.1} parent=70 // loop_header
                  %s404 = sphi 0, %s408
                  %p405 = scmp.ge.s32.totalorder %s404, 1
                  %s409 = sphi %s273, %s273
                  %s410 = sphi %s270, %s270
                $region74: #{gct_forward.1} parent=70 // loop_header_branch
                  %407 = sbr.rel (%p405) target = $region78
                $region75: #{gct_forward.1} parent=70 // loop_body
                  _
                $region76: #{gct_forward.1} parent=70 // loop_footer
                  %s408 = sadd.s32 1, %s404
                $region77: #{gct_forward.1} parent=70 // loop_footer_branch
                  %403 = sbr.rel target = $region73
                $region78: #{gct_forward.1} parent=70 // loop_exit
                  _
                loop: start=0, step=1, limit=1
                $region79: #{gct_forward.1} parent=70 // loop_pre_header
                  _
                $region80: #{gct_forward.1} parent=70 // loop_header
                  %s413 = sphi 0, %s417
                  %p414 = scmp.ge.s32.totalorder %s413, 1
                  %s418 = sphi %s273, %s273
                  %s419 = sphi %s270, %s270
                $region81: #{gct_forward.1} parent=70 // loop_header_branch
                  %416 = sbr.rel (%p414) target = $region85
                $region82: #{gct_forward.1} parent=70 // loop_body
                  %v420 = vld [vmem:[%s418] sm:$0xf]
                  %421 = vst [vmem:[%s419] sm:$0xf] %v420
                  %v422 = vld [vmem:[%s418 + $0x4] sm:$0xf]
                  %423 = vst [vmem:[%s419 + $0x4] sm:$0xf] %v422
                  %v424 = vld [vmem:[%s418 + $0x8] sm:$0xf]
                  %425 = vst [vmem:[%s419 + $0x8] sm:$0xf] %v424
                  %v426 = vld [vmem:[%s418 + $0xc] sm:$0xf]
                  %427 = vst [vmem:[%s419 + $0xc] sm:$0xf] %v426
                  %v428 = vld [vmem:[%s418 + $0x10] sm:$0xf]
                  %429 = vst [vmem:[%s419 + $0x10] sm:$0xf] %v428
                  %v430 = vld [vmem:[%s418 + $0x14] sm:$0xf]
                  %431 = vst [vmem:[%s419 + $0x14] sm:$0xf] %v430
                  %v432 = vld [vmem:[%s418 + $0x18] sm:$0xf]
                  %433 = vst [vmem:[%s419 + $0x18] sm:$0xf] %v432
                  %v434 = vld [vmem:[%s418 + $0x1c] sm:$0xf]
                  %435 = vst [vmem:[%s419 + $0x1c] sm:$0xf] %v434
                  %v436 = vld [vmem:[%s418 + $0xc0] sm:$0xf]
                  %437 = vst [vmem:[%s419 + $0x20] sm:$0xf] %v436
                  %v438 = vld [vmem:[%s418 + $0xc4] sm:$0xf]
                  %439 = vst [vmem:[%s419 + $0x24] sm:$0xf] %v438
                  %v440 = vld [vmem:[%s418 + $0xc8] sm:$0xf]
                  %441 = vst [vmem:[%s419 + $0x28] sm:$0xf] %v440
                  %v442 = vld [vmem:[%s418 + $0xcc] sm:$0xf]
                  %443 = vst [vmem:[%s419 + $0x2c] sm:$0xf] %v442
                  %v444 = vld [vmem:[%s418 + $0xd0] sm:$0xf]
                  %445 = vst [vmem:[%s419 + $0x30] sm:$0xf] %v444
                  %v446 = vld [vmem:[%s418 + $0xd4] sm:$0xf]
                  %447 = vst [vmem:[%s419 + $0x34] sm:$0xf] %v446
                  %v448 = vld [vmem:[%s418 + $0xd8] sm:$0xf]
                  %449 = vst [vmem:[%s419 + $0x38] sm:$0xf] %v448
                  %v450 = vld [vmem:[%s418 + $0xdc] sm:$0xf]
                  %451 = vst [vmem:[%s419 + $0x3c] sm:$0xf] %v450
                  %v452 = vld [vmem:[%s418 + $0x180] sm:$0xf]
                  %453 = vst [vmem:[%s419 + $0x40] sm:$0xf] %v452
                  %v454 = vld [vmem:[%s418 + $0x184] sm:$0xf]
                  %455 = vst [vmem:[%s419 + $0x44] sm:$0xf] %v454
                  %v456 = vld [vmem:[%s418 + $0x188] sm:$0xf]
                  %457 = vst [vmem:[%s419 + $0x48] sm:$0xf] %v456
                  %v458 = vld [vmem:[%s418 + $0x18c] sm:$0xf]
                  %459 = vst [vmem:[%s419 + $0x4c] sm:$0xf] %v458
                  %v460 = vld [vmem:[%s418 + $0x190] sm:$0xf]
                  %461 = vst [vmem:[%s419 + $0x50] sm:$0xf] %v460
                  %v462 = vld [vmem:[%s418 + $0x194] sm:$0xf]
                  %463 = vst [vmem:[%s419 + $0x54] sm:$0xf] %v462
                  %v464 = vld [vmem:[%s418 + $0x198] sm:$0xf]
                  %465 = vst [vmem:[%s419 + $0x58] sm:$0xf] %v464
                  %v466 = vld [vmem:[%s418 + $0x19c] sm:$0xf]
                  %467 = vst [vmem:[%s419 + $0x5c] sm:$0xf] %v466
                  %v468 = vld [vmem:[%s418 + $0x240] sm:$0xf]
                  %469 = vst [vmem:[%s419 + $0x60] sm:$0xf] %v468
                  %v470 = vld [vmem:[%s418 + $0x244] sm:$0xf]
                  %471 = vst [vmem:[%s419 + $0x64] sm:$0xf] %v470
                  %v472 = vld [vmem:[%s418 + $0x248] sm:$0xf]
                  %473 = vst [vmem:[%s419 + $0x68] sm:$0xf] %v472
                  %v474 = vld [vmem:[%s418 + $0x24c] sm:$0xf]
                  %475 = vst [vmem:[%s419 + $0x6c] sm:$0xf] %v474
                  %v476 = vld [vmem:[%s418 + $0x250] sm:$0xf]
                  %477 = vst [vmem:[%s419 + $0x70] sm:$0xf] %v476
                  %v478 = vld [vmem:[%s418 + $0x254] sm:$0xf]
                  %479 = vst [vmem:[%s419 + $0x74] sm:$0xf] %v478
                  %v480 = vld [vmem:[%s418 + $0x258] sm:$0xf]
                  %481 = vst [vmem:[%s419 + $0x78] sm:$0xf] %v480
                  %v482 = vld [vmem:[%s418 + $0x25c] sm:$0xf]
                  %483 = vst [vmem:[%s419 + $0x7c] sm:$0xf] %v482
                  %v484 = vld [vmem:[%s418 + $0x300] sm:$0xf]
                  %485 = vst [vmem:[%s419 + $0x80] sm:$0xf] %v484
                  %v486 = vld [vmem:[%s418 + $0x304] sm:$0xf]
                  %487 = vst [vmem:[%s419 + $0x84] sm:$0xf] %v486
                  %v488 = vld [vmem:[%s418 + $0x308] sm:$0xf]
                  %489 = vst [vmem:[%s419 + $0x88] sm:$0xf] %v488
                  %v490 = vld [vmem:[%s418 + $0x30c] sm:$0xf]
                  %491 = vst [vmem:[%s419 + $0x8c] sm:$0xf] %v490
                  %v492 = vld [vmem:[%s418 + $0x310] sm:$0xf]
                  %493 = vst [vmem:[%s419 + $0x90] sm:$0xf] %v492
                  %v494 = vld [vmem:[%s418 + $0x314] sm:$0xf]
                  %495 = vst [vmem:[%s419 + $0x94] sm:$0xf] %v494
                  %v496 = vld [vmem:[%s418 + $0x318] sm:$0xf]
                  %497 = vst [vmem:[%s419 + $0x98] sm:$0xf] %v496
                  %v498 = vld [vmem:[%s418 + $0x31c] sm:$0xf]
                  %499 = vst [vmem:[%s419 + $0x9c] sm:$0xf] %v498
                  %v500 = vld [vmem:[%s418 + $0x3c0] sm:$0xf]
                  %501 = vst [vmem:[%s419 + $0xa0] sm:$0xf] %v500
                  %v502 = vld [vmem:[%s418 + $0x3c4] sm:$0xf]
                  %503 = vst [vmem:[%s419 + $0xa4] sm:$0xf] %v502
                  %v504 = vld [vmem:[%s418 + $0x3c8] sm:$0xf]
                  %505 = vst [vmem:[%s419 + $0xa8] sm:$0xf] %v504
                  %v506 = vld [vmem:[%s418 + $0x3cc] sm:$0xf]
                  %507 = vst [vmem:[%s419 + $0xac] sm:$0xf] %v506
                  %v508 = vld [vmem:[%s418 + $0x3d0] sm:$0xf]
                  %509 = vst [vmem:[%s419 + $0xb0] sm:$0xf] %v508
                  %v510 = vld [vmem:[%s418 + $0x3d4] sm:$0xf]
                  %511 = vst [vmem:[%s419 + $0xb4] sm:$0xf] %v510
                  %v512 = vld [vmem:[%s418 + $0x3d8] sm:$0xf]
                  %513 = vst [vmem:[%s419 + $0xb8] sm:$0xf] %v512
                  %v514 = vld [vmem:[%s418 + $0x3dc] sm:$0xf]
                  %515 = vst [vmem:[%s419 + $0xbc] sm:$0xf] %v514
                  %v516 = vld [vmem:[%s418 + $0x480] sm:$0xf]
                  %517 = vst [vmem:[%s419 + $0xc0] sm:$0xf] %v516
                  %v518 = vld [vmem:[%s418 + $0x484] sm:$0xf]
                  %519 = vst [vmem:[%s419 + $0xc4] sm:$0xf] %v518
                  %v520 = vld [vmem:[%s418 + $0x488] sm:$0xf]
                  %521 = vst [vmem:[%s419 + $0xc8] sm:$0xf] %v520
                  %v522 = vld [vmem:[%s418 + $0x48c] sm:$0xf]
                  %523 = vst [vmem:[%s419 + $0xcc] sm:$0xf] %v522
                  %v524 = vld [vmem:[%s418 + $0x490] sm:$0xf]
                  %525 = vst [vmem:[%s419 + $0xd0] sm:$0xf] %v524
                  %v526 = vld [vmem:[%s418 + $0x494] sm:$0xf]
                  %527 = vst [vmem:[%s419 + $0xd4] sm:$0xf] %v526
                  %v528 = vld [vmem:[%s418 + $0x498] sm:$0xf]
                  %529 = vst [vmem:[%s419 + $0xd8] sm:$0xf] %v528
                  %v530 = vld [vmem:[%s418 + $0x49c] sm:$0xf]
                  %531 = vst [vmem:[%s419 + $0xdc] sm:$0xf] %v530
                $region83: #{gct_forward.1} parent=70 // loop_footer
                  %s417 = sadd.s32 1, %s413
                $region84: #{gct_forward.1} parent=70 // loop_footer_branch
                  %412 = sbr.rel target = $region80
                $region85: #{gct_forward.1} parent=70 // loop_exit
                  _
              $region71: #{gct_forward.1} parent=55 // pred_fallthru
                _
            $region56: #{gct_forward.1} parent=51 // pred_fallthru
              _
            // Predicated region
            $region57: #{gct_forward.1} parent=51 // pred_check
              _
            $region58: #{gct_forward.1} parent=51 // pred_check_branch
              %279 = sbr.rel (0) target = $region60
            $region59: #{gct_forward.1} parent=51 // pred_region
              loop: start=0, step=1, limit=1
              $region61: #{gct_forward.1} parent=59 // loop_pre_header
                _
              $region62: #{gct_forward.1} parent=59 // loop_header
                %s282 = sphi 0, %s286
                %p283 = scmp.ge.s32.totalorder %s282, 1
                %s287 = sphi %s273, %s273
                %s288 = sphi %s270, %s270
              $region63: #{gct_forward.1} parent=59 // loop_header_branch
                %285 = sbr.rel (%p283) target = $region67
              $region64: #{gct_forward.1} parent=59 // loop_body
                %v289 = vld [vmem:[%s287] sm:$0xf]
                %290 = vst [vmem:[%s288] sm:$0xf] %v289
                %v291 = vld [vmem:[%s287 + $0x4] sm:$0xf]
                %292 = vst [vmem:[%s288 + $0x4] sm:$0xf] %v291
                %v293 = vld [vmem:[%s287 + $0x8] sm:$0xf]
                %294 = vst [vmem:[%s288 + $0x8] sm:$0xf] %v293
                %v295 = vld [vmem:[%s287 + $0xc] sm:$0xf]
                %296 = vst [vmem:[%s288 + $0xc] sm:$0xf] %v295
                %v297 = vld [vmem:[%s287 + $0x10] sm:$0xf]
                %298 = vst [vmem:[%s288 + $0x10] sm:$0xf] %v297
                %v299 = vld [vmem:[%s287 + $0x14] sm:$0xf]
                %300 = vst [vmem:[%s288 + $0x14] sm:$0xf] %v299
                %v301 = vld [vmem:[%s287 + $0x18] sm:$0xf]
                %302 = vst [vmem:[%s288 + $0x18] sm:$0xf] %v301
                %v303 = vld [vmem:[%s287 + $0x1c] sm:$0xf]
                %304 = vst [vmem:[%s288 + $0x1c] sm:$0xf] %v303
                %v305 = vld [vmem:[%s287 + $0xc0] sm:$0xf]
                %306 = vst [vmem:[%s288 + $0x20] sm:$0xf] %v305
                %v307 = vld [vmem:[%s287 + $0xc4] sm:$0xf]
                %308 = vst [vmem:[%s288 + $0x24] sm:$0xf] %v307
                %v309 = vld [vmem:[%s287 + $0xc8] sm:$0xf]
                %310 = vst [vmem:[%s288 + $0x28] sm:$0xf] %v309
                %v311 = vld [vmem:[%s287 + $0xcc] sm:$0xf]
                %312 = vst [vmem:[%s288 + $0x2c] sm:$0xf] %v311
                %v313 = vld [vmem:[%s287 + $0xd0] sm:$0xf]
                %314 = vst [vmem:[%s288 + $0x30] sm:$0xf] %v313
                %v315 = vld [vmem:[%s287 + $0xd4] sm:$0xf]
                %316 = vst [vmem:[%s288 + $0x34] sm:$0xf] %v315
                %v317 = vld [vmem:[%s287 + $0xd8] sm:$0xf]
                %318 = vst [vmem:[%s288 + $0x38] sm:$0xf] %v317
                %v319 = vld [vmem:[%s287 + $0xdc] sm:$0xf]
                %320 = vst [vmem:[%s288 + $0x3c] sm:$0xf] %v319
                %v321 = vld [vmem:[%s287 + $0x180] sm:$0xf]
                %322 = vst [vmem:[%s288 + $0x40] sm:$0xf] %v321
                %v323 = vld [vmem:[%s287 + $0x184] sm:$0xf]
                %324 = vst [vmem:[%s288 + $0x44] sm:$0xf] %v323
                %v325 = vld [vmem:[%s287 + $0x188] sm:$0xf]
                %326 = vst [vmem:[%s288 + $0x48] sm:$0xf] %v325
                %v327 = vld [vmem:[%s287 + $0x18c] sm:$0xf]
                %328 = vst [vmem:[%s288 + $0x4c] sm:$0xf] %v327
                %v329 = vld [vmem:[%s287 + $0x190] sm:$0xf]
                %330 = vst [vmem:[%s288 + $0x50] sm:$0xf] %v329
                %v331 = vld [vmem:[%s287 + $0x194] sm:$0xf]
                %332 = vst [vmem:[%s288 + $0x54] sm:$0xf] %v331
                %v333 = vld [vmem:[%s287 + $0x198] sm:$0xf]
                %334 = vst [vmem:[%s288 + $0x58] sm:$0xf] %v333
                %v335 = vld [vmem:[%s287 + $0x19c] sm:$0xf]
                %336 = vst [vmem:[%s288 + $0x5c] sm:$0xf] %v335
                %v337 = vld [vmem:[%s287 + $0x240] sm:$0xf]
                %338 = vst [vmem:[%s288 + $0x60] sm:$0xf] %v337
                %v339 = vld [vmem:[%s287 + $0x244] sm:$0xf]
                %340 = vst [vmem:[%s288 + $0x64] sm:$0xf] %v339
                %v341 = vld [vmem:[%s287 + $0x248] sm:$0xf]
                %342 = vst [vmem:[%s288 + $0x68] sm:$0xf] %v341
                %v343 = vld [vmem:[%s287 + $0x24c] sm:$0xf]
                %344 = vst [vmem:[%s288 + $0x6c] sm:$0xf] %v343
                %v345 = vld [vmem:[%s287 + $0x250] sm:$0xf]
                %346 = vst [vmem:[%s288 + $0x70] sm:$0xf] %v345
                %v347 = vld [vmem:[%s287 + $0x254] sm:$0xf]
                %348 = vst [vmem:[%s288 + $0x74] sm:$0xf] %v347
                %v349 = vld [vmem:[%s287 + $0x258] sm:$0xf]
                %350 = vst [vmem:[%s288 + $0x78] sm:$0xf] %v349
                %v351 = vld [vmem:[%s287 + $0x25c] sm:$0xf]
                %352 = vst [vmem:[%s288 + $0x7c] sm:$0xf] %v351
                %v353 = vld [vmem:[%s287 + $0x300] sm:$0xf]
                %354 = vst [vmem:[%s288 + $0x80] sm:$0xf] %v353
                %v355 = vld [vmem:[%s287 + $0x304] sm:$0xf]
                %356 = vst [vmem:[%s288 + $0x84] sm:$0xf] %v355
                %v357 = vld [vmem:[%s287 + $0x308] sm:$0xf]
                %358 = vst [vmem:[%s288 + $0x88] sm:$0xf] %v357
                %v359 = vld [vmem:[%s287 + $0x30c] sm:$0xf]
                %360 = vst [vmem:[%s288 + $0x8c] sm:$0xf] %v359
                %v361 = vld [vmem:[%s287 + $0x310] sm:$0xf]
                %362 = vst [vmem:[%s288 + $0x90] sm:$0xf] %v361
                %v363 = vld [vmem:[%s287 + $0x314] sm:$0xf]
                %364 = vst [vmem:[%s288 + $0x94] sm:$0xf] %v363
                %v365 = vld [vmem:[%s287 + $0x318] sm:$0xf]
                %366 = vst [vmem:[%s288 + $0x98] sm:$0xf] %v365
                %v367 = vld [vmem:[%s287 + $0x31c] sm:$0xf]
                %368 = vst [vmem:[%s288 + $0x9c] sm:$0xf] %v367
                %v369 = vld [vmem:[%s287 + $0x3c0] sm:$0xf]
                %370 = vst [vmem:[%s288 + $0xa0] sm:$0xf] %v369
                %v371 = vld [vmem:[%s287 + $0x3c4] sm:$0xf]
                %372 = vst [vmem:[%s288 + $0xa4] sm:$0xf] %v371
                %v373 = vld [vmem:[%s287 + $0x3c8] sm:$0xf]
                %374 = vst [vmem:[%s288 + $0xa8] sm:$0xf] %v373
                %v375 = vld [vmem:[%s287 + $0x3cc] sm:$0xf]
                %376 = vst [vmem:[%s288 + $0xac] sm:$0xf] %v375
                %v377 = vld [vmem:[%s287 + $0x3d0] sm:$0xf]
                %378 = vst [vmem:[%s288 + $0xb0] sm:$0xf] %v377
                %v379 = vld [vmem:[%s287 + $0x3d4] sm:$0xf]
                %380 = vst [vmem:[%s288 + $0xb4] sm:$0xf] %v379
                %v381 = vld [vmem:[%s287 + $0x3d8] sm:$0xf]
                %382 = vst [vmem:[%s288 + $0xb8] sm:$0xf] %v381
                %v383 = vld [vmem:[%s287 + $0x3dc] sm:$0xf]
                %384 = vst [vmem:[%s288 + $0xbc] sm:$0xf] %v383
                %v385 = vld [vmem:[%s287 + $0x480] sm:$0xf]
                %386 = vst [vmem:[%s288 + $0xc0] sm:$0xf] %v385
                %v387 = vld [vmem:[%s287 + $0x484] sm:$0xf]
                %388 = vst [vmem:[%s288 + $0xc4] sm:$0xf] %v387
                %v389 = vld [vmem:[%s287 + $0x488] sm:$0xf]
                %390 = vst [vmem:[%s288 + $0xc8] sm:$0xf] %v389
                %v391 = vld [vmem:[%s287 + $0x48c] sm:$0xf]
                %392 = vst [vmem:[%s288 + $0xcc] sm:$0xf] %v391
                %v393 = vld [vmem:[%s287 + $0x490] sm:$0xf]
                %394 = vst [vmem:[%s288 + $0xd0] sm:$0xf] %v393
                %v395 = vld [vmem:[%s287 + $0x494] sm:$0xf]
                %396 = vst [vmem:[%s288 + $0xd4] sm:$0xf] %v395
                %v397 = vld [vmem:[%s287 + $0x498] sm:$0xf]
                %398 = vst [vmem:[%s288 + $0xd8] sm:$0xf] %v397
                %v399 = vld [vmem:[%s287 + $0x49c] sm:$0xf]
                %400 = vst [vmem:[%s288 + $0xdc] sm:$0xf] %v399
              $region65: #{gct_forward.1} parent=59 // loop_footer
                %s286 = sadd.s32 1, %s282
              $region66: #{gct_forward.1} parent=59 // loop_footer_branch
                %281 = sbr.rel target = $region62
              $region67: #{gct_forward.1} parent=59 // loop_exit
                _
            $region60: #{gct_forward.1} parent=51 // pred_fallthru
              _
          $region52: #{gct_forward.1} parent=47 // pred_fallthru
            _
          %532 = vnop
        $region48: #{gct_forward.1} parent=39 // pred_fallthru
          _
      $region40: #{gct_forward.1} parent=5 // pred_fallthru
        _
      %p533 = scmp.le.s32.totalorder 1, %s14
      %p534 = scmp.lt.s32.totalorder %s14, 7
      %p535 = pnand %p533, %p534
      %p536 = pneg %p535
      // Predicated region
      $region86: #{gct_forward.1} parent=5 // pred_check
        _
      $region87: #{gct_forward.1} parent=5 // pred_check_branch
        %538 = sbr.rel (%p535) target = $region89
      $region88: #{gct_forward.1} parent=5 // pred_region
        %s539 = ssub.s32 %s14, 1
        %s540 = sand.u32 %s95, 1
        %s541 = sand.u32 %s95, 1
        %s542 = smul.addr %s541, 224
        %s543 = scalar_lea.vmem [#allocation4], %s542
        // Predicated region
        $region90: #{gct_forward.1} parent=88 // pred_check
          %p544 = pneg %p108
        $region91: #{gct_forward.1} parent=88 // pred_check_branch
          %546 = sbr.rel (%p544) target = $region93
        $region92: #{gct_forward.1} parent=88 // pred_region
          _
        $region93: #{gct_forward.1} parent=88 // pred_fallthru
          _
        %s547 = smul.u32 8, %s19
        %p548 = scmp.lt.s32.totalorder %s547, 47
        %s549 = scalar_select %p548, %s547, 47
        %s550 = smul.addr %s549, 4
        %s551 = scalar_lea.vmem %s0, %s550
        %p552 = pneg %p40
        %p553 = pneg %p37
        %p554 = pneg %p61
        %p555 = pneg %p58
        %p556 = pneg %p82
        %p557 = pneg %p79
        %s558 = sand.u32 %s95, 1
        %s559 = sand.u32 %s95, 1
        %s560 = smul.addr %s559, 224
        %s561 = scalar_lea.vmem [#allocation4], %s560
        %p562 = pneg %p108
        %p563 = pneg %p105
        %p564 = pneg %p129
        %p565 = pneg %p126
        %p566 = pneg %p150
        %p567 = pneg %p147
        %p568 = pneg %p171
        %p569 = pneg %p168
        %p570 = pneg %p192
        %p571 = pneg %p189
        %p572 = pneg %p218
        %p573 = pneg %p215
        %p574 = scmp.lt.s32.totalorder %s19, 5
        %s575 = scalar_select %p574, %s19, 5
        %s576 = smul.addr %s575, 4
        %s577 = smul.addr %s576, 8
        %s578 = scalar_lea.vmem %s8, %s577
        %s579 = smul.u32 8, %s19
        %p580 = scmp.lt.s32.totalorder %s579, 47
        %s581 = scalar_select %p580, %s579, 47
        %s582 = smul.addr %s581, 4
        %s583 = scalar_lea.vmem %s0, %s582
        %s584 = smul.u32 8, %s19
        %s585 = smul.u32 8, %s19
        %p586 = scmp.lt.s32.totalorder %s19, 5
        %s587 = scalar_select %p586, %s19, 5
        %s588 = smul.addr %s587, 4
        %s589 = smul.addr %s588, 8
        %s590 = scalar_lea.vmem %s8, %s589
        %v592 = vld [vmem:[%s583] sm:$0xf]
        %v593 = vld [vmem:[%s583 + $0x4] sm:$0xf]
        %v594 = vld [vmem:[%s583 + $0x8] sm:$0xf]
        %v595 = vld [vmem:[%s583 + $0xc] sm:$0xf]
        %v596 = vld [vmem:[%s583 + $0x10] sm:$0xf]
        %v597 = vld [vmem:[%s583 + $0x14] sm:$0xf]
        %v598 = vld [vmem:[%s583 + $0x18] sm:$0xf]
        %v599 = vld [vmem:[%s583 + $0x1c] sm:$0xf]
        %v600 = vld [vmem:[%s1] sm:$0xf]
        %v601 = vld [vmem:[%s1 + $0x4] sm:$0xf]
        %v602 = vld [vmem:[%s1 + $0x8] sm:$0xf]
        %v603 = vld [vmem:[%s1 + $0xc] sm:$0xf]
        %v604 = vld [vmem:[%s2] sm:$0x1]
        %v606 = vlaneseq
        %v607 = vshrl.u32 %v606, 7
        %v608 = vsub.s32 0, %v607
        %v609 = vrot.slane %v604, %v608
        %v619 = vunpack.c.l.b16 %v592
        %v620 = vunpack.c.l.b16 %v593
        %v621 = vunpack.c.l.b16 %v594
        %v622 = vunpack.c.l.b16 %v595
        %v623 = vunpack.c.l.b16 %v596
        %v624 = vunpack.c.l.b16 %v597
        %v625 = vunpack.c.l.b16 %v598
        %v626 = vunpack.c.l.b16 %v599
        %v627 = vpack.c.b16 %v620, %v619
        %v628 = vpack.c.b16 %v622, %v621
        %v629 = vpack.c.b16 %v624, %v623
        %v630 = vpack.c.b16 %v626, %v625
        %v635 = vunpack.c.l.b16 %v600
        %v636 = vunpack.c.l.b16 %v601
        %v637 = vunpack.c.l.b16 %v602
        %v638 = vunpack.c.l.b16 %v603
        %v639 = vpack.c.b16 %v636, %v635
        %v640 = vpack.c.b16 %v638, %v637
        %vm643 = vcmask 261120
        %v645 = vsel %vm643, %v627, 0
        %v648 = vsel %vm643, %v628, 0
        %v651 = vsel %vm643, %v629, 0
        %v654 = vsel %vm643, %v630, 0
        %656 = vmatprep.subr.bf16.mxu0 0
        %657 = vmatpush1.bf16.msra.mxu0 %v639
        %658 = vmatprep.subr.bf16.mxu0 0
        %659 = vmatpush1.bf16.msra.mxu0 %v640
        %660 = vmatprep.subr.bf16.mxu0 0
        %661 = vmatpush1.bf16.msra.mxu0 0
        %662 = vmatprep.subr.bf16.mxu0 0
        %663 = vmatpush1.bf16.msra.mxu0 0
        %664 = vmatprep.subr.bf16.mxu0 0
        %665 = vmatpush1.bf16.msra.mxu0 0
        %666 = vmatprep.subr.bf16.mxu0 0
        %667 = vmatpush1.bf16.msra.mxu0 0
        %668 = vmatprep.subr.bf16.mxu0 0
        %669 = vmatpush1.bf16.msra.mxu0 0
        %670 = vmatprep.subr.bf16.mxu0 0
        %671 = vmatpush1.bf16.msra.mxu0 0
        %672 = vmatprep.subr.bf16.mxu0 0
        %673 = vmatpush1.bf16.msra.mxu0 0
        %674 = vmatprep.subr.bf16.mxu0 0
        %675 = vmatpush1.bf16.msra.mxu0 0
        %676 = vmatprep.subr.bf16.mxu0 0
        %677 = vmatpush1.bf16.msra.mxu0 0
        %678 = vmatprep.subr.bf16.mxu0 0
        %679 = vmatpush1.bf16.msra.mxu0 0
        %680 = vmatprep.subr.bf16.mxu0 0
        %681 = vmatpush1.bf16.msra.mxu0 0
        %682 = vmatprep.subr.bf16.mxu0 0
        %683 = vmatpush1.bf16.msra.mxu0 0
        %684 = vmatprep.subr.bf16.mxu0 0
        %685 = vmatpush1.bf16.msra.mxu0 0
        %686 = vmatprep.subr.bf16.mxu0 0
        %687 = vmatpush1.bf16.msra.mxu0 0
        %688 = vmatprep.mubr.bf16.mxu0 0
        %689 = vmatmul.mubr.bf16.gmra.mrb[0].mxu0 %v645
        %v690 = vpop.f32.mrb[0].mxu0
        %v691 = vadd.f32 %v609, %v690
        %v692 = vpop.f32.mrb[0].mxu0
        %v693 = vpop.f32.mrb[0].mxu0
        %v694 = vadd.f32 %v609, %v693
        %v695 = vpop.f32.mrb[0].mxu0
        %696 = vmatprep.mubr.bf16.mxu0 0
        %697 = vmatmul.mubr.bf16.gmra.mrb[0].mxu0 %v648
        %v698 = vpop.f32.mrb[0].mxu0
        %v699 = vadd.f32 %v609, %v698
        %v700 = vpop.f32.mrb[0].mxu0
        %v701 = vpop.f32.mrb[0].mxu0
        %v702 = vadd.f32 %v609, %v701
        %v703 = vpop.f32.mrb[0].mxu0
        %704 = vmatprep.mubr.bf16.mxu0 0
        %705 = vmatmul.mubr.bf16.gmra.mrb[0].mxu0 %v651
        %v706 = vpop.f32.mrb[0].mxu0
        %v707 = vadd.f32 %v609, %v706
        %v708 = vpop.f32.mrb[0].mxu0
        %v709 = vpop.f32.mrb[0].mxu0
        %v710 = vadd.f32 %v609, %v709
        %v711 = vpop.f32.mrb[0].mxu0
        %712 = vmatprep.mubr.bf16.mxu0 0
        %713 = vmatmul.mubr.bf16.gmra.mrb[0].mxu0 %v654
        %v714 = vpop.f32.mrb[0].mxu0
        %v715 = vadd.f32 %v609, %v714
        %v716 = vpop.f32.mrb[0].mxu0
        %v717 = vpop.f32.mrb[0].mxu0
        %v718 = vadd.f32 %v609, %v717
        %v719 = vpop.f32.mrb[0].mxu0
        %720 = vdwg.mxu0
        %v721 = vld [vmem:[%s6] sm:$0xf]
        %v722 = vld [vmem:[%s6 + $0x4] sm:$0xf]
        %v723 = vld [vmem:[%s6 + $0x8] sm:$0xf]
        %v724 = vld [vmem:[%s6 + $0xc] sm:$0xf]
        %v725 = vld [vmem:[%s6 + $0x10] sm:$0xf]
        %v726 = vld [vmem:[%s6 + $0x14] sm:$0xf]
        %v727 = vld [vmem:[%s6 + $0x18] sm:$0xf]
        %v728 = vld [vmem:[%s6 + $0x1c] sm:$0xf]
        %v729 = vld [vmem:[%s6 + $0x20] sm:$0xf]
        %v730 = vld [vmem:[%s6 + $0x24] sm:$0xf]
        %v731 = vld [vmem:[%s6 + $0x28] sm:$0xf]
        %v732 = vld [vmem:[%s6 + $0x2c] sm:$0xf]
        %v733 = vld [vmem:[%s6 + $0x30] sm:$0xf]
        %v734 = vld [vmem:[%s6 + $0x34] sm:$0xf]
        %v735 = vld [vmem:[%s6 + $0x38] sm:$0xf]
        %v736 = vld [vmem:[%s6 + $0x3c] sm:$0xf]
        %v737 = vld [vmem:[%s543] sm:$0xf]
        %v738 = vld [vmem:[%s543 + $0x4] sm:$0xf]
        %v739 = vld [vmem:[%s543 + $0x8] sm:$0xf]
        %v740 = vld [vmem:[%s543 + $0xc] sm:$0xf]
        %v741 = vld [vmem:[%s543 + $0x10] sm:$0xf]
        %v742 = vld [vmem:[%s543 + $0x14] sm:$0xf]
        %v743 = vld [vmem:[%s543 + $0x18] sm:$0xf]
        %v744 = vld [vmem:[%s543 + $0x1c] sm:$0xf]
        %v745 = vld [vmem:[%s4] sm:$0xff]
        %v746 = vld [vmem:[%s4 + $0x8] sm:$0xff]
        %v747 = vld [vmem:[%s4 + $0x10] sm:$0xff]
        %v748 = vld [vmem:[%s4 + $0x18] sm:$0xff]
        %v749 = vld [vmem:[%s4 + $0x20] sm:$0xff]
        %v750 = vld [vmem:[%s4 + $0x28] sm:$0xff]
        %v751 = vld [vmem:[%s4 + $0x30] sm:$0xff]
        %v752 = vld [vmem:[%s4 + $0x38] sm:$0xff]
        %v753 = vld [vmem:[%s4 + $0x40] sm:$0xff]
        %v754 = vld [vmem:[%s4 + $0x48] sm:$0xff]
        %v755 = vld [vmem:[%s4 + $0x50] sm:$0xff]
        %v756 = vld [vmem:[%s4 + $0x58] sm:$0xff]
        %v757 = vld [vmem:[%s4 + $0x60] sm:$0xff]
        %v758 = vld [vmem:[%s4 + $0x68] sm:$0xff]
        %v759 = vld [vmem:[%s4 + $0x70] sm:$0xff]
        %v760 = vld [vmem:[%s4 + $0x78] sm:$0xff]
        %v761 = vld [vmem:[%s5] sm:$0x3]
        %v763 = vlaneseq
        %v764 = vshrl.u32 %v763, 7
        %v765 = vsub.s32 0, %v764
        %v766 = vrot.slane %v761, %v765
        %v767 = vlaneseq
        %v768 = vshrl.u32 %v767, 7
        %v769 = vsub.s32 1, %v768
        %v770 = vrot.slane %v761, %v769
        %v781 = vunpack.c.l.b16 %v737
        %v782 = vunpack.c.l.b16 %v738
        %v783 = vunpack.c.l.b16 %v739
        %v784 = vunpack.c.l.b16 %v740
        %v785 = vunpack.c.l.b16 %v741
        %v786 = vunpack.c.l.b16 %v742
        %v787 = vunpack.c.l.b16 %v743
        %v788 = vunpack.c.l.b16 %v744
        %v789 = vpack.c.b16 %v782, %v781
        %v790 = vpack.c.b16 %v784, %v783
        %v791 = vpack.c.b16 %v786, %v785
        %v792 = vpack.c.b16 %v788, %v787
        %v813 = vunpack.c.l.b16 %v745
        %v814 = vunpack.c.h.b16 %v745
        %v815 = vunpack.c.l.b16 %v746
        %v816 = vunpack.c.h.b16 %v746
        %v817 = vunpack.c.l.b16 %v747
        %v818 = vunpack.c.h.b16 %v747
        %v819 = vunpack.c.l.b16 %v748
        %v820 = vunpack.c.h.b16 %v748
        %v821 = vunpack.c.l.b16 %v749
        %v822 = vunpack.c.h.b16 %v749
        %v823 = vunpack.c.l.b16 %v750
        %v824 = vunpack.c.h.b16 %v750
        %v825 = vunpack.c.l.b16 %v751
        %v826 = vunpack.c.h.b16 %v751
        %v827 = vunpack.c.l.b16 %v752
        %v828 = vunpack.c.h.b16 %v752
        %v829 = vunpack.c.l.b16 %v753
        %v830 = vunpack.c.h.b16 %v753
        %v831 = vunpack.c.l.b16 %v754
        %v832 = vunpack.c.h.b16 %v754
        %v833 = vunpack.c.l.b16 %v755
        %v834 = vunpack.c.h.b16 %v755
        %v835 = vunpack.c.l.b16 %v756
        %v836 = vunpack.c.h.b16 %v756
        %v837 = vunpack.c.l.b16 %v757
        %v838 = vunpack.c.h.b16 %v757
        %v839 = vunpack.c.l.b16 %v758
        %v840 = vunpack.c.h.b16 %v758
        %v841 = vunpack.c.l.b16 %v759
        %v842 = vunpack.c.h.b16 %v759
        %v843 = vunpack.c.l.b16 %v760
        %v844 = vunpack.c.h.b16 %v760
        %v845 = vpack.c.b16 %v815, %v813
        %v846 = vpack.c.b16 %v816, %v814
        %v847 = vpack.c.b16 %v819, %v817
        %v848 = vpack.c.b16 %v820, %v818
        %v849 = vpack.c.b16 %v823, %v821
        %v850 = vpack.c.b16 %v824, %v822
        %v851 = vpack.c.b16 %v827, %v825
        %v852 = vpack.c.b16 %v828, %v826
        %v853 = vpack.c.b16 %v831, %v829
        %v854 = vpack.c.b16 %v832, %v830
        %v855 = vpack.c.b16 %v835, %v833
        %v856 = vpack.c.b16 %v836, %v834
        %v857 = vpack.c.b16 %v839, %v837
        %v858 = vpack.c.b16 %v840, %v838
        %v859 = vpack.c.b16 %v843, %v841
        %v860 = vpack.c.b16 %v844, %v842
        %877 = vmatprep.subr.bf16.mxu0 %v846
        %878 = vmatpush1.bf16.msra.mxu0 %v845
        %879 = vmatprep.subr.bf16.mxu0 %v848
        %880 = vmatpush1.bf16.msra.mxu0 %v847
        %881 = vmatprep.subr.bf16.mxu0 %v850
        %882 = vmatpush1.bf16.msra.mxu0 %v849
        %883 = vmatprep.subr.bf16.mxu0 %v852
        %884 = vmatpush1.bf16.msra.mxu0 %v851
        %885 = vmatprep.subr.bf16.mxu0 %v854
        %886 = vmatpush1.bf16.msra.mxu0 %v853
        %887 = vmatprep.subr.bf16.mxu0 %v856
        %888 = vmatpush1.bf16.msra.mxu0 %v855
        %889 = vmatprep.subr.bf16.mxu0 %v858
        %890 = vmatpush1.bf16.msra.mxu0 %v857
        %891 = vmatprep.subr.bf16.mxu0 %v860
        %892 = vmatpush1.bf16.msra.mxu0 %v859
        %893 = vmatprep.subr.bf16.mxu0 0
        %894 = vmatpush1.bf16.msra.mxu0 0
        %895 = vmatprep.subr.bf16.mxu0 0
        %896 = vmatpush1.bf16.msra.mxu0 0
        %897 = vmatprep.subr.bf16.mxu0 0
        %898 = vmatpush1.bf16.msra.mxu0 0
        %899 = vmatprep.subr.bf16.mxu0 0
        %900 = vmatpush1.bf16.msra.mxu0 0
        %901 = vmatprep.subr.bf16.mxu0 0
        %902 = vmatpush1.bf16.msra.mxu0 0
        %903 = vmatprep.subr.bf16.mxu0 0
        %904 = vmatpush1.bf16.msra.mxu0 0
        %905 = vmatprep.subr.bf16.mxu0 0
        %906 = vmatpush1.bf16.msra.mxu0 0
        %907 = vmatprep.subr.bf16.mxu0 0
        %908 = vmatpush1.bf16.msra.mxu0 0
        %909 = vmatprep.mubr.bf16.mxu0 0
        %910 = vmatmul.mubr.bf16.gmra.mrb[0].mxu0 %v789
        %v911 = vpop.f32.mrb[0].mxu0
        %v912 = vadd.f32 %v766, %v911
        %v913 = vpop.f32.mrb[0].mxu0
        %v914 = vadd.f32 %v770, %v913
        %v915 = vpop.f32.mrb[0].mxu0
        %v916 = vadd.f32 %v766, %v915
        %v917 = vpop.f32.mrb[0].mxu0
        %v918 = vadd.f32 %v770, %v917
        %919 = vmatprep.mubr.bf16.mxu0 0
        %920 = vmatmul.mubr.bf16.gmra.mrb[0].mxu0 %v790
        %v921 = vpop.f32.mrb[0].mxu0
        %v922 = vadd.f32 %v766, %v921
        %v923 = vpop.f32.mrb[0].mxu0
        %v924 = vadd.f32 %v770, %v923
        %v925 = vpop.f32.mrb[0].mxu0
        %v926 = vadd.f32 %v766, %v925
        %v927 = vpop.f32.mrb[0].mxu0
        %v928 = vadd.f32 %v770, %v927
        %929 = vmatprep.mubr.bf16.mxu0 0
        %930 = vmatmul.mubr.bf16.gmra.mrb[0].mxu0 %v791
        %v931 = vpop.f32.mrb[0].mxu0
        %v932 = vadd.f32 %v766, %v931
        %v933 = vpop.f32.mrb[0].mxu0
        %v934 = vadd.f32 %v770, %v933
        %v935 = vpop.f32.mrb[0].mxu0
        %v936 = vadd.f32 %v766, %v935
        %v937 = vpop.f32.mrb[0].mxu0
        %v938 = vadd.f32 %v770, %v937
        %939 = vmatprep.mubr.bf16.mxu0 0
        %940 = vmatmul.mubr.bf16.gmra.mrb[0].mxu0 %v792
        %v941 = vpop.f32.mrb[0].mxu0
        %v942 = vadd.f32 %v766, %v941
        %v943 = vpop.f32.mrb[0].mxu0
        %v944 = vadd.f32 %v770, %v943
        %v945 = vpop.f32.mrb[0].mxu0
        %v946 = vadd.f32 %v766, %v945
        %v947 = vpop.f32.mrb[0].mxu0
        %v948 = vadd.f32 %v770, %v947
        %949 = vdwg.mxu0
        %v950 = vpack.c.bf16 %v918, %v914
        %v951 = vpack.c.bf16 %v928, %v924
        %v952 = vpack.c.bf16 %v938, %v934
        %v953 = vpack.c.bf16 %v948, %v944
        %954 = vst [vmem:[#allocation2] sm:$0xff] %v950
        %955 = vst [vmem:[#allocation2 + $0x8] sm:$0xff] %v951
        %956 = vst [vmem:[#allocation2 + $0x10] sm:$0xff] %v952
        %957 = vst [vmem:[#allocation2 + $0x18] sm:$0xff] %v953
        %v958 = vmul.f32 %v912, %v691
        %v959 = vmul.f32 %v916, %v694
        %v960 = vmul.f32 %v922, %v699
        %v961 = vmul.f32 %v926, %v702
        %v962 = vmul.f32 %v932, %v707
        %v963 = vmul.f32 %v936, %v710
        %v964 = vmul.f32 %v942, %v715
        %v965 = vmul.f32 %v946, %v718
        %v966 = vpack.c.bf16 %v959, %v958
        %v967 = vpack.c.bf16 %v961, %v960
        %v968 = vpack.c.bf16 %v963, %v962
        %v969 = vpack.c.bf16 %v965, %v964
        %v970 = vld [vmem:[%s7] sm:$0xff]
        %v971 = vld [vmem:[%s7 + $0x8] sm:$0xff]
        %v972 = vld [vmem:[%s7 + $0x10] sm:$0xff]
        %v973 = vld [vmem:[%s7 + $0x18] sm:$0xff]
        %v974 = vld [vmem:[%s7 + $0x20] sm:$0xff]
        %v975 = vld [vmem:[%s7 + $0x28] sm:$0xff]
        %v976 = vld [vmem:[%s7 + $0x30] sm:$0xff]
        %v977 = vld [vmem:[%s7 + $0x38] sm:$0xff]
        %v994 = vunpack.c.l.b16 %v721
        %v995 = vunpack.c.l.b16 %v722
        %v996 = vunpack.c.l.b16 %v723
        %v997 = vunpack.c.l.b16 %v724
        %v998 = vunpack.c.l.b16 %v725
        %v999 = vunpack.c.l.b16 %v726
        %v1000 = vunpack.c.l.b16 %v727
        %v1001 = vunpack.c.l.b16 %v728
        %v1002 = vunpack.c.l.b16 %v729
        %v1003 = vunpack.c.l.b16 %v730
        %v1004 = vunpack.c.l.b16 %v731
        %v1005 = vunpack.c.l.b16 %v732
        %v1006 = vunpack.c.l.b16 %v733
        %v1007 = vunpack.c.l.b16 %v734
        %v1008 = vunpack.c.l.b16 %v735
        %v1009 = vunpack.c.l.b16 %v736
        %v1010 = vpack.c.b16 %v995, %v994
        %v1011 = vpack.c.b16 %v997, %v996
        %v1012 = vpack.c.b16 %v999, %v998
        %v1013 = vpack.c.b16 %v1001, %v1000
        %v1014 = vpack.c.b16 %v1003, %v1002
        %v1015 = vpack.c.b16 %v1005, %v1004
        %v1016 = vpack.c.b16 %v1007, %v1006
        %v1017 = vpack.c.b16 %v1009, %v1008
        %1026 = vmatprep.subr.bf16.mxu0 0
        %1027 = vmatpush1.bf16.msra.mxu0 %v1010
        %1028 = vmatprep.subr.bf16.mxu0 0
        %1029 = vmatpush1.bf16.msra.mxu0 %v1011
        %1030 = vmatprep.subr.bf16.mxu0 0
        %1031 = vmatpush1.bf16.msra.mxu0 %v1012
        %1032 = vmatprep.subr.bf16.mxu0 0
        %1033 = vmatpush1.bf16.msra.mxu0 %v1013
        %1034 = vmatprep.subr.bf16.mxu0 0
        %1035 = vmatpush1.bf16.msra.mxu0 %v1014
        %1036 = vmatprep.subr.bf16.mxu0 0
        %1037 = vmatpush1.bf16.msra.mxu0 %v1015
        %1038 = vmatprep.subr.bf16.mxu0 0
        %1039 = vmatpush1.bf16.msra.mxu0 %v1016
        %1040 = vmatprep.subr.bf16.mxu0 0
        %1041 = vmatpush1.bf16.msra.mxu0 %v1017
        %1042 = vmatprep.subr.bf16.mxu0 0
        %1043 = vmatpush1.bf16.msra.mxu0 0
        %1044 = vmatprep.subr.bf16.mxu0 0
        %1045 = vmatpush1.bf16.msra.mxu0 0
        %1046 = vmatprep.subr.bf16.mxu0 0
        %1047 = vmatpush1.bf16.msra.mxu0 0
        %1048 = vmatprep.subr.bf16.mxu0 0
        %1049 = vmatpush1.bf16.msra.mxu0 0
        %1050 = vmatprep.subr.bf16.mxu0 0
        %1051 = vmatpush1.bf16.msra.mxu0 0
        %1052 = vmatprep.subr.bf16.mxu0 0
        %1053 = vmatpush1.bf16.msra.mxu0 0
        %1054 = vmatprep.subr.bf16.mxu0 0
        %1055 = vmatpush1.bf16.msra.mxu0 0
        %1056 = vmatprep.subr.bf16.mxu0 0
        %1057 = vmatpush1.bf16.msra.mxu0 0
        %1058 = vmatprep.mubr.bf16.mxu0 0
        %1059 = vmatmul.mubr.bf16.gmra.mrb[0].mxu0 %v966
        %v1060 = vpop.f32.mrb[0].mxu0
        %v1061 = vadd.f32 %v970, %v1060
        %v1062 = vpop.f32.mrb[0].mxu0
        %v1063 = vpop.f32.mrb[0].mxu0
        %v1064 = vadd.f32 %v971, %v1063
        %v1065 = vpop.f32.mrb[0].mxu0
        %1066 = vmatprep.mubr.bf16.mxu0 0
        %1067 = vmatmul.mubr.bf16.gmra.mrb[0].mxu0 %v967
        %v1068 = vpop.f32.mrb[0].mxu0
        %v1069 = vadd.f32 %v972, %v1068
        %v1070 = vpop.f32.mrb[0].mxu0
        %v1071 = vpop.f32.mrb[0].mxu0
        %v1072 = vadd.f32 %v973, %v1071
        %v1073 = vpop.f32.mrb[0].mxu0
        %1074 = vmatprep.mubr.bf16.mxu0 0
        %1075 = vmatmul.mubr.bf16.gmra.mrb[0].mxu0 %v968
        %v1076 = vpop.f32.mrb[0].mxu0
        %v1077 = vadd.f32 %v974, %v1076
        %v1078 = vpop.f32.mrb[0].mxu0
        %v1079 = vpop.f32.mrb[0].mxu0
        %v1080 = vadd.f32 %v975, %v1079
        %v1081 = vpop.f32.mrb[0].mxu0
        %1082 = vmatprep.mubr.bf16.mxu0 0
        %1083 = vmatmul.mubr.bf16.gmra.mrb[0].mxu0 %v969
        %v1084 = vpop.f32.mrb[0].mxu0
        %v1085 = vadd.f32 %v976, %v1084
        %v1086 = vpop.f32.mrb[0].mxu0
        %v1087 = vpop.f32.mrb[0].mxu0
        %v1088 = vadd.f32 %v977, %v1087
        %v1089 = vpop.f32.mrb[0].mxu0
        %1090 = vdwg.mxu0
        %1091 = vst [vmem:[#allocation3] sm:$0xff] %v1061
        %1092 = vst [vmem:[#allocation3 + $0x8] sm:$0xff] %v1064
        %1093 = vst [vmem:[#allocation3 + $0x10] sm:$0xff] %v1069
        %1094 = vst [vmem:[#allocation3 + $0x18] sm:$0xff] %v1072
        %1095 = vst [vmem:[#allocation3 + $0x20] sm:$0xff] %v1077
        %1096 = vst [vmem:[#allocation3 + $0x28] sm:$0xff] %v1080
        %1097 = vst [vmem:[#allocation3 + $0x30] sm:$0xff] %v1085
        %1098 = vst [vmem:[#allocation3 + $0x38] sm:$0xff] %v1088
        %s1099 = scalar_lea.vmem %s543, 32 [#allocation4]
        %v1100 = vld [vmem:[%s1099] sm:$0xf]
        %v1101 = vld [vmem:[%s1099 + $0x4] sm:$0xf]
        %v1102 = vld [vmem:[%s1099 + $0x8] sm:$0xf]
        %v1103 = vld [vmem:[%s1099 + $0xc] sm:$0xf]
        %v1104 = vld [vmem:[%s1099 + $0x10] sm:$0xf]
        %v1105 = vld [vmem:[%s1099 + $0x14] sm:$0xf]
        %v1106 = vld [vmem:[%s1099 + $0x18] sm:$0xf]
        %v1107 = vld [vmem:[%s1099 + $0x1c] sm:$0xf]
        %s1108 = scalar_lea.vmem %s4, 128
        %v1109 = vld [vmem:[%s1108] sm:$0xff]
        %v1110 = vld [vmem:[%s1108 + $0x8] sm:$0xff]
        %v1111 = vld [vmem:[%s1108 + $0x10] sm:$0xff]
        %v1112 = vld [vmem:[%s1108 + $0x18] sm:$0xff]
        %v1113 = vld [vmem:[%s1108 + $0x20] sm:$0xff]
        %v1114 = vld [vmem:[%s1108 + $0x28] sm:$0xff]
        %v1115 = vld [vmem:[%s1108 + $0x30] sm:$0xff]
        %v1116 = vld [vmem:[%s1108 + $0x38] sm:$0xff]
        %v1117 = vld [vmem:[%s1108 + $0x40] sm:$0xff]
        %v1118 = vld [vmem:[%s1108 + $0x48] sm:$0xff]
        %v1119 = vld [vmem:[%s1108 + $0x50] sm:$0xff]
        %v1120 = vld [vmem:[%s1108 + $0x58] sm:$0xff]
        %v1121 = vld [vmem:[%s1108 + $0x60] sm:$0xff]
        %v1122 = vld [vmem:[%s1108 + $0x68] sm:$0xff]
        %v1123 = vld [vmem:[%s1108 + $0x70] sm:$0xff]
        %v1124 = vld [vmem:[%s1108 + $0x78] sm:$0xff]
        %s1125 = scalar_lea.vmem %s5, 2
        %v1126 = vld [vmem:[%s1125] sm:$0x3]
        %v1128 = vlaneseq
        %v1129 = vshrl.u32 %v1128, 7
        %v1130 = vsub.s32 0, %v1129
        %v1131 = vrot.slane %v1126, %v1130
        %v1132 = vlaneseq
        %v1133 = vshrl.u32 %v1132, 7
        %v1134 = vsub.s32 1, %v1133
        %v1135 = vrot.slane %v1126, %v1134
        %v1146 = vunpack.c.l.b16 %v1100
        %v1147 = vunpack.c.l.b16 %v1101
        %v1148 = vunpack.c.l.b16 %v1102
        %v1149 = vunpack.c.l.b16 %v1103
        %v1150 = vunpack.c.l.b16 %v1104
        %v1151 = vunpack.c.l.b16 %v1105
        %v1152 = vunpack.c.l.b16 %v1106
        %v1153 = vunpack.c.l.b16 %v1107
        %v1154 = vpack.c.b16 %v1147, %v1146
        %v1155 = vpack.c.b16 %v1149, %v1148
        %v1156 = vpack.c.b16 %v1151, %v1150
        %v1157 = vpack.c.b16 %v1153, %v1152
        %v1178 = vunpack.c.l.b16 %v1109
        %v1179 = vunpack.c.h.b16 %v1109
        %v1180 = vunpack.c.l.b16 %v1110
        %v1181 = vunpack.c.h.b16 %v1110
        %v1182 = vunpack.c.l.b16 %v1111
        %v1183 = vunpack.c.h.b16 %v1111
        %v1184 = vunpack.c.l.b16 %v1112
        %v1185 = vunpack.c.h.b16 %v1112
        %v1186 = vunpack.c.l.b16 %v1113
        %v1187 = vunpack.c.h.b16 %v1113
        %v1188 = vunpack.c.l.b16 %v1114
        %v1189 = vunpack.c.h.b16 %v1114
        %v1190 = vunpack.c.l.b16 %v1115
        %v1191 = vunpack.c.h.b16 %v1115
        %v1192 = vunpack.c.l.b16 %v1116
        %v1193 = vunpack.c.h.b16 %v1116
        %v1194 = vunpack.c.l.b16 %v1117
        %v1195 = vunpack.c.h.b16 %v1117
        %v1196 = vunpack.c.l.b16 %v1118
        %v1197 = vunpack.c.h.b16 %v1118
        %v1198 = vunpack.c.l.b16 %v1119
        %v1199 = vunpack.c.h.b16 %v1119
        %v1200 = vunpack.c.l.b16 %v1120
        %v1201 = vunpack.c.h.b16 %v1120
        %v1202 = vunpack.c.l.b16 %v1121
        %v1203 = vunpack.c.h.b16 %v1121
        %v1204 = vunpack.c.l.b16 %v1122
        %v1205 = vunpack.c.h.b16 %v1122
        %v1206 = vunpack.c.l.b16 %v1123
        %v1207 = vunpack.c.h.b16 %v1123
        %v1208 = vunpack.c.l.b16 %v1124
        %v1209 = vunpack.c.h.b16 %v1124
        %v1210 = vpack.c.b16 %v1180, %v1178
        %v1211 = vpack.c.b16 %v1181, %v1179
        %v1212 = vpack.c.b16 %v1184, %v1182
        %v1213 = vpack.c.b16 %v1185, %v1183
        %v1214 = vpack.c.b16 %v1188, %v1186
        %v1215 = vpack.c.b16 %v1189, %v1187
        %v1216 = vpack.c.b16 %v1192, %v1190
        %v1217 = vpack.c.b16 %v1193, %v1191
        %v1218 = vpack.c.b16 %v1196, %v1194
        %v1219 = vpack.c.b16 %v1197, %v1195
        %v1220 = vpack.c.b16 %v1200, %v1198
        %v1221 = vpack.c.b16 %v1201, %v1199
        %v1222 = vpack.c.b16 %v1204, %v1202
        %v1223 = vpack.c.b16 %v1205, %v1203
        %v1224 = vpack.c.b16 %v1208, %v1206
        %v1225 = vpack.c.b16 %v1209, %v1207
        %1242 = vmatprep.subr.bf16.mxu0 %v1211
        %1243 = vmatpush1.bf16.msra.mxu0 %v1210
        %1244 = vmatprep.subr.bf16.mxu0 %v1213
        %1245 = vmatpush1.bf16.msra.mxu0 %v1212
        %1246 = vmatprep.subr.bf16.mxu0 %v1215
        %1247 = vmatpush1.bf16.msra.mxu0 %v1214
        %1248 = vmatprep.subr.bf16.mxu0 %v1217
        %1249 = vmatpush1.bf16.msra.mxu0 %v1216
        %1250 = vmatprep.subr.bf16.mxu0 %v1219
        %1251 = vmatpush1.bf16.msra.mxu0 %v1218
        %1252 = vmatprep.subr.bf16.mxu0 %v1221
        %1253 = vmatpush1.bf16.msra.mxu0 %v1220
        %1254 = vmatprep.subr.bf16.mxu0 %v1223
        %1255 = vmatpush1.bf16.msra.mxu0 %v1222
        %1256 = vmatprep.subr.bf16.mxu0 %v1225
        %1257 = vmatpush1.bf16.msra.mxu0 %v1224
        %1258 = vmatprep.subr.bf16.mxu0 0
        %1259 = vmatpush1.bf16.msra.mxu0 0
        %1260 = vmatprep.subr.bf16.mxu0 0
        %1261 = vmatpush1.bf16.msra.mxu0 0
        %1262 = vmatprep.subr.bf16.mxu0 0
        %1263 = vmatpush1.bf16.msra.mxu0 0
        %1264 = vmatprep.subr.bf16.mxu0 0
        %1265 = vmatpush1.bf16.msra.mxu0 0
        %1266 = vmatprep.subr.bf16.mxu0 0
        %1267 = vmatpush1.bf16.msra.mxu0 0
        %1268 = vmatprep.subr.bf16.mxu0 0
        %1269 = vmatpush1.bf16.msra.mxu0 0
        %1270 = vmatprep.subr.bf16.mxu0 0
        %1271 = vmatpush1.bf16.msra.mxu0 0
        %1272 = vmatprep.subr.bf16.mxu0 0
        %1273 = vmatpush1.bf16.msra.mxu0 0
        %1274 = vmatprep.mubr.bf16.mxu0 0
        %1275 = vmatmul.mubr.bf16.gmra.mrb[0].mxu0 %v1154
        %v1276 = vpop.f32.mrb[0].mxu0
        %v1277 = vadd.f32 %v1131, %v1276
        %v1278 = vpop.f32.mrb[0].mxu0
        %v1279 = vadd.f32 %v1135, %v1278
        %v1280 = vpop.f32.mrb[0].mxu0
        %v1281 = vadd.f32 %v1131, %v1280
        %v1282 = vpop.f32.mrb[0].mxu0
        %v1283 = vadd.f32 %v1135, %v1282
        %1284 = vmatprep.mubr.bf16.mxu0 0
        %1285 = vmatmul.mubr.bf16.gmra.mrb[0].mxu0 %v1155
        %v1286 = vpop.f32.mrb[0].mxu0
        %v1287 = vadd.f32 %v1131, %v1286
        %v1288 = vpop.f32.mrb[0].mxu0
        %v1289 = vadd.f32 %v1135, %v1288
        %v1290 = vpop.f32.mrb[0].mxu0
        %v1291 = vadd.f32 %v1131, %v1290
        %v1292 = vpop.f32.mrb[0].mxu0
        %v1293 = vadd.f32 %v1135, %v1292
        %1294 = vmatprep.mubr.bf16.mxu0 0
        %1295 = vmatmul.mubr.bf16.gmra.mrb[0].mxu0 %v1156
        %v1296 = vpop.f32.mrb[0].mxu0
        %v1297 = vadd.f32 %v1131, %v1296
        %v1298 = vpop.f32.mrb[0].mxu0
        %v1299 = vadd.f32 %v1135, %v1298
        %v1300 = vpop.f32.mrb[0].mxu0
        %v1301 = vadd.f32 %v1131, %v1300
        %v1302 = vpop.f32.mrb[0].mxu0
        %v1303 = vadd.f32 %v1135, %v1302
        %1304 = vmatprep.mubr.bf16.mxu0 0
        %1305 = vmatmul.mubr.bf16.gmra.mrb[0].mxu0 %v1157
        %v1306 = vpop.f32.mrb[0].mxu0
        %v1307 = vadd.f32 %v1131, %v1306
        %v1308 = vpop.f32.mrb[0].mxu0
        %v1309 = vadd.f32 %v1135, %v1308
        %v1310 = vpop.f32.mrb[0].mxu0
        %v1311 = vadd.f32 %v1131, %v1310
        %v1312 = vpop.f32.mrb[0].mxu0
        %v1313 = vadd.f32 %v1135, %v1312
        %1314 = vdwg.mxu0
        %v1315 = vpack.c.bf16 %v1283, %v1279
        %v1316 = vpack.c.bf16 %v1293, %v1289
        %v1317 = vpack.c.bf16 %v1303, %v1299
        %v1318 = vpack.c.bf16 %v1313, %v1309
        %s1319 = scalar_lea.vmem [#allocation2], 32
        %1320 = vst [vmem:[%s1319] sm:$0xff] %v1315
        %1321 = vst [vmem:[%s1319 + $0x8] sm:$0xff] %v1316
        %1322 = vst [vmem:[%s1319 + $0x10] sm:$0xff] %v1317
        %1323 = vst [vmem:[%s1319 + $0x18] sm:$0xff] %v1318
        %v1324 = vmul.f32 %v1277, %v691
        %v1325 = vmul.f32 %v1281, %v694
        %v1326 = vmul.f32 %v1287, %v699
        %v1327 = vmul.f32 %v1291, %v702
        %v1328 = vmul.f32 %v1297, %v707
        %v1329 = vmul.f32 %v1301, %v710
        %v1330 = vmul.f32 %v1307, %v715
        %v1331 = vmul.f32 %v1311, %v718
        %v1332 = vpack.c.bf16 %v1325, %v1324
        %v1333 = vpack.c.bf16 %v1327, %v1326
        %v1334 = vpack.c.bf16 %v1329, %v1328
        %v1335 = vpack.c.bf16 %v1331, %v1330
        %s1336 = scalar_lea.vmem %s7, 64
        %v1337 = vld [vmem:[%s1336] sm:$0xff]
        %v1338 = vld [vmem:[%s1336 + $0x8] sm:$0xff]
        %v1339 = vld [vmem:[%s1336 + $0x10] sm:$0xff]
        %v1340 = vld [vmem:[%s1336 + $0x18] sm:$0xff]
        %v1341 = vld [vmem:[%s1336 + $0x20] sm:$0xff]
        %v1342 = vld [vmem:[%s1336 + $0x28] sm:$0xff]
        %v1343 = vld [vmem:[%s1336 + $0x30] sm:$0xff]
        %v1344 = vld [vmem:[%s1336 + $0x38] sm:$0xff]
        %1345 = vmatprep.subr.bf16.mxu0 0
        %1346 = vmatpush1.bf16.msra.mxu0 %v1010
        %1347 = vmatprep.subr.bf16.mxu0 0
        %1348 = vmatpush1.bf16.msra.mxu0 %v1011
        %1349 = vmatprep.subr.bf16.mxu0 0
        %1350 = vmatpush1.bf16.msra.mxu0 %v1012
        %1351 = vmatprep.subr.bf16.mxu0 0
        %1352 = vmatpush1.bf16.msra.mxu0 %v1013
        %1353 = vmatprep.subr.bf16.mxu0 0
        %1354 = vmatpush1.bf16.msra.mxu0 %v1014
        %1355 = vmatprep.subr.bf16.mxu0 0
        %1356 = vmatpush1.bf16.msra.mxu0 %v1015
        %1357 = vmatprep.subr.bf16.mxu0 0
        %1358 = vmatpush1.bf16.msra.mxu0 %v1016
        %1359 = vmatprep.subr.bf16.mxu0 0
        %1360 = vmatpush1.bf16.msra.mxu0 %v1017
        %1361 = vmatprep.subr.bf16.mxu0 0
        %1362 = vmatpush1.bf16.msra.mxu0 0
        %1363 = vmatprep.subr.bf16.mxu0 0
        %1364 = vmatpush1.bf16.msra.mxu0 0
        %1365 = vmatprep.subr.bf16.mxu0 0
        %1366 = vmatpush1.bf16.msra.mxu0 0
        %1367 = vmatprep.subr.bf16.mxu0 0
        %1368 = vmatpush1.bf16.msra.mxu0 0
        %1369 = vmatprep.subr.bf16.mxu0 0
        %1370 = vmatpush1.bf16.msra.mxu0 0
        %1371 = vmatprep.subr.bf16.mxu0 0
        %1372 = vmatpush1.bf16.msra.mxu0 0
        %1373 = vmatprep.subr.bf16.mxu0 0
        %1374 = vmatpush1.bf16.msra.mxu0 0
        %1375 = vmatprep.subr.bf16.mxu0 0
        %1376 = vmatpush1.bf16.msra.mxu0 0
        %1377 = vmatprep.mubr.bf16.mxu0 0
        %1378 = vmatmul.mubr.bf16.gmra.mrb[0].mxu0 %v1332
        %v1379 = vpop.f32.mrb[0].mxu0
        %v1380 = vadd.f32 %v1337, %v1379
        %v1381 = vpop.f32.mrb[0].mxu0
        %v1382 = vpop.f32.mrb[0].mxu0
        %v1383 = vadd.f32 %v1338, %v1382
        %v1384 = vpop.f32.mrb[0].mxu0
        %1385 = vmatprep.mubr.bf16.mxu0 0
        %1386 = vmatmul.mubr.bf16.gmra.mrb[0].mxu0 %v1333
        %v1387 = vpop.f32.mrb[0].mxu0
        %v1388 = vadd.f32 %v1339, %v1387
        %v1389 = vpop.f32.mrb[0].mxu0
        %v1390 = vpop.f32.mrb[0].mxu0
        %v1391 = vadd.f32 %v1340, %v1390
        %v1392 = vpop.f32.mrb[0].mxu0
        %1393 = vmatprep.mubr.bf16.mxu0 0
        %1394 = vmatmul.mubr.bf16.gmra.mrb[0].mxu0 %v1334
        %v1395 = vpop.f32.mrb[0].mxu0
        %v1396 = vadd.f32 %v1341, %v1395
        %v1397 = vpop.f32.mrb[0].mxu0
        %v1398 = vpop.f32.mrb[0].mxu0
        %v1399 = vadd.f32 %v1342, %v1398
        %v1400 = vpop.f32.mrb[0].mxu0
        %1401 = vmatprep.mubr.bf16.mxu0 0
        %1402 = vmatmul.mubr.bf16.gmra.mrb[0].mxu0 %v1335
        %v1403 = vpop.f32.mrb[0].mxu0
        %v1404 = vadd.f32 %v1343, %v1403
        %v1405 = vpop.f32.mrb[0].mxu0
        %v1406 = vpop.f32.mrb[0].mxu0
        %v1407 = vadd.f32 %v1344, %v1406
        %v1408 = vpop.f32.mrb[0].mxu0
        %1409 = vdwg.mxu0
        %s1410 = scalar_lea.vmem [#allocation3], 64
        %1411 = vst [vmem:[%s1410] sm:$0xff] %v1380
        %1412 = vst [vmem:[%s1410 + $0x8] sm:$0xff] %v1383
        %1413 = vst [vmem:[%s1410 + $0x10] sm:$0xff] %v1388
        %1414 = vst [vmem:[%s1410 + $0x18] sm:$0xff] %v1391
        %1415 = vst [vmem:[%s1410 + $0x20] sm:$0xff] %v1396
        %1416 = vst [vmem:[%s1410 + $0x28] sm:$0xff] %v1399
        %1417 = vst [vmem:[%s1410 + $0x30] sm:$0xff] %v1404
        %1418 = vst [vmem:[%s1410 + $0x38] sm:$0xff] %v1407
        %v1419 = vmax.f32 %v1061, %v1380
        %v1420 = vmax.f32 %v1064, %v1383
        %v1421 = vmax.f32 %v1069, %v1388
        %v1422 = vmax.f32 %v1072, %v1391
        %v1423 = vmax.f32 %v1077, %v1396
        %v1424 = vmax.f32 %v1080, %v1399
        %v1425 = vmax.f32 %v1085, %v1404
        %v1426 = vmax.f32 %v1088, %v1407
        %s1427 = scalar_lea.vmem %s543, 64 [#allocation4]
        %v1428 = vld [vmem:[%s1427] sm:$0xf]
        %v1429 = vld [vmem:[%s1427 + $0x4] sm:$0xf]
        %v1430 = vld [vmem:[%s1427 + $0x8] sm:$0xf]
        %v1431 = vld [vmem:[%s1427 + $0xc] sm:$0xf]
        %v1432 = vld [vmem:[%s1427 + $0x10] sm:$0xf]
        %v1433 = vld [vmem:[%s1427 + $0x14] sm:$0xf]
        %v1434 = vld [vmem:[%s1427 + $0x18] sm:$0xf]
        %v1435 = vld [vmem:[%s1427 + $0x1c] sm:$0xf]
        %s1436 = scalar_lea.vmem %s4, 256
        %v1437 = vld [vmem:[%s1436] sm:$0xff]
        %v1438 = vld [vmem:[%s1436 + $0x8] sm:$0xff]
        %v1439 = vld [vmem:[%s1436 + $0x10] sm:$0xff]
        %v1440 = vld [vmem:[%s1436 + $0x18] sm:$0xff]
        %v1441 = vld [vmem:[%s1436 + $0x20] sm:$0xff]
        %v1442 = vld [vmem:[%s1436 + $0x28] sm:$0xff]
        %v1443 = vld [vmem:[%s1436 + $0x30] sm:$0xff]
        %v1444 = vld [vmem:[%s1436 + $0x38] sm:$0xff]
        %v1445 = vld [vmem:[%s1436 + $0x40] sm:$0xff]
        %v1446 = vld [vmem:[%s1436 + $0x48] sm:$0xff]
        %v1447 = vld [vmem:[%s1436 + $0x50] sm:$0xff]
        %v1448 = vld [vmem:[%s1436 + $0x58] sm:$0xff]
        %v1449 = vld [vmem:[%s1436 + $0x60] sm:$0xff]
        %v1450 = vld [vmem:[%s1436 + $0x68] sm:$0xff]
        %v1451 = vld [vmem:[%s1436 + $0x70] sm:$0xff]
        %v1452 = vld [vmem:[%s1436 + $0x78] sm:$0xff]
        %s1453 = scalar_lea.vmem %s5, 4
        %v1454 = vld [vmem:[%s1453] sm:$0x3]
        %v1456 = vlaneseq
        %v1457 = vshrl.u32 %v1456, 7
        %v1458 = vsub.s32 0, %v1457
        %v1459 = vrot.slane %v1454, %v1458
        %v1460 = vlaneseq
        %v1461 = vshrl.u32 %v1460, 7
        %v1462 = vsub.s32 1, %v1461
        %v1463 = vrot.slane %v1454, %v1462
        %v1474 = vunpack.c.l.b16 %v1428
        %v1475 = vunpack.c.l.b16 %v1429
        %v1476 = vunpack.c.l.b16 %v1430
        %v1477 = vunpack.c.l.b16 %v1431
        %v1478 = vunpack.c.l.b16 %v1432
        %v1479 = vunpack.c.l.b16 %v1433
        %v1480 = vunpack.c.l.b16 %v1434
        %v1481 = vunpack.c.l.b16 %v1435
        %v1482 = vpack.c.b16 %v1475, %v1474
        %v1483 = vpack.c.b16 %v1477, %v1476
        %v1484 = vpack.c.b16 %v1479, %v1478
        %v1485 = vpack.c.b16 %v1481, %v1480
        %v1506 = vunpack.c.l.b16 %v1437
        %v1507 = vunpack.c.h.b16 %v1437
        %v1508 = vunpack.c.l.b16 %v1438
        %v1509 = vunpack.c.h.b16 %v1438
        %v1510 = vunpack.c.l.b16 %v1439
        %v1511 = vunpack.c.h.b16 %v1439
        %v1512 = vunpack.c.l.b16 %v1440
        %v1513 = vunpack.c.h.b16 %v1440
        %v1514 = vunpack.c.l.b16 %v1441
        %v1515 = vunpack.c.h.b16 %v1441
        %v1516 = vunpack.c.l.b16 %v1442
        %v1517 = vunpack.c.h.b16 %v1442
        %v1518 = vunpack.c.l.b16 %v1443
        %v1519 = vunpack.c.h.b16 %v1443
        %v1520 = vunpack.c.l.b16 %v1444
        %v1521 = vunpack.c.h.b16 %v1444
        %v1522 = vunpack.c.l.b16 %v1445
        %v1523 = vunpack.c.h.b16 %v1445
        %v1524 = vunpack.c.l.b16 %v1446
        %v1525 = vunpack.c.h.b16 %v1446
        %v1526 = vunpack.c.l.b16 %v1447
        %v1527 = vunpack.c.h.b16 %v1447
        %v1528 = vunpack.c.l.b16 %v1448
        %v1529 = vunpack.c.h.b16 %v1448
        %v1530 = vunpack.c.l.b16 %v1449
        %v1531 = vunpack.c.h.b16 %v1449
        %v1532 = vunpack.c.l.b16 %v1450
        %v1533 = vunpack.c.h.b16 %v1450
        %v1534 = vunpack.c.l.b16 %v1451
        %v1535 = vunpack.c.h.b16 %v1451
        %v1536 = vunpack.c.l.b16 %v1452
        %v1537 = vunpack.c.h.b16 %v1452
        %v1538 = vpack.c.b16 %v1508, %v1506
        %v1539 = vpack.c.b16 %v1509, %v1507
        %v1540 = vpack.c.b16 %v1512, %v1510
        %v1541 = vpack.c.b16 %v1513, %v1511
        %v1542 = vpack.c.b16 %v1516, %v1514
        %v1543 = vpack.c.b16 %v1517, %v1515
        %v1544 = vpack.c.b16 %v1520, %v1518
        %v1545 = vpack.c.b16 %v1521, %v1519
        %v1546 = vpack.c.b16 %v1524, %v1522
        %v1547 = vpack.c.b16 %v1525, %v1523
        %v1548 = vpack.c.b16 %v1528, %v1526
        %v1549 = vpack.c.b16 %v1529, %v1527
        %v1550 = vpack.c.b16 %v1532, %v1530
        %v1551 = vpack.c.b16 %v1533, %v1531
        %v1552 = vpack.c.b16 %v1536, %v1534
        %v1553 = vpack.c.b16 %v1537, %v1535
        %1570 = vmatprep.subr.bf16.mxu0 %v1539
        %1571 = vmatpush1.bf16.msra.mxu0 %v1538
        %1572 = vmatprep.subr.bf16.mxu0 %v1541
        %1573 = vmatpush1.bf16.msra.mxu0 %v1540
        %1574 = vmatprep.subr.bf16.mxu0 %v1543
        %1575 = vmatpush1.bf16.msra.mxu0 %v1542
        %1576 = vmatprep.subr.bf16.mxu0 %v1545
        %1577 = vmatpush1.bf16.msra.mxu0 %v1544
        %1578 = vmatprep.subr.bf16.mxu0 %v1547
        %1579 = vmatpush1.bf16.msra.mxu0 %v1546
        %1580 = vmatprep.subr.bf16.mxu0 %v1549
        %1581 = vmatpush1.bf16.msra.mxu0 %v1548
        %1582 = vmatprep.subr.bf16.mxu0 %v1551
        %1583 = vmatpush1.bf16.msra.mxu0 %v1550
        %1584 = vmatprep.subr.bf16.mxu0 %v1553
        %1585 = vmatpush1.bf16.msra.mxu0 %v1552
        %1586 = vmatprep.subr.bf16.mxu0 0
        %1587 = vmatpush1.bf16.msra.mxu0 0
        %1588 = vmatprep.subr.bf16.mxu0 0
        %1589 = vmatpush1.bf16.msra.mxu0 0
        %1590 = vmatprep.subr.bf16.mxu0 0
        %1591 = vmatpush1.bf16.msra.mxu0 0
        %1592 = vmatprep.subr.bf16.mxu0 0
        %1593 = vmatpush1.bf16.msra.mxu0 0
        %1594 = vmatprep.subr.bf16.mxu0 0
        %1595 = vmatpush1.bf16.msra.mxu0 0
        %1596 = vmatprep.subr.bf16.mxu0 0
        %1597 = vmatpush1.bf16.msra.mxu0 0
        %1598 = vmatprep.subr.bf16.mxu0 0
        %1599 = vmatpush1.bf16.msra.mxu0 0
        %1600 = vmatprep.subr.bf16.mxu0 0
        %1601 = vmatpush1.bf16.msra.mxu0 0
        %1602 = vmatprep.mubr.bf16.mxu0 0
        %1603 = vmatmul.mubr.bf16.gmra.mrb[0].mxu0 %v1482
        %v1604 = vpop.f32.mrb[0].mxu0
        %v1605 = vadd.f32 %v1459, %v1604
        %v1606 = vpop.f32.mrb[0].mxu0
        %v1607 = vadd.f32 %v1463, %v1606
        %v1608 = vpop.f32.mrb[0].mxu0
        %v1609 = vadd.f32 %v1459, %v1608
        %v1610 = vpop.f32.mrb[0].mxu0
        %v1611 = vadd.f32 %v1463, %v1610
        %1612 = vmatprep.mubr.bf16.mxu0 0
        %1613 = vmatmul.mubr.bf16.gmra.mrb[0].mxu0 %v1483
        %v1614 = vpop.f32.mrb[0].mxu0
        %v1615 = vadd.f32 %v1459, %v1614
        %v1616 = vpop.f32.mrb[0].mxu0
        %v1617 = vadd.f32 %v1463, %v1616
        %v1618 = vpop.f32.mrb[0].mxu0
        %v1619 = vadd.f32 %v1459, %v1618
        %v1620 = vpop.f32.mrb[0].mxu0
        %v1621 = vadd.f32 %v1463, %v1620
        %1622 = vmatprep.mubr.bf16.mxu0 0
        %1623 = vmatmul.mubr.bf16.gmra.mrb[0].mxu0 %v1484
        %v1624 = vpop.f32.mrb[0].mxu0
        %v1625 = vadd.f32 %v1459, %v1624
        %v1626 = vpop.f32.mrb[0].mxu0
        %v1627 = vadd.f32 %v1463, %v1626
        %v1628 = vpop.f32.mrb[0].mxu0
        %v1629 = vadd.f32 %v1459, %v1628
        %v1630 = vpop.f32.mrb[0].mxu0
        %v1631 = vadd.f32 %v1463, %v1630
        %1632 = vmatprep.mubr.bf16.mxu0 0
        %1633 = vmatmul.mubr.bf16.gmra.mrb[0].mxu0 %v1485
        %v1634 = vpop.f32.mrb[0].mxu0
        %v1635 = vadd.f32 %v1459, %v1634
        %v1636 = vpop.f32.mrb[0].mxu0
        %v1637 = vadd.f32 %v1463, %v1636
        %v1638 = vpop.f32.mrb[0].mxu0
        %v1639 = vadd.f32 %v1459, %v1638
        %v1640 = vpop.f32.mrb[0].mxu0
        %v1641 = vadd.f32 %v1463, %v1640
        %1642 = vdwg.mxu0
        %v1643 = vpack.c.bf16 %v1611, %v1607
        %v1644 = vpack.c.bf16 %v1621, %v1617
        %v1645 = vpack.c.bf16 %v1631, %v1627
        %v1646 = vpack.c.bf16 %v1641, %v1637
        %s1647 = scalar_lea.vmem [#allocation2], 64
        %1648 = vst [vmem:[%s1647] sm:$0xff] %v1643
        %1649 = vst [vmem:[%s1647 + $0x8] sm:$0xff] %v1644
        %1650 = vst [vmem:[%s1647 + $0x10] sm:$0xff] %v1645
        %1651 = vst [vmem:[%s1647 + $0x18] sm:$0xff] %v1646
        %v1652 = vmul.f32 %v1605, %v691
        %v1653 = vmul.f32 %v1609, %v694
        %v1654 = vmul.f32 %v1615, %v699
        %v1655 = vmul.f32 %v1619, %v702
        %v1656 = vmul.f32 %v1625, %v707
        %v1657 = vmul.f32 %v1629, %v710
        %v1658 = vmul.f32 %v1635, %v715
        %v1659 = vmul.f32 %v1639, %v718
        %v1660 = vpack.c.bf16 %v1653, %v1652
        %v1661 = vpack.c.bf16 %v1655, %v1654
        %v1662 = vpack.c.bf16 %v1657, %v1656
        %v1663 = vpack.c.bf16 %v1659, %v1658
        %s1664 = scalar_lea.vmem %s7, 128
        %v1665 = vld [vmem:[%s1664] sm:$0xff]
        %v1666 = vld [vmem:[%s1664 + $0x8] sm:$0xff]
        %v1667 = vld [vmem:[%s1664 + $0x10] sm:$0xff]
        %v1668 = vld [vmem:[%s1664 + $0x18] sm:$0xff]
        %v1669 = vld [vmem:[%s1664 + $0x20] sm:$0xff]
        %v1670 = vld [vmem:[%s1664 + $0x28] sm:$0xff]
        %v1671 = vld [vmem:[%s1664 + $0x30] sm:$0xff]
        %v1672 = vld [vmem:[%s1664 + $0x38] sm:$0xff]
        %1673 = vmatprep.subr.bf16.mxu0 0
        %1674 = vmatpush1.bf16.msra.mxu0 %v1010
        %1675 = vmatprep.subr.bf16.mxu0 0
        %1676 = vmatpush1.bf16.msra.mxu0 %v1011
        %1677 = vmatprep.subr.bf16.mxu0 0
        %1678 = vmatpush1.bf16.msra.mxu0 %v1012
        %1679 = vmatprep.subr.bf16.mxu0 0
        %1680 = vmatpush1.bf16.msra.mxu0 %v1013
        %1681 = vmatprep.subr.bf16.mxu0 0
        %1682 = vmatpush1.bf16.msra.mxu0 %v1014
        %1683 = vmatprep.subr.bf16.mxu0 0
        %1684 = vmatpush1.bf16.msra.mxu0 %v1015
        %1685 = vmatprep.subr.bf16.mxu0 0
        %1686 = vmatpush1.bf16.msra.mxu0 %v1016
        %1687 = vmatprep.subr.bf16.mxu0 0
        %1688 = vmatpush1.bf16.msra.mxu0 %v1017
        %1689 = vmatprep.subr.bf16.mxu0 0
        %1690 = vmatpush1.bf16.msra.mxu0 0
        %1691 = vmatprep.subr.bf16.mxu0 0
        %1692 = vmatpush1.bf16.msra.mxu0 0
        %1693 = vmatprep.subr.bf16.mxu0 0
        %1694 = vmatpush1.bf16.msra.mxu0 0
        %1695 = vmatprep.subr.bf16.mxu0 0
        %1696 = vmatpush1.bf16.msra.mxu0 0
        %1697 = vmatprep.subr.bf16.mxu0 0
        %1698 = vmatpush1.bf16.msra.mxu0 0
        %1699 = vmatprep.subr.bf16.mxu0 0
        %1700 = vmatpush1.bf16.msra.mxu0 0
        %1701 = vmatprep.subr.bf16.mxu0 0
        %1702 = vmatpush1.bf16.msra.mxu0 0
        %1703 = vmatprep.subr.bf16.mxu0 0
        %1704 = vmatpush1.bf16.msra.mxu0 0
        %1705 = vmatprep.mubr.bf16.mxu0 0
        %1706 = vmatmul.mubr.bf16.gmra.mrb[0].mxu0 %v1660
        %v1707 = vpop.f32.mrb[0].mxu0
        %v1708 = vadd.f32 %v1665, %v1707
        %v1709 = vpop.f32.mrb[0].mxu0
        %v1710 = vpop.f32.mrb[0].mxu0
        %v1711 = vadd.f32 %v1666, %v1710
        %v1712 = vpop.f32.mrb[0].mxu0
        %1713 = vmatprep.mubr.bf16.mxu0 0
        %1714 = vmatmul.mubr.bf16.gmra.mrb[0].mxu0 %v1661
        %v1715 = vpop.f32.mrb[0].mxu0
        %v1716 = vadd.f32 %v1667, %v1715
        %v1717 = vpop.f32.mrb[0].mxu0
        %v1718 = vpop.f32.mrb[0].mxu0
        %v1719 = vadd.f32 %v1668, %v1718
        %v1720 = vpop.f32.mrb[0].mxu0
        %1721 = vmatprep.mubr.bf16.mxu0 0
        %1722 = vmatmul.mubr.bf16.gmra.mrb[0].mxu0 %v1662
        %v1723 = vpop.f32.mrb[0].mxu0
        %v1724 = vadd.f32 %v1669, %v1723
        %v1725 = vpop.f32.mrb[0].mxu0
        %v1726 = vpop.f32.mrb[0].mxu0
        %v1727 = vadd.f32 %v1670, %v1726
        %v1728 = vpop.f32.mrb[0].mxu0
        %1729 = vmatprep.mubr.bf16.mxu0 0
        %1730 = vmatmul.mubr.bf16.gmra.mrb[0].mxu0 %v1663
        %v1731 = vpop.f32.mrb[0].mxu0
        %v1732 = vadd.f32 %v1671, %v1731
        %v1733 = vpop.f32.mrb[0].mxu0
        %v1734 = vpop.f32.mrb[0].mxu0
        %v1735 = vadd.f32 %v1672, %v1734
        %v1736 = vpop.f32.mrb[0].mxu0
        %1737 = vdwg.mxu0
        %s1738 = scalar_lea.vmem [#allocation3], 128
        %1739 = vst [vmem:[%s1738] sm:$0xff] %v1708
        %1740 = vst [vmem:[%s1738 + $0x8] sm:$0xff] %v1711
        %1741 = vst [vmem:[%s1738 + $0x10] sm:$0xff] %v1716
        %1742 = vst [vmem:[%s1738 + $0x18] sm:$0xff] %v1719
        %1743 = vst [vmem:[%s1738 + $0x20] sm:$0xff] %v1724
        %1744 = vst [vmem:[%s1738 + $0x28] sm:$0xff] %v1727
        %1745 = vst [vmem:[%s1738 + $0x30] sm:$0xff] %v1732
        %1746 = vst [vmem:[%s1738 + $0x38] sm:$0xff] %v1735
        %v1747 = vmax.f32 %v1419, %v1708
        %v1748 = vmax.f32 %v1420, %v1711
        %v1749 = vmax.f32 %v1421, %v1716
        %v1750 = vmax.f32 %v1422, %v1719
        %v1751 = vmax.f32 %v1423, %v1724
        %v1752 = vmax.f32 %v1424, %v1727
        %v1753 = vmax.f32 %v1425, %v1732
        %v1754 = vmax.f32 %v1426, %v1735
        %s1755 = scalar_lea.vmem %s543, 96 [#allocation4]
        %v1756 = vld [vmem:[%s1755] sm:$0xf]
        %v1757 = vld [vmem:[%s1755 + $0x4] sm:$0xf]
        %v1758 = vld [vmem:[%s1755 + $0x8] sm:$0xf]
        %v1759 = vld [vmem:[%s1755 + $0xc] sm:$0xf]
        %v1760 = vld [vmem:[%s1755 + $0x10] sm:$0xf]
        %v1761 = vld [vmem:[%s1755 + $0x14] sm:$0xf]
        %v1762 = vld [vmem:[%s1755 + $0x18] sm:$0xf]
        %v1763 = vld [vmem:[%s1755 + $0x1c] sm:$0xf]
        %s1764 = scalar_lea.vmem %s4, 384
        %v1765 = vld [vmem:[%s1764] sm:$0xff]
        %v1766 = vld [vmem:[%s1764 + $0x8] sm:$0xff]
        %v1767 = vld [vmem:[%s1764 + $0x10] sm:$0xff]
        %v1768 = vld [vmem:[%s1764 + $0x18] sm:$0xff]
        %v1769 = vld [vmem:[%s1764 + $0x20] sm:$0xff]
        %v1770 = vld [vmem:[%s1764 + $0x28] sm:$0xff]
        %v1771 = vld [vmem:[%s1764 + $0x30] sm:$0xff]
        %v1772 = vld [vmem:[%s1764 + $0x38] sm:$0xff]
        %v1773 = vld [vmem:[%s1764 + $0x40] sm:$0xff]
        %v1774 = vld [vmem:[%s1764 + $0x48] sm:$0xff]
        %v1775 = vld [vmem:[%s1764 + $0x50] sm:$0xff]
        %v1776 = vld [vmem:[%s1764 + $0x58] sm:$0xff]
        %v1777 = vld [vmem:[%s1764 + $0x60] sm:$0xff]
        %v1778 = vld [vmem:[%s1764 + $0x68] sm:$0xff]
        %v1779 = vld [vmem:[%s1764 + $0x70] sm:$0xff]
        %v1780 = vld [vmem:[%s1764 + $0x78] sm:$0xff]
        %s1781 = scalar_lea.vmem %s5, 6
        %v1782 = vld [vmem:[%s1781] sm:$0x3]
        %v1784 = vlaneseq
        %v1785 = vshrl.u32 %v1784, 7
        %v1786 = vsub.s32 0, %v1785
        %v1787 = vrot.slane %v1782, %v1786
        %v1788 = vlaneseq
        %v1789 = vshrl.u32 %v1788, 7
        %v1790 = vsub.s32 1, %v1789
        %v1791 = vrot.slane %v1782, %v1790
        %v1802 = vunpack.c.l.b16 %v1756
        %v1803 = vunpack.c.l.b16 %v1757
        %v1804 = vunpack.c.l.b16 %v1758
        %v1805 = vunpack.c.l.b16 %v1759
        %v1806 = vunpack.c.l.b16 %v1760
        %v1807 = vunpack.c.l.b16 %v1761
        %v1808 = vunpack.c.l.b16 %v1762
        %v1809 = vunpack.c.l.b16 %v1763
        %v1810 = vpack.c.b16 %v1803, %v1802
        %v1811 = vpack.c.b16 %v1805, %v1804
        %v1812 = vpack.c.b16 %v1807, %v1806
        %v1813 = vpack.c.b16 %v1809, %v1808
        %v1834 = vunpack.c.l.b16 %v1765
        %v1835 = vunpack.c.h.b16 %v1765
        %v1836 = vunpack.c.l.b16 %v1766
        %v1837 = vunpack.c.h.b16 %v1766
        %v1838 = vunpack.c.l.b16 %v1767
        %v1839 = vunpack.c.h.b16 %v1767
        %v1840 = vunpack.c.l.b16 %v1768
        %v1841 = vunpack.c.h.b16 %v1768
        %v1842 = vunpack.c.l.b16 %v1769
        %v1843 = vunpack.c.h.b16 %v1769
        %v1844 = vunpack.c.l.b16 %v1770
        %v1845 = vunpack.c.h.b16 %v1770
        %v1846 = vunpack.c.l.b16 %v1771
        %v1847 = vunpack.c.h.b16 %v1771
        %v1848 = vunpack.c.l.b16 %v1772
        %v1849 = vunpack.c.h.b16 %v1772
        %v1850 = vunpack.c.l.b16 %v1773
        %v1851 = vunpack.c.h.b16 %v1773
        %v1852 = vunpack.c.l.b16 %v1774
        %v1853 = vunpack.c.h.b16 %v1774
        %v1854 = vunpack.c.l.b16 %v1775
        %v1855 = vunpack.c.h.b16 %v1775
        %v1856 = vunpack.c.l.b16 %v1776
        %v1857 = vunpack.c.h.b16 %v1776
        %v1858 = vunpack.c.l.b16 %v1777
        %v1859 = vunpack.c.h.b16 %v1777
        %v1860 = vunpack.c.l.b16 %v1778
        %v1861 = vunpack.c.h.b16 %v1778
        %v1862 = vunpack.c.l.b16 %v1779
        %v1863 = vunpack.c.h.b16 %v1779
        %v1864 = vunpack.c.l.b16 %v1780
        %v1865 = vunpack.c.h.b16 %v1780
        %v1866 = vpack.c.b16 %v1836, %v1834
        %v1867 = vpack.c.b16 %v1837, %v1835
        %v1868 = vpack.c.b16 %v1840, %v1838
        %v1869 = vpack.c.b16 %v1841, %v1839
        %v1870 = vpack.c.b16 %v1844, %v1842
        %v1871 = vpack.c.b16 %v1845, %v1843
        %v1872 = vpack.c.b16 %v1848, %v1846
        %v1873 = vpack.c.b16 %v1849, %v1847
        %v1874 = vpack.c.b16 %v1852, %v1850
        %v1875 = vpack.c.b16 %v1853, %v1851
        %v1876 = vpack.c.b16 %v1856, %v1854
        %v1877 = vpack.c.b16 %v1857, %v1855
        %v1878 = vpack.c.b16 %v1860, %v1858
        %v1879 = vpack.c.b16 %v1861, %v1859
        %v1880 = vpack.c.b16 %v1864, %v1862
        %v1881 = vpack.c.b16 %v1865, %v1863
        %1898 = vmatprep.subr.bf16.mxu0 %v1867
        %1899 = vmatpush1.bf16.msra.mxu0 %v1866
        %1900 = vmatprep.subr.bf16.mxu0 %v1869
        %1901 = vmatpush1.bf16.msra.mxu0 %v1868
        %1902 = vmatprep.subr.bf16.mxu0 %v1871
        %1903 = vmatpush1.bf16.msra.mxu0 %v1870
        %1904 = vmatprep.subr.bf16.mxu0 %v1873
        %1905 = vmatpush1.bf16.msra.mxu0 %v1872
        %1906 = vmatprep.subr.bf16.mxu0 %v1875
        %1907 = vmatpush1.bf16.msra.mxu0 %v1874
        %1908 = vmatprep.subr.bf16.mxu0 %v1877
        %1909 = vmatpush1.bf16.msra.mxu0 %v1876
        %1910 = vmatprep.subr.bf16.mxu0 %v1879
        %1911 = vmatpush1.bf16.msra.mxu0 %v1878
        %1912 = vmatprep.subr.bf16.mxu0 %v1881
        %1913 = vmatpush1.bf16.msra.mxu0 %v1880
        %1914 = vmatprep.subr.bf16.mxu0 0
        %1915 = vmatpush1.bf16.msra.mxu0 0
        %1916 = vmatprep.subr.bf16.mxu0 0
        %1917 = vmatpush1.bf16.msra.mxu0 0
        %1918 = vmatprep.subr.bf16.mxu0 0
        %1919 = vmatpush1.bf16.msra.mxu0 0
        %1920 = vmatprep.subr.bf16.mxu0 0
        %1921 = vmatpush1.bf16.msra.mxu0 0
        %1922 = vmatprep.subr.bf16.mxu0 0
        %1923 = vmatpush1.bf16.msra.mxu0 0
        %1924 = vmatprep.subr.bf16.mxu0 0
        %1925 = vmatpush1.bf16.msra.mxu0 0
        %1926 = vmatprep.subr.bf16.mxu0 0
        %1927 = vmatpush1.bf16.msra.mxu0 0
        %1928 = vmatprep.subr.bf16.mxu0 0
        %1929 = vmatpush1.bf16.msra.mxu0 0
        %1930 = vmatprep.mubr.bf16.mxu0 0
        %1931 = vmatmul.mubr.bf16.gmra.mrb[0].mxu0 %v1810
        %v1932 = vpop.f32.mrb[0].mxu0
        %v1933 = vadd.f32 %v1787, %v1932
        %v1934 = vpop.f32.mrb[0].mxu0
        %v1935 = vadd.f32 %v1791, %v1934
        %v1936 = vpop.f32.mrb[0].mxu0
        %v1937 = vadd.f32 %v1787, %v1936
        %v1938 = vpop.f32.mrb[0].mxu0
        %v1939 = vadd.f32 %v1791, %v1938
        %1940 = vmatprep.mubr.bf16.mxu0 0
        %1941 = vmatmul.mubr.bf16.gmra.mrb[0].mxu0 %v1811
        %v1942 = vpop.f32.mrb[0].mxu0
        %v1943 = vadd.f32 %v1787, %v1942
        %v1944 = vpop.f32.mrb[0].mxu0
        %v1945 = vadd.f32 %v1791, %v1944
        %v1946 = vpop.f32.mrb[0].mxu0
        %v1947 = vadd.f32 %v1787, %v1946
        %v1948 = vpop.f32.mrb[0].mxu0
        %v1949 = vadd.f32 %v1791, %v1948
        %1950 = vmatprep.mubr.bf16.mxu0 0
        %1951 = vmatmul.mubr.bf16.gmra.mrb[0].mxu0 %v1812
        %v1952 = vpop.f32.mrb[0].mxu0
        %v1953 = vadd.f32 %v1787, %v1952
        %v1954 = vpop.f32.mrb[0].mxu0
        %v1955 = vadd.f32 %v1791, %v1954
        %v1956 = vpop.f32.mrb[0].mxu0
        %v1957 = vadd.f32 %v1787, %v1956
        %v1958 = vpop.f32.mrb[0].mxu0
        %v1959 = vadd.f32 %v1791, %v1958
        %1960 = vmatprep.mubr.bf16.mxu0 0
        %1961 = vmatmul.mubr.bf16.gmra.mrb[0].mxu0 %v1813
        %v1962 = vpop.f32.mrb[0].mxu0
        %v1963 = vadd.f32 %v1787, %v1962
        %v1964 = vpop.f32.mrb[0].mxu0
        %v1965 = vadd.f32 %v1791, %v1964
        %v1966 = vpop.f32.mrb[0].mxu0
        %v1967 = vadd.f32 %v1787, %v1966
        %v1968 = vpop.f32.mrb[0].mxu0
        %v1969 = vadd.f32 %v1791, %v1968
        %1970 = vdwg.mxu0
        %v1971 = vpack.c.bf16 %v1939, %v1935
        %v1972 = vpack.c.bf16 %v1949, %v1945
        %v1973 = vpack.c.bf16 %v1959, %v1955
        %v1974 = vpack.c.bf16 %v1969, %v1965
        %s1975 = scalar_lea.vmem [#allocation2], 96
        %1976 = vst [vmem:[%s1975] sm:$0xff] %v1971
        %1977 = vst [vmem:[%s1975 + $0x8] sm:$0xff] %v1972
        %1978 = vst [vmem:[%s1975 + $0x10] sm:$0xff] %v1973
        %1979 = vst [vmem:[%s1975 + $0x18] sm:$0xff] %v1974
        %v1980 = vmul.f32 %v1933, %v691
        %v1981 = vmul.f32 %v1937, %v694
        %v1982 = vmul.f32 %v1943, %v699
        %v1983 = vmul.f32 %v1947, %v702
        %v1984 = vmul.f32 %v1953, %v707
        %v1985 = vmul.f32 %v1957, %v710
        %v1986 = vmul.f32 %v1963, %v715
        %v1987 = vmul.f32 %v1967, %v718
        %v1988 = vpack.c.bf16 %v1981, %v1980
        %v1989 = vpack.c.bf16 %v1983, %v1982
        %v1990 = vpack.c.bf16 %v1985, %v1984
        %v1991 = vpack.c.bf16 %v1987, %v1986
        %s1992 = scalar_lea.vmem %s7, 192
        %v1993 = vld [vmem:[%s1992] sm:$0xff]
        %v1994 = vld [vmem:[%s1992 + $0x8] sm:$0xff]
        %v1995 = vld [vmem:[%s1992 + $0x10] sm:$0xff]
        %v1996 = vld [vmem:[%s1992 + $0x18] sm:$0xff]
        %v1997 = vld [vmem:[%s1992 + $0x20] sm:$0xff]
        %v1998 = vld [vmem:[%s1992 + $0x28] sm:$0xff]
        %v1999 = vld [vmem:[%s1992 + $0x30] sm:$0xff]
        %v2000 = vld [vmem:[%s1992 + $0x38] sm:$0xff]
        %2001 = vmatprep.subr.bf16.mxu0 0
        %2002 = vmatpush1.bf16.msra.mxu0 %v1010
        %2003 = vmatprep.subr.bf16.mxu0 0
        %2004 = vmatpush1.bf16.msra.mxu0 %v1011
        %2005 = vmatprep.subr.bf16.mxu0 0
        %2006 = vmatpush1.bf16.msra.mxu0 %v1012
        %2007 = vmatprep.subr.bf16.mxu0 0
        %2008 = vmatpush1.bf16.msra.mxu0 %v1013
        %2009 = vmatprep.subr.bf16.mxu0 0
        %2010 = vmatpush1.bf16.msra.mxu0 %v1014
        %2011 = vmatprep.subr.bf16.mxu0 0
        %2012 = vmatpush1.bf16.msra.mxu0 %v1015
        %2013 = vmatprep.subr.bf16.mxu0 0
        %2014 = vmatpush1.bf16.msra.mxu0 %v1016
        %2015 = vmatprep.subr.bf16.mxu0 0
        %2016 = vmatpush1.bf16.msra.mxu0 %v1017
        %2017 = vmatprep.subr.bf16.mxu0 0
        %2018 = vmatpush1.bf16.msra.mxu0 0
        %2019 = vmatprep.subr.bf16.mxu0 0
        %2020 = vmatpush1.bf16.msra.mxu0 0
        %2021 = vmatprep.subr.bf16.mxu0 0
        %2022 = vmatpush1.bf16.msra.mxu0 0
        %2023 = vmatprep.subr.bf16.mxu0 0
        %2024 = vmatpush1.bf16.msra.mxu0 0
        %2025 = vmatprep.subr.bf16.mxu0 0
        %2026 = vmatpush1.bf16.msra.mxu0 0
        %2027 = vmatprep.subr.bf16.mxu0 0
        %2028 = vmatpush1.bf16.msra.mxu0 0
        %2029 = vmatprep.subr.bf16.mxu0 0
        %2030 = vmatpush1.bf16.msra.mxu0 0
        %2031 = vmatprep.subr.bf16.mxu0 0
        %2032 = vmatpush1.bf16.msra.mxu0 0
        %2033 = vmatprep.mubr.bf16.mxu0 0
        %2034 = vmatmul.mubr.bf16.gmra.mrb[0].mxu0 %v1988
        %v2035 = vpop.f32.mrb[0].mxu0
        %v2036 = vadd.f32 %v1993, %v2035
        %v2037 = vpop.f32.mrb[0].mxu0
        %v2038 = vpop.f32.mrb[0].mxu0
        %v2039 = vadd.f32 %v1994, %v2038
        %v2040 = vpop.f32.mrb[0].mxu0
        %2041 = vmatprep.mubr.bf16.mxu0 0
        %2042 = vmatmul.mubr.bf16.gmra.mrb[0].mxu0 %v1989
        %v2043 = vpop.f32.mrb[0].mxu0
        %v2044 = vadd.f32 %v1995, %v2043
        %v2045 = vpop.f32.mrb[0].mxu0
        %v2046 = vpop.f32.mrb[0].mxu0
        %v2047 = vadd.f32 %v1996, %v2046
        %v2048 = vpop.f32.mrb[0].mxu0
        %2049 = vmatprep.mubr.bf16.mxu0 0
        %2050 = vmatmul.mubr.bf16.gmra.mrb[0].mxu0 %v1990
        %v2051 = vpop.f32.mrb[0].mxu0
        %v2052 = vadd.f32 %v1997, %v2051
        %v2053 = vpop.f32.mrb[0].mxu0
        %v2054 = vpop.f32.mrb[0].mxu0
        %v2055 = vadd.f32 %v1998, %v2054
        %v2056 = vpop.f32.mrb[0].mxu0
        %2057 = vmatprep.mubr.bf16.mxu0 0
        %2058 = vmatmul.mubr.bf16.gmra.mrb[0].mxu0 %v1991
        %v2059 = vpop.f32.mrb[0].mxu0
        %v2060 = vadd.f32 %v1999, %v2059
        %v2061 = vpop.f32.mrb[0].mxu0
        %v2062 = vpop.f32.mrb[0].mxu0
        %v2063 = vadd.f32 %v2000, %v2062
        %v2064 = vpop.f32.mrb[0].mxu0
        %2065 = vdwg.mxu0
        %s2066 = scalar_lea.vmem [#allocation3], 192
        %2067 = vst [vmem:[%s2066] sm:$0xff] %v2036
        %2068 = vst [vmem:[%s2066 + $0x8] sm:$0xff] %v2039
        %2069 = vst [vmem:[%s2066 + $0x10] sm:$0xff] %v2044
        %2070 = vst [vmem:[%s2066 + $0x18] sm:$0xff] %v2047
        %2071 = vst [vmem:[%s2066 + $0x20] sm:$0xff] %v2052
        %2072 = vst [vmem:[%s2066 + $0x28] sm:$0xff] %v2055
        %2073 = vst [vmem:[%s2066 + $0x30] sm:$0xff] %v2060
        %2074 = vst [vmem:[%s2066 + $0x38] sm:$0xff] %v2063
        %v2075 = vmax.f32 %v1747, %v2036
        %v2076 = vmax.f32 %v1748, %v2039
        %v2077 = vmax.f32 %v1749, %v2044
        %v2078 = vmax.f32 %v1750, %v2047
        %v2079 = vmax.f32 %v1751, %v2052
        %v2080 = vmax.f32 %v1752, %v2055
        %v2081 = vmax.f32 %v1753, %v2060
        %v2082 = vmax.f32 %v1754, %v2063
        %s2083 = scalar_lea.vmem %s543, 128 [#allocation4]
        %v2084 = vld [vmem:[%s2083] sm:$0xf]
        %v2085 = vld [vmem:[%s2083 + $0x4] sm:$0xf]
        %v2086 = vld [vmem:[%s2083 + $0x8] sm:$0xf]
        %v2087 = vld [vmem:[%s2083 + $0xc] sm:$0xf]
        %v2088 = vld [vmem:[%s2083 + $0x10] sm:$0xf]
        %v2089 = vld [vmem:[%s2083 + $0x14] sm:$0xf]
        %v2090 = vld [vmem:[%s2083 + $0x18] sm:$0xf]
        %v2091 = vld [vmem:[%s2083 + $0x1c] sm:$0xf]
        %s2092 = scalar_lea.vmem %s4, 512
        %v2093 = vld [vmem:[%s2092] sm:$0xff]
        %v2094 = vld [vmem:[%s2092 + $0x8] sm:$0xff]
        %v2095 = vld [vmem:[%s2092 + $0x10] sm:$0xff]
        %v2096 = vld [vmem:[%s2092 + $0x18] sm:$0xff]
        %v2097 = vld [vmem:[%s2092 + $0x20] sm:$0xff]
        %v2098 = vld [vmem:[%s2092 + $0x28] sm:$0xff]
        %v2099 = vld [vmem:[%s2092 + $0x30] sm:$0xff]
        %v2100 = vld [vmem:[%s2092 + $0x38] sm:$0xff]
        %v2101 = vld [vmem:[%s2092 + $0x40] sm:$0xff]
        %v2102 = vld [vmem:[%s2092 + $0x48] sm:$0xff]
        %v2103 = vld [vmem:[%s2092 + $0x50] sm:$0xff]
        %v2104 = vld [vmem:[%s2092 + $0x58] sm:$0xff]
        %v2105 = vld [vmem:[%s2092 + $0x60] sm:$0xff]
        %v2106 = vld [vmem:[%s2092 + $0x68] sm:$0xff]
        %v2107 = vld [vmem:[%s2092 + $0x70] sm:$0xff]
        %v2108 = vld [vmem:[%s2092 + $0x78] sm:$0xff]
        %s2109 = scalar_lea.vmem %s5, 8
        %v2110 = vld [vmem:[%s2109] sm:$0x3]
        %v2112 = vlaneseq
        %v2113 = vshrl.u32 %v2112, 7
        %v2114 = vsub.s32 0, %v2113
        %v2115 = vrot.slane %v2110, %v2114
        %v2116 = vlaneseq
        %v2117 = vshrl.u32 %v2116, 7
        %v2118 = vsub.s32 1, %v2117
        %v2119 = vrot.slane %v2110, %v2118
        %v2130 = vunpack.c.l.b16 %v2084
        %v2131 = vunpack.c.l.b16 %v2085
        %v2132 = vunpack.c.l.b16 %v2086
        %v2133 = vunpack.c.l.b16 %v2087
        %v2134 = vunpack.c.l.b16 %v2088
        %v2135 = vunpack.c.l.b16 %v2089
        %v2136 = vunpack.c.l.b16 %v2090
        %v2137 = vunpack.c.l.b16 %v2091
        %v2138 = vpack.c.b16 %v2131, %v2130
        %v2139 = vpack.c.b16 %v2133, %v2132
        %v2140 = vpack.c.b16 %v2135, %v2134
        %v2141 = vpack.c.b16 %v2137, %v2136
        %v2162 = vunpack.c.l.b16 %v2093
        %v2163 = vunpack.c.h.b16 %v2093
        %v2164 = vunpack.c.l.b16 %v2094
        %v2165 = vunpack.c.h.b16 %v2094
        %v2166 = vunpack.c.l.b16 %v2095
        %v2167 = vunpack.c.h.b16 %v2095
        %v2168 = vunpack.c.l.b16 %v2096
        %v2169 = vunpack.c.h.b16 %v2096
        %v2170 = vunpack.c.l.b16 %v2097
        %v2171 = vunpack.c.h.b16 %v2097
        %v2172 = vunpack.c.l.b16 %v2098
        %v2173 = vunpack.c.h.b16 %v2098
        %v2174 = vunpack.c.l.b16 %v2099
        %v2175 = vunpack.c.h.b16 %v2099
        %v2176 = vunpack.c.l.b16 %v2100
        %v2177 = vunpack.c.h.b16 %v2100
        %v2178 = vunpack.c.l.b16 %v2101
        %v2179 = vunpack.c.h.b16 %v2101
        %v2180 = vunpack.c.l.b16 %v2102
        %v2181 = vunpack.c.h.b16 %v2102
        %v2182 = vunpack.c.l.b16 %v2103
        %v2183 = vunpack.c.h.b16 %v2103
        %v2184 = vunpack.c.l.b16 %v2104
        %v2185 = vunpack.c.h.b16 %v2104
        %v2186 = vunpack.c.l.b16 %v2105
        %v2187 = vunpack.c.h.b16 %v2105
        %v2188 = vunpack.c.l.b16 %v2106
        %v2189 = vunpack.c.h.b16 %v2106
        %v2190 = vunpack.c.l.b16 %v2107
        %v2191 = vunpack.c.h.b16 %v2107
        %v2192 = vunpack.c.l.b16 %v2108
        %v2193 = vunpack.c.h.b16 %v2108
        %v2194 = vpack.c.b16 %v2164, %v2162
        %v2195 = vpack.c.b16 %v2165, %v2163
        %v2196 = vpack.c.b16 %v2168, %v2166
        %v2197 = vpack.c.b16 %v2169, %v2167
        %v2198 = vpack.c.b16 %v2172, %v2170
        %v2199 = vpack.c.b16 %v2173, %v2171
        %v2200 = vpack.c.b16 %v2176, %v2174
        %v2201 = vpack.c.b16 %v2177, %v2175
        %v2202 = vpack.c.b16 %v2180, %v2178
        %v2203 = vpack.c.b16 %v2181, %v2179
        %v2204 = vpack.c.b16 %v2184, %v2182
        %v2205 = vpack.c.b16 %v2185, %v2183
        %v2206 = vpack.c.b16 %v2188, %v2186
        %v2207 = vpack.c.b16 %v2189, %v2187
        %v2208 = vpack.c.b16 %v2192, %v2190
        %v2209 = vpack.c.b16 %v2193, %v2191
        %2226 = vmatprep.subr.bf16.mxu0 %v2195
        %2227 = vmatpush1.bf16.msra.mxu0 %v2194
        %2228 = vmatprep.subr.bf16.mxu0 %v2197
        %2229 = vmatpush1.bf16.msra.mxu0 %v2196
        %2230 = vmatprep.subr.bf16.mxu0 %v2199
        %2231 = vmatpush1.bf16.msra.mxu0 %v2198
        %2232 = vmatprep.subr.bf16.mxu0 %v2201
        %2233 = vmatpush1.bf16.msra.mxu0 %v2200
        %2234 = vmatprep.subr.bf16.mxu0 %v2203
        %2235 = vmatpush1.bf16.msra.mxu0 %v2202
        %2236 = vmatprep.subr.bf16.mxu0 %v2205
        %2237 = vmatpush1.bf16.msra.mxu0 %v2204
        %2238 = vmatprep.subr.bf16.mxu0 %v2207
        %2239 = vmatpush1.bf16.msra.mxu0 %v2206
        %2240 = vmatprep.subr.bf16.mxu0 %v2209
        %2241 = vmatpush1.bf16.msra.mxu0 %v2208
        %2242 = vmatprep.subr.bf16.mxu0 0
        %2243 = vmatpush1.bf16.msra.mxu0 0
        %2244 = vmatprep.subr.bf16.mxu0 0
        %2245 = vmatpush1.bf16.msra.mxu0 0
        %2246 = vmatprep.subr.bf16.mxu0 0
        %2247 = vmatpush1.bf16.msra.mxu0 0
        %2248 = vmatprep.subr.bf16.mxu0 0
        %2249 = vmatpush1.bf16.msra.mxu0 0
        %2250 = vmatprep.subr.bf16.mxu0 0
        %2251 = vmatpush1.bf16.msra.mxu0 0
        %2252 = vmatprep.subr.bf16.mxu0 0
        %2253 = vmatpush1.bf16.msra.mxu0 0
        %2254 = vmatprep.subr.bf16.mxu0 0
        %2255 = vmatpush1.bf16.msra.mxu0 0
        %2256 = vmatprep.subr.bf16.mxu0 0
        %2257 = vmatpush1.bf16.msra.mxu0 0
        %2258 = vmatprep.mubr.bf16.mxu0 0
        %2259 = vmatmul.mubr.bf16.gmra.mrb[0].mxu0 %v2138
        %v2260 = vpop.f32.mrb[0].mxu0
        %v2261 = vadd.f32 %v2115, %v2260
        %v2262 = vpop.f32.mrb[0].mxu0
        %v2263 = vadd.f32 %v2119, %v2262
        %v2264 = vpop.f32.mrb[0].mxu0
        %v2265 = vadd.f32 %v2115, %v2264
        %v2266 = vpop.f32.mrb[0].mxu0
        %v2267 = vadd.f32 %v2119, %v2266
        %2268 = vmatprep.mubr.bf16.mxu0 0
        %2269 = vmatmul.mubr.bf16.gmra.mrb[0].mxu0 %v2139
        %v2270 = vpop.f32.mrb[0].mxu0
        %v2271 = vadd.f32 %v2115, %v2270
        %v2272 = vpop.f32.mrb[0].mxu0
        %v2273 = vadd.f32 %v2119, %v2272
        %v2274 = vpop.f32.mrb[0].mxu0
        %v2275 = vadd.f32 %v2115, %v2274
        %v2276 = vpop.f32.mrb[0].mxu0
        %v2277 = vadd.f32 %v2119, %v2276
        %2278 = vmatprep.mubr.bf16.mxu0 0
        %2279 = vmatmul.mubr.bf16.gmra.mrb[0].mxu0 %v2140
        %v2280 = vpop.f32.mrb[0].mxu0
        %v2281 = vadd.f32 %v2115, %v2280
        %v2282 = vpop.f32.mrb[0].mxu0
        %v2283 = vadd.f32 %v2119, %v2282
        %v2284 = vpop.f32.mrb[0].mxu0
        %v2285 = vadd.f32 %v2115, %v2284
        %v2286 = vpop.f32.mrb[0].mxu0
        %v2287 = vadd.f32 %v2119, %v2286
        %2288 = vmatprep.mubr.bf16.mxu0 0
        %2289 = vmatmul.mubr.bf16.gmra.mrb[0].mxu0 %v2141
        %v2290 = vpop.f32.mrb[0].mxu0
        %v2291 = vadd.f32 %v2115, %v2290
        %v2292 = vpop.f32.mrb[0].mxu0
        %v2293 = vadd.f32 %v2119, %v2292
        %v2294 = vpop.f32.mrb[0].mxu0
        %v2295 = vadd.f32 %v2115, %v2294
        %v2296 = vpop.f32.mrb[0].mxu0
        %v2297 = vadd.f32 %v2119, %v2296
        %2298 = vdwg.mxu0
        %v2299 = vpack.c.bf16 %v2267, %v2263
        %v2300 = vpack.c.bf16 %v2277, %v2273
        %v2301 = vpack.c.bf16 %v2287, %v2283
        %v2302 = vpack.c.bf16 %v2297, %v2293
        %s2303 = scalar_lea.vmem [#allocation2], 128
        %2304 = vst [vmem:[%s2303] sm:$0xff] %v2299
        %2305 = vst [vmem:[%s2303 + $0x8] sm:$0xff] %v2300
        %2306 = vst [vmem:[%s2303 + $0x10] sm:$0xff] %v2301
        %2307 = vst [vmem:[%s2303 + $0x18] sm:$0xff] %v2302
        %v2308 = vmul.f32 %v2261, %v691
        %v2309 = vmul.f32 %v2265, %v694
        %v2310 = vmul.f32 %v2271, %v699
        %v2311 = vmul.f32 %v2275, %v702
        %v2312 = vmul.f32 %v2281, %v707
        %v2313 = vmul.f32 %v2285, %v710
        %v2314 = vmul.f32 %v2291, %v715
        %v2315 = vmul.f32 %v2295, %v718
        %v2316 = vpack.c.bf16 %v2309, %v2308
        %v2317 = vpack.c.bf16 %v2311, %v2310
        %v2318 = vpack.c.bf16 %v2313, %v2312
        %v2319 = vpack.c.bf16 %v2315, %v2314
        %s2320 = scalar_lea.vmem %s7, 256
        %v2321 = vld [vmem:[%s2320] sm:$0xff]
        %v2322 = vld [vmem:[%s2320 + $0x8] sm:$0xff]
        %v2323 = vld [vmem:[%s2320 + $0x10] sm:$0xff]
        %v2324 = vld [vmem:[%s2320 + $0x18] sm:$0xff]
        %v2325 = vld [vmem:[%s2320 + $0x20] sm:$0xff]
        %v2326 = vld [vmem:[%s2320 + $0x28] sm:$0xff]
        %v2327 = vld [vmem:[%s2320 + $0x30] sm:$0xff]
        %v2328 = vld [vmem:[%s2320 + $0x38] sm:$0xff]
        %2329 = vmatprep.subr.bf16.mxu0 0
        %2330 = vmatpush1.bf16.msra.mxu0 %v1010
        %2331 = vmatprep.subr.bf16.mxu0 0
        %2332 = vmatpush1.bf16.msra.mxu0 %v1011
        %2333 = vmatprep.subr.bf16.mxu0 0
        %2334 = vmatpush1.bf16.msra.mxu0 %v1012
        %2335 = vmatprep.subr.bf16.mxu0 0
        %2336 = vmatpush1.bf16.msra.mxu0 %v1013
        %2337 = vmatprep.subr.bf16.mxu0 0
        %2338 = vmatpush1.bf16.msra.mxu0 %v1014
        %2339 = vmatprep.subr.bf16.mxu0 0
        %2340 = vmatpush1.bf16.msra.mxu0 %v1015
        %2341 = vmatprep.subr.bf16.mxu0 0
        %2342 = vmatpush1.bf16.msra.mxu0 %v1016
        %2343 = vmatprep.subr.bf16.mxu0 0
        %2344 = vmatpush1.bf16.msra.mxu0 %v1017
        %2345 = vmatprep.subr.bf16.mxu0 0
        %2346 = vmatpush1.bf16.msra.mxu0 0
        %2347 = vmatprep.subr.bf16.mxu0 0
        %2348 = vmatpush1.bf16.msra.mxu0 0
        %2349 = vmatprep.subr.bf16.mxu0 0
        %2350 = vmatpush1.bf16.msra.mxu0 0
        %2351 = vmatprep.subr.bf16.mxu0 0
        %2352 = vmatpush1.bf16.msra.mxu0 0
        %2353 = vmatprep.subr.bf16.mxu0 0
        %2354 = vmatpush1.bf16.msra.mxu0 0
        %2355 = vmatprep.subr.bf16.mxu0 0
        %2356 = vmatpush1.bf16.msra.mxu0 0
        %2357 = vmatprep.subr.bf16.mxu0 0
        %2358 = vmatpush1.bf16.msra.mxu0 0
        %2359 = vmatprep.subr.bf16.mxu0 0
        %2360 = vmatpush1.bf16.msra.mxu0 0
        %2361 = vmatprep.mubr.bf16.mxu0 0
        %2362 = vmatmul.mubr.bf16.gmra.mrb[0].mxu0 %v2316
        %v2363 = vpop.f32.mrb[0].mxu0
        %v2364 = vadd.f32 %v2321, %v2363
        %v2365 = vpop.f32.mrb[0].mxu0
        %v2366 = vpop.f32.mrb[0].mxu0
        %v2367 = vadd.f32 %v2322, %v2366
        %v2368 = vpop.f32.mrb[0].mxu0
        %2369 = vmatprep.mubr.bf16.mxu0 0
        %2370 = vmatmul.mubr.bf16.gmra.mrb[0].mxu0 %v2317
        %v2371 = vpop.f32.mrb[0].mxu0
        %v2372 = vadd.f32 %v2323, %v2371
        %v2373 = vpop.f32.mrb[0].mxu0
        %v2374 = vpop.f32.mrb[0].mxu0
        %v2375 = vadd.f32 %v2324, %v2374
        %v2376 = vpop.f32.mrb[0].mxu0
        %2377 = vmatprep.mubr.bf16.mxu0 0
        %2378 = vmatmul.mubr.bf16.gmra.mrb[0].mxu0 %v2318
        %v2379 = vpop.f32.mrb[0].mxu0
        %v2380 = vadd.f32 %v2325, %v2379
        %v2381 = vpop.f32.mrb[0].mxu0
        %v2382 = vpop.f32.mrb[0].mxu0
        %v2383 = vadd.f32 %v2326, %v2382
        %v2384 = vpop.f32.mrb[0].mxu0
        %2385 = vmatprep.mubr.bf16.mxu0 0
        %2386 = vmatmul.mubr.bf16.gmra.mrb[0].mxu0 %v2319
        %v2387 = vpop.f32.mrb[0].mxu0
        %v2388 = vadd.f32 %v2327, %v2387
        %v2389 = vpop.f32.mrb[0].mxu0
        %v2390 = vpop.f32.mrb[0].mxu0
        %v2391 = vadd.f32 %v2328, %v2390
        %v2392 = vpop.f32.mrb[0].mxu0
        %2393 = vdwg.mxu0
        %s2394 = scalar_lea.vmem [#allocation3], 256
        %2395 = vst [vmem:[%s2394] sm:$0xff] %v2364
        %2396 = vst [vmem:[%s2394 + $0x8] sm:$0xff] %v2367
        %2397 = vst [vmem:[%s2394 + $0x10] sm:$0xff] %v2372
        %2398 = vst [vmem:[%s2394 + $0x18] sm:$0xff] %v2375
        %2399 = vst [vmem:[%s2394 + $0x20] sm:$0xff] %v2380
        %2400 = vst [vmem:[%s2394 + $0x28] sm:$0xff] %v2383
        %2401 = vst [vmem:[%s2394 + $0x30] sm:$0xff] %v2388
        %2402 = vst [vmem:[%s2394 + $0x38] sm:$0xff] %v2391
        %v2403 = vmax.f32 %v2075, %v2364
        %v2404 = vmax.f32 %v2076, %v2367
        %v2405 = vmax.f32 %v2077, %v2372
        %v2406 = vmax.f32 %v2078, %v2375
        %v2407 = vmax.f32 %v2079, %v2380
        %v2408 = vmax.f32 %v2080, %v2383
        %v2409 = vmax.f32 %v2081, %v2388
        %v2410 = vmax.f32 %v2082, %v2391
        %s2411 = scalar_lea.vmem %s543, 160 [#allocation4]
        %v2412 = vld [vmem:[%s2411] sm:$0xf]
        %v2413 = vld [vmem:[%s2411 + $0x4] sm:$0xf]
        %v2414 = vld [vmem:[%s2411 + $0x8] sm:$0xf]
        %v2415 = vld [vmem:[%s2411 + $0xc] sm:$0xf]
        %v2416 = vld [vmem:[%s2411 + $0x10] sm:$0xf]
        %v2417 = vld [vmem:[%s2411 + $0x14] sm:$0xf]
        %v2418 = vld [vmem:[%s2411 + $0x18] sm:$0xf]
        %v2419 = vld [vmem:[%s2411 + $0x1c] sm:$0xf]
        %s2420 = scalar_lea.vmem %s4, 640
        %v2421 = vld [vmem:[%s2420] sm:$0xff]
        %v2422 = vld [vmem:[%s2420 + $0x8] sm:$0xff]
        %v2423 = vld [vmem:[%s2420 + $0x10] sm:$0xff]
        %v2424 = vld [vmem:[%s2420 + $0x18] sm:$0xff]
        %v2425 = vld [vmem:[%s2420 + $0x20] sm:$0xff]
        %v2426 = vld [vmem:[%s2420 + $0x28] sm:$0xff]
        %v2427 = vld [vmem:[%s2420 + $0x30] sm:$0xff]
        %v2428 = vld [vmem:[%s2420 + $0x38] sm:$0xff]
        %v2429 = vld [vmem:[%s2420 + $0x40] sm:$0xff]
        %v2430 = vld [vmem:[%s2420 + $0x48] sm:$0xff]
        %v2431 = vld [vmem:[%s2420 + $0x50] sm:$0xff]
        %v2432 = vld [vmem:[%s2420 + $0x58] sm:$0xff]
        %v2433 = vld [vmem:[%s2420 + $0x60] sm:$0xff]
        %v2434 = vld [vmem:[%s2420 + $0x68] sm:$0xff]
        %v2435 = vld [vmem:[%s2420 + $0x70] sm:$0xff]
        %v2436 = vld [vmem:[%s2420 + $0x78] sm:$0xff]
        %s2437 = scalar_lea.vmem %s5, 10
        %v2438 = vld [vmem:[%s2437] sm:$0x3]
        %v2440 = vlaneseq
        %v2441 = vshrl.u32 %v2440, 7
        %v2442 = vsub.s32 0, %v2441
        %v2443 = vrot.slane %v2438, %v2442
        %v2444 = vlaneseq
        %v2445 = vshrl.u32 %v2444, 7
        %v2446 = vsub.s32 1, %v2445
        %v2447 = vrot.slane %v2438, %v2446
        %v2458 = vunpack.c.l.b16 %v2412
        %v2459 = vunpack.c.l.b16 %v2413
        %v2460 = vunpack.c.l.b16 %v2414
        %v2461 = vunpack.c.l.b16 %v2415
        %v2462 = vunpack.c.l.b16 %v2416
        %v2463 = vunpack.c.l.b16 %v2417
        %v2464 = vunpack.c.l.b16 %v2418
        %v2465 = vunpack.c.l.b16 %v2419
        %v2466 = vpack.c.b16 %v2459, %v2458
        %v2467 = vpack.c.b16 %v2461, %v2460
        %v2468 = vpack.c.b16 %v2463, %v2462
        %v2469 = vpack.c.b16 %v2465, %v2464
        %v2490 = vunpack.c.l.b16 %v2421
        %v2491 = vunpack.c.h.b16 %v2421
        %v2492 = vunpack.c.l.b16 %v2422
        %v2493 = vunpack.c.h.b16 %v2422
        %v2494 = vunpack.c.l.b16 %v2423
        %v2495 = vunpack.c.h.b16 %v2423
        %v2496 = vunpack.c.l.b16 %v2424
        %v2497 = vunpack.c.h.b16 %v2424
        %v2498 = vunpack.c.l.b16 %v2425
        %v2499 = vunpack.c.h.b16 %v2425
        %v2500 = vunpack.c.l.b16 %v2426
        %v2501 = vunpack.c.h.b16 %v2426
        %v2502 = vunpack.c.l.b16 %v2427
        %v2503 = vunpack.c.h.b16 %v2427
        %v2504 = vunpack.c.l.b16 %v2428
        %v2505 = vunpack.c.h.b16 %v2428
        %v2506 = vunpack.c.l.b16 %v2429
        %v2507 = vunpack.c.h.b16 %v2429
        %v2508 = vunpack.c.l.b16 %v2430
        %v2509 = vunpack.c.h.b16 %v2430
        %v2510 = vunpack.c.l.b16 %v2431
        %v2511 = vunpack.c.h.b16 %v2431
        %v2512 = vunpack.c.l.b16 %v2432
        %v2513 = vunpack.c.h.b16 %v2432
        %v2514 = vunpack.c.l.b16 %v2433
        %v2515 = vunpack.c.h.b16 %v2433
        %v2516 = vunpack.c.l.b16 %v2434
        %v2517 = vunpack.c.h.b16 %v2434
        %v2518 = vunpack.c.l.b16 %v2435
        %v2519 = vunpack.c.h.b16 %v2435
        %v2520 = vunpack.c.l.b16 %v2436
        %v2521 = vunpack.c.h.b16 %v2436
        %v2522 = vpack.c.b16 %v2492, %v2490
        %v2523 = vpack.c.b16 %v2493, %v2491
        %v2524 = vpack.c.b16 %v2496, %v2494
        %v2525 = vpack.c.b16 %v2497, %v2495
        %v2526 = vpack.c.b16 %v2500, %v2498
        %v2527 = vpack.c.b16 %v2501, %v2499
        %v2528 = vpack.c.b16 %v2504, %v2502
        %v2529 = vpack.c.b16 %v2505, %v2503
        %v2530 = vpack.c.b16 %v2508, %v2506
        %v2531 = vpack.c.b16 %v2509, %v2507
        %v2532 = vpack.c.b16 %v2512, %v2510
        %v2533 = vpack.c.b16 %v2513, %v2511
        %v2534 = vpack.c.b16 %v2516, %v2514
        %v2535 = vpack.c.b16 %v2517, %v2515
        %v2536 = vpack.c.b16 %v2520, %v2518
        %v2537 = vpack.c.b16 %v2521, %v2519
        %2554 = vmatprep.subr.bf16.mxu0 %v2523
        %2555 = vmatpush1.bf16.msra.mxu0 %v2522
        %2556 = vmatprep.subr.bf16.mxu0 %v2525
        %2557 = vmatpush1.bf16.msra.mxu0 %v2524
        %2558 = vmatprep.subr.bf16.mxu0 %v2527
        %2559 = vmatpush1.bf16.msra.mxu0 %v2526
        %2560 = vmatprep.subr.bf16.mxu0 %v2529
        %2561 = vmatpush1.bf16.msra.mxu0 %v2528
        %2562 = vmatprep.subr.bf16.mxu0 %v2531
        %2563 = vmatpush1.bf16.msra.mxu0 %v2530
        %2564 = vmatprep.subr.bf16.mxu0 %v2533
        %2565 = vmatpush1.bf16.msra.mxu0 %v2532
        %2566 = vmatprep.subr.bf16.mxu0 %v2535
        %2567 = vmatpush1.bf16.msra.mxu0 %v2534
        %2568 = vmatprep.subr.bf16.mxu0 %v2537
        %2569 = vmatpush1.bf16.msra.mxu0 %v2536
        %2570 = vmatprep.subr.bf16.mxu0 0
        %2571 = vmatpush1.bf16.msra.mxu0 0
        %2572 = vmatprep.subr.bf16.mxu0 0
        %2573 = vmatpush1.bf16.msra.mxu0 0
        %2574 = vmatprep.subr.bf16.mxu0 0
        %2575 = vmatpush1.bf16.msra.mxu0 0
        %2576 = vmatprep.subr.bf16.mxu0 0
        %2577 = vmatpush1.bf16.msra.mxu0 0
        %2578 = vmatprep.subr.bf16.mxu0 0
        %2579 = vmatpush1.bf16.msra.mxu0 0
        %2580 = vmatprep.subr.bf16.mxu0 0
        %2581 = vmatpush1.bf16.msra.mxu0 0
        %2582 = vmatprep.subr.bf16.mxu0 0
        %2583 = vmatpush1.bf16.msra.mxu0 0
        %2584 = vmatprep.subr.bf16.mxu0 0
        %2585 = vmatpush1.bf16.msra.mxu0 0
        %2586 = vmatprep.mubr.bf16.mxu0 0
        %2587 = vmatmul.mubr.bf16.gmra.mrb[0].mxu0 %v2466
        %v2588 = vpop.f32.mrb[0].mxu0
        %v2589 = vadd.f32 %v2443, %v2588
        %v2590 = vpop.f32.mrb[0].mxu0
        %v2591 = vadd.f32 %v2447, %v2590
        %v2592 = vpop.f32.mrb[0].mxu0
        %v2593 = vadd.f32 %v2443, %v2592
        %v2594 = vpop.f32.mrb[0].mxu0
        %v2595 = vadd.f32 %v2447, %v2594
        %2596 = vmatprep.mubr.bf16.mxu0 0
        %2597 = vmatmul.mubr.bf16.gmra.mrb[0].mxu0 %v2467
        %v2598 = vpop.f32.mrb[0].mxu0
        %v2599 = vadd.f32 %v2443, %v2598
        %v2600 = vpop.f32.mrb[0].mxu0
        %v2601 = vadd.f32 %v2447, %v2600
        %v2602 = vpop.f32.mrb[0].mxu0
        %v2603 = vadd.f32 %v2443, %v2602
        %v2604 = vpop.f32.mrb[0].mxu0
        %v2605 = vadd.f32 %v2447, %v2604
        %2606 = vmatprep.mubr.bf16.mxu0 0
        %2607 = vmatmul.mubr.bf16.gmra.mrb[0].mxu0 %v2468
        %v2608 = vpop.f32.mrb[0].mxu0
        %v2609 = vadd.f32 %v2443, %v2608
        %v2610 = vpop.f32.mrb[0].mxu0
        %v2611 = vadd.f32 %v2447, %v2610
        %v2612 = vpop.f32.mrb[0].mxu0
        %v2613 = vadd.f32 %v2443, %v2612
        %v2614 = vpop.f32.mrb[0].mxu0
        %v2615 = vadd.f32 %v2447, %v2614
        %2616 = vmatprep.mubr.bf16.mxu0 0
        %2617 = vmatmul.mubr.bf16.gmra.mrb[0].mxu0 %v2469
        %v2618 = vpop.f32.mrb[0].mxu0
        %v2619 = vadd.f32 %v2443, %v2618
        %v2620 = vpop.f32.mrb[0].mxu0
        %v2621 = vadd.f32 %v2447, %v2620
        %v2622 = vpop.f32.mrb[0].mxu0
        %v2623 = vadd.f32 %v2443, %v2622
        %v2624 = vpop.f32.mrb[0].mxu0
        %v2625 = vadd.f32 %v2447, %v2624
        %2626 = vdwg.mxu0
        %v2627 = vpack.c.bf16 %v2595, %v2591
        %v2628 = vpack.c.bf16 %v2605, %v2601
        %v2629 = vpack.c.bf16 %v2615, %v2611
        %v2630 = vpack.c.bf16 %v2625, %v2621
        %s2631 = scalar_lea.vmem [#allocation2], 160
        %2632 = vst [vmem:[%s2631] sm:$0xff] %v2627
        %2633 = vst [vmem:[%s2631 + $0x8] sm:$0xff] %v2628
        %2634 = vst [vmem:[%s2631 + $0x10] sm:$0xff] %v2629
        %2635 = vst [vmem:[%s2631 + $0x18] sm:$0xff] %v2630
        %v2636 = vmul.f32 %v2589, %v691
        %v2637 = vmul.f32 %v2593, %v694
        %v2638 = vmul.f32 %v2599, %v699
        %v2639 = vmul.f32 %v2603, %v702
        %v2640 = vmul.f32 %v2609, %v707
        %v2641 = vmul.f32 %v2613, %v710
        %v2642 = vmul.f32 %v2619, %v715
        %v2643 = vmul.f32 %v2623, %v718
        %v2644 = vpack.c.bf16 %v2637, %v2636
        %v2645 = vpack.c.bf16 %v2639, %v2638
        %v2646 = vpack.c.bf16 %v2641, %v2640
        %v2647 = vpack.c.bf16 %v2643, %v2642
        %s2648 = scalar_lea.vmem %s7, 320
        %v2649 = vld [vmem:[%s2648] sm:$0xff]
        %v2650 = vld [vmem:[%s2648 + $0x8] sm:$0xff]
        %v2651 = vld [vmem:[%s2648 + $0x10] sm:$0xff]
        %v2652 = vld [vmem:[%s2648 + $0x18] sm:$0xff]
        %v2653 = vld [vmem:[%s2648 + $0x20] sm:$0xff]
        %v2654 = vld [vmem:[%s2648 + $0x28] sm:$0xff]
        %v2655 = vld [vmem:[%s2648 + $0x30] sm:$0xff]
        %v2656 = vld [vmem:[%s2648 + $0x38] sm:$0xff]
        %2657 = vmatprep.subr.bf16.mxu0 0
        %2658 = vmatpush1.bf16.msra.mxu0 %v1010
        %2659 = vmatprep.subr.bf16.mxu0 0
        %2660 = vmatpush1.bf16.msra.mxu0 %v1011
        %2661 = vmatprep.subr.bf16.mxu0 0
        %2662 = vmatpush1.bf16.msra.mxu0 %v1012
        %2663 = vmatprep.subr.bf16.mxu0 0
        %2664 = vmatpush1.bf16.msra.mxu0 %v1013
        %2665 = vmatprep.subr.bf16.mxu0 0
        %2666 = vmatpush1.bf16.msra.mxu0 %v1014
        %2667 = vmatprep.subr.bf16.mxu0 0
        %2668 = vmatpush1.bf16.msra.mxu0 %v1015
        %2669 = vmatprep.subr.bf16.mxu0 0
        %2670 = vmatpush1.bf16.msra.mxu0 %v1016
        %2671 = vmatprep.subr.bf16.mxu0 0
        %2672 = vmatpush1.bf16.msra.mxu0 %v1017
        %2673 = vmatprep.subr.bf16.mxu0 0
        %2674 = vmatpush1.bf16.msra.mxu0 0
        %2675 = vmatprep.subr.bf16.mxu0 0
        %2676 = vmatpush1.bf16.msra.mxu0 0
        %2677 = vmatprep.subr.bf16.mxu0 0
        %2678 = vmatpush1.bf16.msra.mxu0 0
        %2679 = vmatprep.subr.bf16.mxu0 0
        %2680 = vmatpush1.bf16.msra.mxu0 0
        %2681 = vmatprep.subr.bf16.mxu0 0
        %2682 = vmatpush1.bf16.msra.mxu0 0
        %2683 = vmatprep.subr.bf16.mxu0 0
        %2684 = vmatpush1.bf16.msra.mxu0 0
        %2685 = vmatprep.subr.bf16.mxu0 0
        %2686 = vmatpush1.bf16.msra.mxu0 0
        %2687 = vmatprep.subr.bf16.mxu0 0
        %2688 = vmatpush1.bf16.msra.mxu0 0
        %2689 = vmatprep.mubr.bf16.mxu0 0
        %2690 = vmatmul.mubr.bf16.gmra.mrb[0].mxu0 %v2644
        %v2691 = vpop.f32.mrb[0].mxu0
        %v2692 = vadd.f32 %v2649, %v2691
        %v2693 = vpop.f32.mrb[0].mxu0
        %v2694 = vpop.f32.mrb[0].mxu0
        %v2695 = vadd.f32 %v2650, %v2694
        %v2696 = vpop.f32.mrb[0].mxu0
        %2697 = vmatprep.mubr.bf16.mxu0 0
        %2698 = vmatmul.mubr.bf16.gmra.mrb[0].mxu0 %v2645
        %v2699 = vpop.f32.mrb[0].mxu0
        %v2700 = vadd.f32 %v2651, %v2699
        %v2701 = vpop.f32.mrb[0].mxu0
        %v2702 = vpop.f32.mrb[0].mxu0
        %v2703 = vadd.f32 %v2652, %v2702
        %v2704 = vpop.f32.mrb[0].mxu0
        %2705 = vmatprep.mubr.bf16.mxu0 0
        %2706 = vmatmul.mubr.bf16.gmra.mrb[0].mxu0 %v2646
        %v2707 = vpop.f32.mrb[0].mxu0
        %v2708 = vadd.f32 %v2653, %v2707
        %v2709 = vpop.f32.mrb[0].mxu0
        %v2710 = vpop.f32.mrb[0].mxu0
        %v2711 = vadd.f32 %v2654, %v2710
        %v2712 = vpop.f32.mrb[0].mxu0
        %2713 = vmatprep.mubr.bf16.mxu0 0
        %2714 = vmatmul.mubr.bf16.gmra.mrb[0].mxu0 %v2647
        %v2715 = vpop.f32.mrb[0].mxu0
        %v2716 = vadd.f32 %v2655, %v2715
        %v2717 = vpop.f32.mrb[0].mxu0
        %v2718 = vpop.f32.mrb[0].mxu0
        %v2719 = vadd.f32 %v2656, %v2718
        %v2720 = vpop.f32.mrb[0].mxu0
        %2721 = vdwg.mxu0
        %s2722 = scalar_lea.vmem [#allocation3], 320
        %2723 = vst [vmem:[%s2722] sm:$0xff] %v2692
        %2724 = vst [vmem:[%s2722 + $0x8] sm:$0xff] %v2695
        %2725 = vst [vmem:[%s2722 + $0x10] sm:$0xff] %v2700
        %2726 = vst [vmem:[%s2722 + $0x18] sm:$0xff] %v2703
        %2727 = vst [vmem:[%s2722 + $0x20] sm:$0xff] %v2708
        %2728 = vst [vmem:[%s2722 + $0x28] sm:$0xff] %v2711
        %2729 = vst [vmem:[%s2722 + $0x30] sm:$0xff] %v2716
        %2730 = vst [vmem:[%s2722 + $0x38] sm:$0xff] %v2719
        %v2731 = vmax.f32 %v2403, %v2692
        %v2732 = vmax.f32 %v2404, %v2695
        %v2733 = vmax.f32 %v2405, %v2700
        %v2734 = vmax.f32 %v2406, %v2703
        %v2735 = vmax.f32 %v2407, %v2708
        %v2736 = vmax.f32 %v2408, %v2711
        %v2737 = vmax.f32 %v2409, %v2716
        %v2738 = vmax.f32 %v2410, %v2719
        %s2739 = scalar_lea.vmem %s543, 192 [#allocation4]
        %v2740 = vld [vmem:[%s2739] sm:$0xf]
        %v2741 = vld [vmem:[%s2739 + $0x4] sm:$0xf]
        %v2742 = vld [vmem:[%s2739 + $0x8] sm:$0xf]
        %v2743 = vld [vmem:[%s2739 + $0xc] sm:$0xf]
        %v2744 = vld [vmem:[%s2739 + $0x10] sm:$0xf]
        %v2745 = vld [vmem:[%s2739 + $0x14] sm:$0xf]
        %v2746 = vld [vmem:[%s2739 + $0x18] sm:$0xf]
        %v2747 = vld [vmem:[%s2739 + $0x1c] sm:$0xf]
        %s2748 = scalar_lea.vmem %s4, 768
        %v2749 = vld [vmem:[%s2748] sm:$0xff]
        %v2750 = vld [vmem:[%s2748 + $0x8] sm:$0xff]
        %v2751 = vld [vmem:[%s2748 + $0x10] sm:$0xff]
        %v2752 = vld [vmem:[%s2748 + $0x18] sm:$0xff]
        %v2753 = vld [vmem:[%s2748 + $0x20] sm:$0xff]
        %v2754 = vld [vmem:[%s2748 + $0x28] sm:$0xff]
        %v2755 = vld [vmem:[%s2748 + $0x30] sm:$0xff]
        %v2756 = vld [vmem:[%s2748 + $0x38] sm:$0xff]
        %v2757 = vld [vmem:[%s2748 + $0x40] sm:$0xff]
        %v2758 = vld [vmem:[%s2748 + $0x48] sm:$0xff]
        %v2759 = vld [vmem:[%s2748 + $0x50] sm:$0xff]
        %v2760 = vld [vmem:[%s2748 + $0x58] sm:$0xff]
        %v2761 = vld [vmem:[%s2748 + $0x60] sm:$0xff]
        %v2762 = vld [vmem:[%s2748 + $0x68] sm:$0xff]
        %v2763 = vld [vmem:[%s2748 + $0x70] sm:$0xff]
        %v2764 = vld [vmem:[%s2748 + $0x78] sm:$0xff]
        %s2765 = scalar_lea.vmem %s5, 12
        %v2766 = vld [vmem:[%s2765] sm:$0x3]
        %v2768 = vlaneseq
        %v2769 = vshrl.u32 %v2768, 7
        %v2770 = vsub.s32 0, %v2769
        %v2771 = vrot.slane %v2766, %v2770
        %v2772 = vlaneseq
        %v2773 = vshrl.u32 %v2772, 7
        %v2774 = vsub.s32 1, %v2773
        %v2775 = vrot.slane %v2766, %v2774
        %v2786 = vunpack.c.l.b16 %v2740
        %v2787 = vunpack.c.l.b16 %v2741
        %v2788 = vunpack.c.l.b16 %v2742
        %v2789 = vunpack.c.l.b16 %v2743
        %v2790 = vunpack.c.l.b16 %v2744
        %v2791 = vunpack.c.l.b16 %v2745
        %v2792 = vunpack.c.l.b16 %v2746
        %v2793 = vunpack.c.l.b16 %v2747
        %v2794 = vpack.c.b16 %v2787, %v2786
        %v2795 = vpack.c.b16 %v2789, %v2788
        %v2796 = vpack.c.b16 %v2791, %v2790
        %v2797 = vpack.c.b16 %v2793, %v2792
        %v2818 = vunpack.c.l.b16 %v2749
        %v2819 = vunpack.c.h.b16 %v2749
        %v2820 = vunpack.c.l.b16 %v2750
        %v2821 = vunpack.c.h.b16 %v2750
        %v2822 = vunpack.c.l.b16 %v2751
        %v2823 = vunpack.c.h.b16 %v2751
        %v2824 = vunpack.c.l.b16 %v2752
        %v2825 = vunpack.c.h.b16 %v2752
        %v2826 = vunpack.c.l.b16 %v2753
        %v2827 = vunpack.c.h.b16 %v2753
        %v2828 = vunpack.c.l.b16 %v2754
        %v2829 = vunpack.c.h.b16 %v2754
        %v2830 = vunpack.c.l.b16 %v2755
        %v2831 = vunpack.c.h.b16 %v2755
        %v2832 = vunpack.c.l.b16 %v2756
        %v2833 = vunpack.c.h.b16 %v2756
        %v2834 = vunpack.c.l.b16 %v2757
        %v2835 = vunpack.c.h.b16 %v2757
        %v2836 = vunpack.c.l.b16 %v2758
        %v2837 = vunpack.c.h.b16 %v2758
        %v2838 = vunpack.c.l.b16 %v2759
        %v2839 = vunpack.c.h.b16 %v2759
        %v2840 = vunpack.c.l.b16 %v2760
        %v2841 = vunpack.c.h.b16 %v2760
        %v2842 = vunpack.c.l.b16 %v2761
        %v2843 = vunpack.c.h.b16 %v2761
        %v2844 = vunpack.c.l.b16 %v2762
        %v2845 = vunpack.c.h.b16 %v2762
        %v2846 = vunpack.c.l.b16 %v2763
        %v2847 = vunpack.c.h.b16 %v2763
        %v2848 = vunpack.c.l.b16 %v2764
        %v2849 = vunpack.c.h.b16 %v2764
        %v2850 = vpack.c.b16 %v2820, %v2818
        %v2851 = vpack.c.b16 %v2821, %v2819
        %v2852 = vpack.c.b16 %v2824, %v2822
        %v2853 = vpack.c.b16 %v2825, %v2823
        %v2854 = vpack.c.b16 %v2828, %v2826
        %v2855 = vpack.c.b16 %v2829, %v2827
        %v2856 = vpack.c.b16 %v2832, %v2830
        %v2857 = vpack.c.b16 %v2833, %v2831
        %v2858 = vpack.c.b16 %v2836, %v2834
        %v2859 = vpack.c.b16 %v2837, %v2835
        %v2860 = vpack.c.b16 %v2840, %v2838
        %v2861 = vpack.c.b16 %v2841, %v2839
        %v2862 = vpack.c.b16 %v2844, %v2842
        %v2863 = vpack.c.b16 %v2845, %v2843
        %v2864 = vpack.c.b16 %v2848, %v2846
        %v2865 = vpack.c.b16 %v2849, %v2847
        %2882 = vmatprep.subr.bf16.mxu0 %v2851
        %2883 = vmatpush1.bf16.msra.mxu0 %v2850
        %2884 = vmatprep.subr.bf16.mxu0 %v2853
        %2885 = vmatpush1.bf16.msra.mxu0 %v2852
        %2886 = vmatprep.subr.bf16.mxu0 %v2855
        %2887 = vmatpush1.bf16.msra.mxu0 %v2854
        %2888 = vmatprep.subr.bf16.mxu0 %v2857
        %2889 = vmatpush1.bf16.msra.mxu0 %v2856
        %2890 = vmatprep.subr.bf16.mxu0 %v2859
        %2891 = vmatpush1.bf16.msra.mxu0 %v2858
        %2892 = vmatprep.subr.bf16.mxu0 %v2861
        %2893 = vmatpush1.bf16.msra.mxu0 %v2860
        %2894 = vmatprep.subr.bf16.mxu0 %v2863
        %2895 = vmatpush1.bf16.msra.mxu0 %v2862
        %2896 = vmatprep.subr.bf16.mxu0 %v2865
        %2897 = vmatpush1.bf16.msra.mxu0 %v2864
        %2898 = vmatprep.subr.bf16.mxu0 0
        %2899 = vmatpush1.bf16.msra.mxu0 0
        %2900 = vmatprep.subr.bf16.mxu0 0
        %2901 = vmatpush1.bf16.msra.mxu0 0
        %2902 = vmatprep.subr.bf16.mxu0 0
        %2903 = vmatpush1.bf16.msra.mxu0 0
        %2904 = vmatprep.subr.bf16.mxu0 0
        %2905 = vmatpush1.bf16.msra.mxu0 0
        %2906 = vmatprep.subr.bf16.mxu0 0
        %2907 = vmatpush1.bf16.msra.mxu0 0
        %2908 = vmatprep.subr.bf16.mxu0 0
        %2909 = vmatpush1.bf16.msra.mxu0 0
        %2910 = vmatprep.subr.bf16.mxu0 0
        %2911 = vmatpush1.bf16.msra.mxu0 0
        %2912 = vmatprep.subr.bf16.mxu0 0
        %2913 = vmatpush1.bf16.msra.mxu0 0
        %2914 = vmatprep.mubr.bf16.mxu0 0
        %2915 = vmatmul.mubr.bf16.gmra.mrb[0].mxu0 %v2794
        %v2916 = vpop.f32.mrb[0].mxu0
        %v2917 = vadd.f32 %v2771, %v2916
        %v2918 = vpop.f32.mrb[0].mxu0
        %v2919 = vadd.f32 %v2775, %v2918
        %v2920 = vpop.f32.mrb[0].mxu0
        %v2921 = vadd.f32 %v2771, %v2920
        %v2922 = vpop.f32.mrb[0].mxu0
        %v2923 = vadd.f32 %v2775, %v2922
        %2924 = vmatprep.mubr.bf16.mxu0 0
        %2925 = vmatmul.mubr.bf16.gmra.mrb[0].mxu0 %v2795
        %v2926 = vpop.f32.mrb[0].mxu0
        %v2927 = vadd.f32 %v2771, %v2926
        %v2928 = vpop.f32.mrb[0].mxu0
        %v2929 = vadd.f32 %v2775, %v2928
        %v2930 = vpop.f32.mrb[0].mxu0
        %v2931 = vadd.f32 %v2771, %v2930
        %v2932 = vpop.f32.mrb[0].mxu0
        %v2933 = vadd.f32 %v2775, %v2932
        %2934 = vmatprep.mubr.bf16.mxu0 0
        %2935 = vmatmul.mubr.bf16.gmra.mrb[0].mxu0 %v2796
        %v2936 = vpop.f32.mrb[0].mxu0
        %v2937 = vadd.f32 %v2771, %v2936
        %v2938 = vpop.f32.mrb[0].mxu0
        %v2939 = vadd.f32 %v2775, %v2938
        %v2940 = vpop.f32.mrb[0].mxu0
        %v2941 = vadd.f32 %v2771, %v2940
        %v2942 = vpop.f32.mrb[0].mxu0
        %v2943 = vadd.f32 %v2775, %v2942
        %2944 = vmatprep.mubr.bf16.mxu0 0
        %2945 = vmatmul.mubr.bf16.gmra.mrb[0].mxu0 %v2797
        %v2946 = vpop.f32.mrb[0].mxu0
        %v2947 = vadd.f32 %v2771, %v2946
        %v2948 = vpop.f32.mrb[0].mxu0
        %v2949 = vadd.f32 %v2775, %v2948
        %v2950 = vpop.f32.mrb[0].mxu0
        %v2951 = vadd.f32 %v2771, %v2950
        %v2952 = vpop.f32.mrb[0].mxu0
        %v2953 = vadd.f32 %v2775, %v2952
        %2954 = vdwg.mxu0
        %v2955 = vpack.c.bf16 %v2923, %v2919
        %v2956 = vpack.c.bf16 %v2933, %v2929
        %v2957 = vpack.c.bf16 %v2943, %v2939
        %v2958 = vpack.c.bf16 %v2953, %v2949
        %s2959 = scalar_lea.vmem [#allocation2], 192
        %2960 = vst [vmem:[%s2959] sm:$0xff] %v2955
        %2961 = vst [vmem:[%s2959 + $0x8] sm:$0xff] %v2956
        %2962 = vst [vmem:[%s2959 + $0x10] sm:$0xff] %v2957
        %2963 = vst [vmem:[%s2959 + $0x18] sm:$0xff] %v2958
        %v2964 = vmul.f32 %v2917, %v691
        %v2965 = vmul.f32 %v2921, %v694
        %v2966 = vmul.f32 %v2927, %v699
        %v2967 = vmul.f32 %v2931, %v702
        %v2968 = vmul.f32 %v2937, %v707
        %v2969 = vmul.f32 %v2941, %v710
        %v2970 = vmul.f32 %v2947, %v715
        %v2971 = vmul.f32 %v2951, %v718
        %v2972 = vpack.c.bf16 %v2965, %v2964
        %v2973 = vpack.c.bf16 %v2967, %v2966
        %v2974 = vpack.c.bf16 %v2969, %v2968
        %v2975 = vpack.c.bf16 %v2971, %v2970
        %s2976 = scalar_lea.vmem %s7, 384
        %v2977 = vld [vmem:[%s2976] sm:$0xff]
        %v2978 = vld [vmem:[%s2976 + $0x8] sm:$0xff]
        %v2979 = vld [vmem:[%s2976 + $0x10] sm:$0xff]
        %v2980 = vld [vmem:[%s2976 + $0x18] sm:$0xff]
        %v2981 = vld [vmem:[%s2976 + $0x20] sm:$0xff]
        %v2982 = vld [vmem:[%s2976 + $0x28] sm:$0xff]
        %v2983 = vld [vmem:[%s2976 + $0x30] sm:$0xff]
        %v2984 = vld [vmem:[%s2976 + $0x38] sm:$0xff]
        %2985 = vmatprep.subr.bf16.mxu0 0
        %2986 = vmatpush1.bf16.msra.mxu0 %v1010
        %2987 = vmatprep.subr.bf16.mxu0 0
        %2988 = vmatpush1.bf16.msra.mxu0 %v1011
        %2989 = vmatprep.subr.bf16.mxu0 0
        %2990 = vmatpush1.bf16.msra.mxu0 %v1012
        %2991 = vmatprep.subr.bf16.mxu0 0
        %2992 = vmatpush1.bf16.msra.mxu0 %v1013
        %2993 = vmatprep.subr.bf16.mxu0 0
        %2994 = vmatpush1.bf16.msra.mxu0 %v1014
        %2995 = vmatprep.subr.bf16.mxu0 0
        %2996 = vmatpush1.bf16.msra.mxu0 %v1015
        %2997 = vmatprep.subr.bf16.mxu0 0
        %2998 = vmatpush1.bf16.msra.mxu0 %v1016
        %2999 = vmatprep.subr.bf16.mxu0 0
        %3000 = vmatpush1.bf16.msra.mxu0 %v1017
        %3001 = vmatprep.subr.bf16.mxu0 0
        %3002 = vmatpush1.bf16.msra.mxu0 0
        %3003 = vmatprep.subr.bf16.mxu0 0
        %3004 = vmatpush1.bf16.msra.mxu0 0
        %3005 = vmatprep.subr.bf16.mxu0 0
        %3006 = vmatpush1.bf16.msra.mxu0 0
        %3007 = vmatprep.subr.bf16.mxu0 0
        %3008 = vmatpush1.bf16.msra.mxu0 0
        %3009 = vmatprep.subr.bf16.mxu0 0
        %3010 = vmatpush1.bf16.msra.mxu0 0
        %3011 = vmatprep.subr.bf16.mxu0 0
        %3012 = vmatpush1.bf16.msra.mxu0 0
        %3013 = vmatprep.subr.bf16.mxu0 0
        %3014 = vmatpush1.bf16.msra.mxu0 0
        %3015 = vmatprep.subr.bf16.mxu0 0
        %3016 = vmatpush1.bf16.msra.mxu0 0
        %3017 = vmatprep.mubr.bf16.mxu0 0
        %3018 = vmatmul.mubr.bf16.gmra.mrb[0].mxu0 %v2972
        %v3019 = vpop.f32.mrb[0].mxu0
        %v3020 = vadd.f32 %v2977, %v3019
        %v3021 = vpop.f32.mrb[0].mxu0
        %v3022 = vpop.f32.mrb[0].mxu0
        %v3023 = vadd.f32 %v2978, %v3022
        %v3024 = vpop.f32.mrb[0].mxu0
        %3025 = vmatprep.mubr.bf16.mxu0 0
        %3026 = vmatmul.mubr.bf16.gmra.mrb[0].mxu0 %v2973
        %v3027 = vpop.f32.mrb[0].mxu0
        %v3028 = vadd.f32 %v2979, %v3027
        %v3029 = vpop.f32.mrb[0].mxu0
        %v3030 = vpop.f32.mrb[0].mxu0
        %v3031 = vadd.f32 %v2980, %v3030
        %v3032 = vpop.f32.mrb[0].mxu0
        %3033 = vmatprep.mubr.bf16.mxu0 0
        %3034 = vmatmul.mubr.bf16.gmra.mrb[0].mxu0 %v2974
        %v3035 = vpop.f32.mrb[0].mxu0
        %v3036 = vadd.f32 %v2981, %v3035
        %v3037 = vpop.f32.mrb[0].mxu0
        %v3038 = vpop.f32.mrb[0].mxu0
        %v3039 = vadd.f32 %v2982, %v3038
        %v3040 = vpop.f32.mrb[0].mxu0
        %3041 = vmatprep.mubr.bf16.mxu0 0
        %3042 = vmatmul.mubr.bf16.gmra.mrb[0].mxu0 %v2975
        %v3043 = vpop.f32.mrb[0].mxu0
        %v3044 = vadd.f32 %v2983, %v3043
        %v3045 = vpop.f32.mrb[0].mxu0
        %v3046 = vpop.f32.mrb[0].mxu0
        %v3047 = vadd.f32 %v2984, %v3046
        %v3048 = vpop.f32.mrb[0].mxu0
        %3049 = vdwg.mxu0
        %s3050 = scalar_lea.vmem [#allocation3], 384
        %3051 = vst [vmem:[%s3050] sm:$0xff] %v3020
        %3052 = vst [vmem:[%s3050 + $0x8] sm:$0xff] %v3023
        %3053 = vst [vmem:[%s3050 + $0x10] sm:$0xff] %v3028
        %3054 = vst [vmem:[%s3050 + $0x18] sm:$0xff] %v3031
        %3055 = vst [vmem:[%s3050 + $0x20] sm:$0xff] %v3036
        %3056 = vst [vmem:[%s3050 + $0x28] sm:$0xff] %v3039
        %3057 = vst [vmem:[%s3050 + $0x30] sm:$0xff] %v3044
        %3058 = vst [vmem:[%s3050 + $0x38] sm:$0xff] %v3047
        %v3059 = vmax.f32 %v2731, %v3020
        %v3060 = vmax.f32 %v2732, %v3023
        %v3061 = vmax.f32 %v2733, %v3028
        %v3062 = vmax.f32 %v2734, %v3031
        %v3063 = vmax.f32 %v2735, %v3036
        %v3064 = vmax.f32 %v2736, %v3039
        %v3065 = vmax.f32 %v2737, %v3044
        %v3066 = vmax.f32 %v2738, %v3047
        %3067 = vrot.lane.b32.xlu0 %v3059, 32
        %v3068 = vpop.permute.xlu0 %3067
        %3069 = vrot.lane.b32.xlu0 %v3060, 32
        %v3070 = vpop.permute.xlu0 %3069
        %3071 = vrot.lane.b32.xlu0 %v3061, 32
        %v3072 = vpop.permute.xlu0 %3071
        %3073 = vrot.lane.b32.xlu0 %v3062, 32
        %v3074 = vpop.permute.xlu0 %3073
        %3075 = vrot.lane.b32.xlu0 %v3063, 32
        %v3076 = vpop.permute.xlu0 %3075
        %3077 = vrot.lane.b32.xlu0 %v3064, 32
        %v3078 = vpop.permute.xlu0 %3077
        %3079 = vrot.lane.b32.xlu0 %v3065, 32
        %v3080 = vpop.permute.xlu0 %3079
        %3081 = vrot.lane.b32.xlu0 %v3066, 32
        %v3082 = vpop.permute.xlu0 %3081
        %v3083 = vmax.f32 %v3059, %v3068
        %v3084 = vmax.f32 %v3060, %v3070
        %v3085 = vmax.f32 %v3061, %v3072
        %v3086 = vmax.f32 %v3062, %v3074
        %v3087 = vmax.f32 %v3063, %v3076
        %v3088 = vmax.f32 %v3064, %v3078
        %v3089 = vmax.f32 %v3065, %v3080
        %v3090 = vmax.f32 %v3066, %v3082
        %3091 = vrot.lane.b32.xlu0 %v3083, 64
        %v3092 = vpop.permute.xlu0 %3091
        %3093 = vrot.lane.b32.xlu0 %v3084, 64
        %v3094 = vpop.permute.xlu0 %3093
        %3095 = vrot.lane.b32.xlu0 %v3085, 64
        %v3096 = vpop.permute.xlu0 %3095
        %3097 = vrot.lane.b32.xlu0 %v3086, 64
        %v3098 = vpop.permute.xlu0 %3097
        %3099 = vrot.lane.b32.xlu0 %v3087, 64
        %v3100 = vpop.permute.xlu0 %3099
        %3101 = vrot.lane.b32.xlu0 %v3088, 64
        %v3102 = vpop.permute.xlu0 %3101
        %3103 = vrot.lane.b32.xlu0 %v3089, 64
        %v3104 = vpop.permute.xlu0 %3103
        %3105 = vrot.lane.b32.xlu0 %v3090, 64
        %v3106 = vpop.permute.xlu0 %3105
        %v3107 = vmax.f32 %v3083, %v3092
        %v3108 = vmax.f32 %v3084, %v3094
        %v3109 = vmax.f32 %v3085, %v3096
        %v3110 = vmax.f32 %v3086, %v3098
        %v3111 = vmax.f32 %v3087, %v3100
        %v3112 = vmax.f32 %v3088, %v3102
        %v3113 = vmax.f32 %v3089, %v3104
        %v3114 = vmax.f32 %v3090, %v3106
        %v3115 = vld [vmem:[#allocation3] sm:$0xff]
        %v3116 = vld [vmem:[#allocation3 + $0x8] sm:$0xff]
        %v3117 = vld [vmem:[#allocation3 + $0x10] sm:$0xff]
        %v3118 = vld [vmem:[#allocation3 + $0x18] sm:$0xff]
        %v3119 = vld [vmem:[#allocation3 + $0x20] sm:$0xff]
        %v3120 = vld [vmem:[#allocation3 + $0x28] sm:$0xff]
        %v3121 = vld [vmem:[#allocation3 + $0x30] sm:$0xff]
        %v3122 = vld [vmem:[#allocation3 + $0x38] sm:$0xff]
        %v3123 = vsub.f32 %v3115, %v3107
        %v3124 = vsub.f32 %v3116, %v3108
        %v3125 = vsub.f32 %v3117, %v3109
        %v3126 = vsub.f32 %v3118, %v3110
        %v3127 = vsub.f32 %v3119, %v3111
        %v3128 = vsub.f32 %v3120, %v3112
        %v3129 = vsub.f32 %v3121, %v3113
        %v3130 = vsub.f32 %v3122, %v3114
        %v3131 = vmul.f32 %v3123, 1.442695
        %v3132 = vpow.pop %v3131
        %v3133 = vmul.f32 %v3124, 1.442695
        %v3134 = vpow.pop %v3133
        %v3135 = vmul.f32 %v3125, 1.442695
        %v3136 = vpow.pop %v3135
        %v3137 = vmul.f32 %v3126, 1.442695
        %v3138 = vpow.pop %v3137
        %v3139 = vmul.f32 %v3127, 1.442695
        %v3140 = vpow.pop %v3139
        %v3141 = vmul.f32 %v3128, 1.442695
        %v3142 = vpow.pop %v3141
        %v3143 = vmul.f32 %v3129, 1.442695
        %v3144 = vpow.pop %v3143
        %v3145 = vmul.f32 %v3130, 1.442695
        %v3146 = vpow.pop %v3145
        %v3147 = vadd.f32 %v3132, 0.0
        %v3148 = vadd.f32 %v3134, 0.0
        %v3149 = vadd.f32 %v3136, 0.0
        %v3150 = vadd.f32 %v3138, 0.0
        %v3151 = vadd.f32 %v3140, 0.0
        %v3152 = vadd.f32 %v3142, 0.0
        %v3153 = vadd.f32 %v3144, 0.0
        %v3154 = vadd.f32 %v3146, 0.0
        %v3155 = vld [vmem:[#allocation2] sm:$0xff]
        %v3156 = vld [vmem:[#allocation2 + $0x8] sm:$0xff]
        %v3157 = vld [vmem:[#allocation2 + $0x10] sm:$0xff]
        %v3158 = vld [vmem:[#allocation2 + $0x18] sm:$0xff]
        %v3159 = vunpack.c.l.bf16 %v3155
        %v3160 = vunpack.c.h.bf16 %v3155
        %v3161 = vunpack.c.l.bf16 %v3156
        %v3162 = vunpack.c.h.bf16 %v3156
        %v3163 = vunpack.c.l.bf16 %v3157
        %v3164 = vunpack.c.h.bf16 %v3157
        %v3165 = vunpack.c.l.bf16 %v3158
        %v3166 = vunpack.c.h.bf16 %v3158
        %v3167 = vmul.f32 %v3132, %v3159
        %v3168 = vmul.f32 %v3134, %v3160
        %v3169 = vmul.f32 %v3136, %v3161
        %v3170 = vmul.f32 %v3138, %v3162
        %v3171 = vmul.f32 %v3140, %v3163
        %v3172 = vmul.f32 %v3142, %v3164
        %v3173 = vmul.f32 %v3144, %v3165
        %v3174 = vmul.f32 %v3146, %v3166
        %v3175 = vadd.f32 %v3167, 0.0
        %v3176 = vadd.f32 %v3168, 0.0
        %v3177 = vadd.f32 %v3169, 0.0
        %v3178 = vadd.f32 %v3170, 0.0
        %v3179 = vadd.f32 %v3171, 0.0
        %v3180 = vadd.f32 %v3172, 0.0
        %v3181 = vadd.f32 %v3173, 0.0
        %v3182 = vadd.f32 %v3174, 0.0
        %v3183 = vld [vmem:[%s1410] sm:$0xff]
        %v3184 = vld [vmem:[%s1410 + $0x8] sm:$0xff]
        %v3185 = vld [vmem:[%s1410 + $0x10] sm:$0xff]
        %v3186 = vld [vmem:[%s1410 + $0x18] sm:$0xff]
        %v3187 = vld [vmem:[%s1410 + $0x20] sm:$0xff]
        %v3188 = vld [vmem:[%s1410 + $0x28] sm:$0xff]
        %v3189 = vld [vmem:[%s1410 + $0x30] sm:$0xff]
        %v3190 = vld [vmem:[%s1410 + $0x38] sm:$0xff]
        %v3191 = vsub.f32 %v3183, %v3107
        %v3192 = vsub.f32 %v3184, %v3108
        %v3193 = vsub.f32 %v3185, %v3109
        %v3194 = vsub.f32 %v3186, %v3110
        %v3195 = vsub.f32 %v3187, %v3111
        %v3196 = vsub.f32 %v3188, %v3112
        %v3197 = vsub.f32 %v3189, %v3113
        %v3198 = vsub.f32 %v3190, %v3114
        %v3199 = vmul.f32 %v3191, 1.442695
        %v3200 = vpow.pop %v3199
        %v3201 = vmul.f32 %v3192, 1.442695
        %v3202 = vpow.pop %v3201
        %v3203 = vmul.f32 %v3193, 1.442695
        %v3204 = vpow.pop %v3203
        %v3205 = vmul.f32 %v3194, 1.442695
        %v3206 = vpow.pop %v3205
        %v3207 = vmul.f32 %v3195, 1.442695
        %v3208 = vpow.pop %v3207
        %v3209 = vmul.f32 %v3196, 1.442695
        %v3210 = vpow.pop %v3209
        %v3211 = vmul.f32 %v3197, 1.442695
        %v3212 = vpow.pop %v3211
        %v3213 = vmul.f32 %v3198, 1.442695
        %v3214 = vpow.pop %v3213
        %v3215 = vadd.f32 %v3147, %v3200
        %v3216 = vadd.f32 %v3148, %v3202
        %v3217 = vadd.f32 %v3149, %v3204
        %v3218 = vadd.f32 %v3150, %v3206
        %v3219 = vadd.f32 %v3151, %v3208
        %v3220 = vadd.f32 %v3152, %v3210
        %v3221 = vadd.f32 %v3153, %v3212
        %v3222 = vadd.f32 %v3154, %v3214
        %v3223 = vld [vmem:[%s1319] sm:$0xff]
        %v3224 = vld [vmem:[%s1319 + $0x8] sm:$0xff]
        %v3225 = vld [vmem:[%s1319 + $0x10] sm:$0xff]
        %v3226 = vld [vmem:[%s1319 + $0x18] sm:$0xff]
        %v3227 = vunpack.c.l.bf16 %v3223
        %v3228 = vunpack.c.h.bf16 %v3223
        %v3229 = vunpack.c.l.bf16 %v3224
        %v3230 = vunpack.c.h.bf16 %v3224
        %v3231 = vunpack.c.l.bf16 %v3225
        %v3232 = vunpack.c.h.bf16 %v3225
        %v3233 = vunpack.c.l.bf16 %v3226
        %v3234 = vunpack.c.h.bf16 %v3226
        %v3235 = vmul.f32 %v3200, %v3227
        %v3236 = vmul.f32 %v3202, %v3228
        %v3237 = vmul.f32 %v3204, %v3229
        %v3238 = vmul.f32 %v3206, %v3230
        %v3239 = vmul.f32 %v3208, %v3231
        %v3240 = vmul.f32 %v3210, %v3232
        %v3241 = vmul.f32 %v3212, %v3233
        %v3242 = vmul.f32 %v3214, %v3234
        %v3243 = vadd.f32 %v3175, %v3235
        %v3244 = vadd.f32 %v3176, %v3236
        %v3245 = vadd.f32 %v3177, %v3237
        %v3246 = vadd.f32 %v3178, %v3238
        %v3247 = vadd.f32 %v3179, %v3239
        %v3248 = vadd.f32 %v3180, %v3240
        %v3249 = vadd.f32 %v3181, %v3241
        %v3250 = vadd.f32 %v3182, %v3242
        %v3251 = vld [vmem:[%s1738] sm:$0xff]
        %v3252 = vld [vmem:[%s1738 + $0x8] sm:$0xff]
        %v3253 = vld [vmem:[%s1738 + $0x10] sm:$0xff]
        %v3254 = vld [vmem:[%s1738 + $0x18] sm:$0xff]
        %v3255 = vld [vmem:[%s1738 + $0x20] sm:$0xff]
        %v3256 = vld [vmem:[%s1738 + $0x28] sm:$0xff]
        %v3257 = vld [vmem:[%s1738 + $0x30] sm:$0xff]
        %v3258 = vld [vmem:[%s1738 + $0x38] sm:$0xff]
        %v3259 = vsub.f32 %v3251, %v3107
        %v3260 = vsub.f32 %v3252, %v3108
        %v3261 = vsub.f32 %v3253, %v3109
        %v3262 = vsub.f32 %v3254, %v3110
        %v3263 = vsub.f32 %v3255, %v3111
        %v3264 = vsub.f32 %v3256, %v3112
        %v3265 = vsub.f32 %v3257, %v3113
        %v3266 = vsub.f32 %v3258, %v3114
        %v3267 = vmul.f32 %v3259, 1.442695
        %v3268 = vpow.pop %v3267
        %v3269 = vmul.f32 %v3260, 1.442695
        %v3270 = vpow.pop %v3269
        %v3271 = vmul.f32 %v3261, 1.442695
        %v3272 = vpow.pop %v3271
        %v3273 = vmul.f32 %v3262, 1.442695
        %v3274 = vpow.pop %v3273
        %v3275 = vmul.f32 %v3263, 1.442695
        %v3276 = vpow.pop %v3275
        %v3277 = vmul.f32 %v3264, 1.442695
        %v3278 = vpow.pop %v3277
        %v3279 = vmul.f32 %v3265, 1.442695
        %v3280 = vpow.pop %v3279
        %v3281 = vmul.f32 %v3266, 1.442695
        %v3282 = vpow.pop %v3281
        %v3283 = vadd.f32 %v3215, %v3268
        %v3284 = vadd.f32 %v3216, %v3270
        %v3285 = vadd.f32 %v3217, %v3272
        %v3286 = vadd.f32 %v3218, %v3274
        %v3287 = vadd.f32 %v3219, %v3276
        %v3288 = vadd.f32 %v3220, %v3278
        %v3289 = vadd.f32 %v3221, %v3280
        %v3290 = vadd.f32 %v3222, %v3282
        %v3291 = vld [vmem:[%s1647] sm:$0xff]
        %v3292 = vld [vmem:[%s1647 + $0x8] sm:$0xff]
        %v3293 = vld [vmem:[%s1647 + $0x10] sm:$0xff]
        %v3294 = vld [vmem:[%s1647 + $0x18] sm:$0xff]
        %v3295 = vunpack.c.l.bf16 %v3291
        %v3296 = vunpack.c.h.bf16 %v3291
        %v3297 = vunpack.c.l.bf16 %v3292
        %v3298 = vunpack.c.h.bf16 %v3292
        %v3299 = vunpack.c.l.bf16 %v3293
        %v3300 = vunpack.c.h.bf16 %v3293
        %v3301 = vunpack.c.l.bf16 %v3294
        %v3302 = vunpack.c.h.bf16 %v3294
        %v3303 = vmul.f32 %v3268, %v3295
        %v3304 = vmul.f32 %v3270, %v3296
        %v3305 = vmul.f32 %v3272, %v3297
        %v3306 = vmul.f32 %v3274, %v3298
        %v3307 = vmul.f32 %v3276, %v3299
        %v3308 = vmul.f32 %v3278, %v3300
        %v3309 = vmul.f32 %v3280, %v3301
        %v3310 = vmul.f32 %v3282, %v3302
        %v3311 = vadd.f32 %v3243, %v3303
        %v3312 = vadd.f32 %v3244, %v3304
        %v3313 = vadd.f32 %v3245, %v3305
        %v3314 = vadd.f32 %v3246, %v3306
        %v3315 = vadd.f32 %v3247, %v3307
        %v3316 = vadd.f32 %v3248, %v3308
        %v3317 = vadd.f32 %v3249, %v3309
        %v3318 = vadd.f32 %v3250, %v3310
        %v3319 = vld [vmem:[%s2066] sm:$0xff]
        %v3320 = vld [vmem:[%s2066 + $0x8] sm:$0xff]
        %v3321 = vld [vmem:[%s2066 + $0x10] sm:$0xff]
        %v3322 = vld [vmem:[%s2066 + $0x18] sm:$0xff]
        %v3323 = vld [vmem:[%s2066 + $0x20] sm:$0xff]
        %v3324 = vld [vmem:[%s2066 + $0x28] sm:$0xff]
        %v3325 = vld [vmem:[%s2066 + $0x30] sm:$0xff]
        %v3326 = vld [vmem:[%s2066 + $0x38] sm:$0xff]
        %v3327 = vsub.f32 %v3319, %v3107
        %v3328 = vsub.f32 %v3320, %v3108
        %v3329 = vsub.f32 %v3321, %v3109
        %v3330 = vsub.f32 %v3322, %v3110
        %v3331 = vsub.f32 %v3323, %v3111
        %v3332 = vsub.f32 %v3324, %v3112
        %v3333 = vsub.f32 %v3325, %v3113
        %v3334 = vsub.f32 %v3326, %v3114
        %v3335 = vmul.f32 %v3327, 1.442695
        %v3336 = vpow.pop %v3335
        %v3337 = vmul.f32 %v3328, 1.442695
        %v3338 = vpow.pop %v3337
        %v3339 = vmul.f32 %v3329, 1.442695
        %v3340 = vpow.pop %v3339
        %v3341 = vmul.f32 %v3330, 1.442695
        %v3342 = vpow.pop %v3341
        %v3343 = vmul.f32 %v3331, 1.442695
        %v3344 = vpow.pop %v3343
        %v3345 = vmul.f32 %v3332, 1.442695
        %v3346 = vpow.pop %v3345
        %v3347 = vmul.f32 %v3333, 1.442695
        %v3348 = vpow.pop %v3347
        %v3349 = vmul.f32 %v3334, 1.442695
        %v3350 = vpow.pop %v3349
        %v3351 = vadd.f32 %v3283, %v3336
        %v3352 = vadd.f32 %v3284, %v3338
        %v3353 = vadd.f32 %v3285, %v3340
        %v3354 = vadd.f32 %v3286, %v3342
        %v3355 = vadd.f32 %v3287, %v3344
        %v3356 = vadd.f32 %v3288, %v3346
        %v3357 = vadd.f32 %v3289, %v3348
        %v3358 = vadd.f32 %v3290, %v3350
        %v3359 = vld [vmem:[%s1975] sm:$0xff]
        %v3360 = vld [vmem:[%s1975 + $0x8] sm:$0xff]
        %v3361 = vld [vmem:[%s1975 + $0x10] sm:$0xff]
        %v3362 = vld [vmem:[%s1975 + $0x18] sm:$0xff]
        %v3363 = vunpack.c.l.bf16 %v3359
        %v3364 = vunpack.c.h.bf16 %v3359
        %v3365 = vunpack.c.l.bf16 %v3360
        %v3366 = vunpack.c.h.bf16 %v3360
        %v3367 = vunpack.c.l.bf16 %v3361
        %v3368 = vunpack.c.h.bf16 %v3361
        %v3369 = vunpack.c.l.bf16 %v3362
        %v3370 = vunpack.c.h.bf16 %v3362
        %v3371 = vmul.f32 %v3336, %v3363
        %v3372 = vmul.f32 %v3338, %v3364
        %v3373 = vmul.f32 %v3340, %v3365
        %v3374 = vmul.f32 %v3342, %v3366
        %v3375 = vmul.f32 %v3344, %v3367
        %v3376 = vmul.f32 %v3346, %v3368
        %v3377 = vmul.f32 %v3348, %v3369
        %v3378 = vmul.f32 %v3350, %v3370
        %v3379 = vadd.f32 %v3311, %v3371
        %v3380 = vadd.f32 %v3312, %v3372
        %v3381 = vadd.f32 %v3313, %v3373
        %v3382 = vadd.f32 %v3314, %v3374
        %v3383 = vadd.f32 %v3315, %v3375
        %v3384 = vadd.f32 %v3316, %v3376
        %v3385 = vadd.f32 %v3317, %v3377
        %v3386 = vadd.f32 %v3318, %v3378
        %v3387 = vld [vmem:[%s2394] sm:$0xff]
        %v3388 = vld [vmem:[%s2394 + $0x8] sm:$0xff]
        %v3389 = vld [vmem:[%s2394 + $0x10] sm:$0xff]
        %v3390 = vld [vmem:[%s2394 + $0x18] sm:$0xff]
        %v3391 = vld [vmem:[%s2394 + $0x20] sm:$0xff]
        %v3392 = vld [vmem:[%s2394 + $0x28] sm:$0xff]
        %v3393 = vld [vmem:[%s2394 + $0x30] sm:$0xff]
        %v3394 = vld [vmem:[%s2394 + $0x38] sm:$0xff]
        %v3395 = vsub.f32 %v3387, %v3107
        %v3396 = vsub.f32 %v3388, %v3108
        %v3397 = vsub.f32 %v3389, %v3109
        %v3398 = vsub.f32 %v3390, %v3110
        %v3399 = vsub.f32 %v3391, %v3111
        %v3400 = vsub.f32 %v3392, %v3112
        %v3401 = vsub.f32 %v3393, %v3113
        %v3402 = vsub.f32 %v3394, %v3114
        %v3403 = vmul.f32 %v3395, 1.442695
        %v3404 = vpow.pop %v3403
        %v3405 = vmul.f32 %v3396, 1.442695
        %v3406 = vpow.pop %v3405
        %v3407 = vmul.f32 %v3397, 1.442695
        %v3408 = vpow.pop %v3407
        %v3409 = vmul.f32 %v3398, 1.442695
        %v3410 = vpow.pop %v3409
        %v3411 = vmul.f32 %v3399, 1.442695
        %v3412 = vpow.pop %v3411
        %v3413 = vmul.f32 %v3400, 1.442695
        %v3414 = vpow.pop %v3413
        %v3415 = vmul.f32 %v3401, 1.442695
        %v3416 = vpow.pop %v3415
        %v3417 = vmul.f32 %v3402, 1.442695
        %v3418 = vpow.pop %v3417
        %v3419 = vadd.f32 %v3351, %v3404
        %v3420 = vadd.f32 %v3352, %v3406
        %v3421 = vadd.f32 %v3353, %v3408
        %v3422 = vadd.f32 %v3354, %v3410
        %v3423 = vadd.f32 %v3355, %v3412
        %v3424 = vadd.f32 %v3356, %v3414
        %v3425 = vadd.f32 %v3357, %v3416
        %v3426 = vadd.f32 %v3358, %v3418
        %v3427 = vld [vmem:[%s2303] sm:$0xff]
        %v3428 = vld [vmem:[%s2303 + $0x8] sm:$0xff]
        %v3429 = vld [vmem:[%s2303 + $0x10] sm:$0xff]
        %v3430 = vld [vmem:[%s2303 + $0x18] sm:$0xff]
        %v3431 = vunpack.c.l.bf16 %v3427
        %v3432 = vunpack.c.h.bf16 %v3427
        %v3433 = vunpack.c.l.bf16 %v3428
        %v3434 = vunpack.c.h.bf16 %v3428
        %v3435 = vunpack.c.l.bf16 %v3429
        %v3436 = vunpack.c.h.bf16 %v3429
        %v3437 = vunpack.c.l.bf16 %v3430
        %v3438 = vunpack.c.h.bf16 %v3430
        %v3439 = vmul.f32 %v3404, %v3431
        %v3440 = vmul.f32 %v3406, %v3432
        %v3441 = vmul.f32 %v3408, %v3433
        %v3442 = vmul.f32 %v3410, %v3434
        %v3443 = vmul.f32 %v3412, %v3435
        %v3444 = vmul.f32 %v3414, %v3436
        %v3445 = vmul.f32 %v3416, %v3437
        %v3446 = vmul.f32 %v3418, %v3438
        %v3447 = vadd.f32 %v3379, %v3439
        %v3448 = vadd.f32 %v3380, %v3440
        %v3449 = vadd.f32 %v3381, %v3441
        %v3450 = vadd.f32 %v3382, %v3442
        %v3451 = vadd.f32 %v3383, %v3443
        %v3452 = vadd.f32 %v3384, %v3444
        %v3453 = vadd.f32 %v3385, %v3445
        %v3454 = vadd.f32 %v3386, %v3446
        %v3455 = vld [vmem:[%s2722] sm:$0xff]
        %v3456 = vld [vmem:[%s2722 + $0x8] sm:$0xff]
        %v3457 = vld [vmem:[%s2722 + $0x10] sm:$0xff]
        %v3458 = vld [vmem:[%s2722 + $0x18] sm:$0xff]
        %v3459 = vld [vmem:[%s2722 + $0x20] sm:$0xff]
        %v3460 = vld [vmem:[%s2722 + $0x28] sm:$0xff]
        %v3461 = vld [vmem:[%s2722 + $0x30] sm:$0xff]
        %v3462 = vld [vmem:[%s2722 + $0x38] sm:$0xff]
        %v3463 = vsub.f32 %v3455, %v3107
        %v3464 = vsub.f32 %v3456, %v3108
        %v3465 = vsub.f32 %v3457, %v3109
        %v3466 = vsub.f32 %v3458, %v3110
        %v3467 = vsub.f32 %v3459, %v3111
        %v3468 = vsub.f32 %v3460, %v3112
        %v3469 = vsub.f32 %v3461, %v3113
        %v3470 = vsub.f32 %v3462, %v3114
        %v3471 = vmul.f32 %v3463, 1.442695
        %v3472 = vpow.pop %v3471
        %v3473 = vmul.f32 %v3464, 1.442695
        %v3474 = vpow.pop %v3473
        %v3475 = vmul.f32 %v3465, 1.442695
        %v3476 = vpow.pop %v3475
        %v3477 = vmul.f32 %v3466, 1.442695
        %v3478 = vpow.pop %v3477
        %v3479 = vmul.f32 %v3467, 1.442695
        %v3480 = vpow.pop %v3479
        %v3481 = vmul.f32 %v3468, 1.442695
        %v3482 = vpow.pop %v3481
        %v3483 = vmul.f32 %v3469, 1.442695
        %v3484 = vpow.pop %v3483
        %v3485 = vmul.f32 %v3470, 1.442695
        %v3486 = vpow.pop %v3485
        %v3487 = vadd.f32 %v3419, %v3472
        %v3488 = vadd.f32 %v3420, %v3474
        %v3489 = vadd.f32 %v3421, %v3476
        %v3490 = vadd.f32 %v3422, %v3478
        %v3491 = vadd.f32 %v3423, %v3480
        %v3492 = vadd.f32 %v3424, %v3482
        %v3493 = vadd.f32 %v3425, %v3484
        %v3494 = vadd.f32 %v3426, %v3486
        %v3495 = vld [vmem:[%s2631] sm:$0xff]
        %v3496 = vld [vmem:[%s2631 + $0x8] sm:$0xff]
        %v3497 = vld [vmem:[%s2631 + $0x10] sm:$0xff]
        %v3498 = vld [vmem:[%s2631 + $0x18] sm:$0xff]
        %v3499 = vunpack.c.l.bf16 %v3495
        %v3500 = vunpack.c.h.bf16 %v3495
        %v3501 = vunpack.c.l.bf16 %v3496
        %v3502 = vunpack.c.h.bf16 %v3496
        %v3503 = vunpack.c.l.bf16 %v3497
        %v3504 = vunpack.c.h.bf16 %v3497
        %v3505 = vunpack.c.l.bf16 %v3498
        %v3506 = vunpack.c.h.bf16 %v3498
        %v3507 = vmul.f32 %v3472, %v3499
        %v3508 = vmul.f32 %v3474, %v3500
        %v3509 = vmul.f32 %v3476, %v3501
        %v3510 = vmul.f32 %v3478, %v3502
        %v3511 = vmul.f32 %v3480, %v3503
        %v3512 = vmul.f32 %v3482, %v3504
        %v3513 = vmul.f32 %v3484, %v3505
        %v3514 = vmul.f32 %v3486, %v3506
        %v3515 = vadd.f32 %v3447, %v3507
        %v3516 = vadd.f32 %v3448, %v3508
        %v3517 = vadd.f32 %v3449, %v3509
        %v3518 = vadd.f32 %v3450, %v3510
        %v3519 = vadd.f32 %v3451, %v3511
        %v3520 = vadd.f32 %v3452, %v3512
        %v3521 = vadd.f32 %v3453, %v3513
        %v3522 = vadd.f32 %v3454, %v3514
        %v3523 = vld [vmem:[%s3050] sm:$0xff]
        %v3524 = vld [vmem:[%s3050 + $0x8] sm:$0xff]
        %v3525 = vld [vmem:[%s3050 + $0x10] sm:$0xff]
        %v3526 = vld [vmem:[%s3050 + $0x18] sm:$0xff]
        %v3527 = vld [vmem:[%s3050 + $0x20] sm:$0xff]
        %v3528 = vld [vmem:[%s3050 + $0x28] sm:$0xff]
        %v3529 = vld [vmem:[%s3050 + $0x30] sm:$0xff]
        %v3530 = vld [vmem:[%s3050 + $0x38] sm:$0xff]
        %v3531 = vsub.f32 %v3523, %v3107
        %v3532 = vsub.f32 %v3524, %v3108
        %v3533 = vsub.f32 %v3525, %v3109
        %v3534 = vsub.f32 %v3526, %v3110
        %v3535 = vsub.f32 %v3527, %v3111
        %v3536 = vsub.f32 %v3528, %v3112
        %v3537 = vsub.f32 %v3529, %v3113
        %v3538 = vsub.f32 %v3530, %v3114
        %v3539 = vmul.f32 %v3531, 1.442695
        %v3540 = vpow.pop %v3539
        %v3541 = vmul.f32 %v3532, 1.442695
        %v3542 = vpow.pop %v3541
        %v3543 = vmul.f32 %v3533, 1.442695
        %v3544 = vpow.pop %v3543
        %v3545 = vmul.f32 %v3534, 1.442695
        %v3546 = vpow.pop %v3545
        %v3547 = vmul.f32 %v3535, 1.442695
        %v3548 = vpow.pop %v3547
        %v3549 = vmul.f32 %v3536, 1.442695
        %v3550 = vpow.pop %v3549
        %v3551 = vmul.f32 %v3537, 1.442695
        %v3552 = vpow.pop %v3551
        %v3553 = vmul.f32 %v3538, 1.442695
        %v3554 = vpow.pop %v3553
        %v3555 = vadd.f32 %v3487, %v3540
        %v3556 = vadd.f32 %v3488, %v3542
        %v3557 = vadd.f32 %v3489, %v3544
        %v3558 = vadd.f32 %v3490, %v3546
        %v3559 = vadd.f32 %v3491, %v3548
        %v3560 = vadd.f32 %v3492, %v3550
        %v3561 = vadd.f32 %v3493, %v3552
        %v3562 = vadd.f32 %v3494, %v3554
        %v3563 = vld [vmem:[%s2959] sm:$0xff]
        %v3564 = vld [vmem:[%s2959 + $0x8] sm:$0xff]
        %v3565 = vld [vmem:[%s2959 + $0x10] sm:$0xff]
        %v3566 = vld [vmem:[%s2959 + $0x18] sm:$0xff]
        %v3567 = vunpack.c.l.bf16 %v3563
        %v3568 = vunpack.c.h.bf16 %v3563
        %v3569 = vunpack.c.l.bf16 %v3564
        %v3570 = vunpack.c.h.bf16 %v3564
        %v3571 = vunpack.c.l.bf16 %v3565
        %v3572 = vunpack.c.h.bf16 %v3565
        %v3573 = vunpack.c.l.bf16 %v3566
        %v3574 = vunpack.c.h.bf16 %v3566
        %v3575 = vmul.f32 %v3540, %v3567
        %v3576 = vmul.f32 %v3542, %v3568
        %v3577 = vmul.f32 %v3544, %v3569
        %v3578 = vmul.f32 %v3546, %v3570
        %v3579 = vmul.f32 %v3548, %v3571
        %v3580 = vmul.f32 %v3550, %v3572
        %v3581 = vmul.f32 %v3552, %v3573
        %v3582 = vmul.f32 %v3554, %v3574
        %v3583 = vadd.f32 %v3515, %v3575
        %v3584 = vadd.f32 %v3516, %v3576
        %v3585 = vadd.f32 %v3517, %v3577
        %v3586 = vadd.f32 %v3518, %v3578
        %v3587 = vadd.f32 %v3519, %v3579
        %v3588 = vadd.f32 %v3520, %v3580
        %v3589 = vadd.f32 %v3521, %v3581
        %v3590 = vadd.f32 %v3522, %v3582
        %3591 = vrot.lane.b32.xlu0 %v3555, 32
        %v3592 = vpop.permute.xlu0 %3591
        %3593 = vrot.lane.b32.xlu0 %v3556, 32
        %v3594 = vpop.permute.xlu0 %3593
        %3595 = vrot.lane.b32.xlu0 %v3557, 32
        %v3596 = vpop.permute.xlu0 %3595
        %3597 = vrot.lane.b32.xlu0 %v3558, 32
        %v3598 = vpop.permute.xlu0 %3597
        %3599 = vrot.lane.b32.xlu0 %v3559, 32
        %v3600 = vpop.permute.xlu0 %3599
        %3601 = vrot.lane.b32.xlu0 %v3560, 32
        %v3602 = vpop.permute.xlu0 %3601
        %3603 = vrot.lane.b32.xlu0 %v3561, 32
        %v3604 = vpop.permute.xlu0 %3603
        %3605 = vrot.lane.b32.xlu0 %v3562, 32
        %v3606 = vpop.permute.xlu0 %3605
        %v3607 = vadd.f32 %v3555, %v3592
        %v3608 = vadd.f32 %v3556, %v3594
        %v3609 = vadd.f32 %v3557, %v3596
        %v3610 = vadd.f32 %v3558, %v3598
        %v3611 = vadd.f32 %v3559, %v3600
        %v3612 = vadd.f32 %v3560, %v3602
        %v3613 = vadd.f32 %v3561, %v3604
        %v3614 = vadd.f32 %v3562, %v3606
        %3615 = vrot.lane.b32.xlu0 %v3607, 64
        %v3616 = vpop.permute.xlu0 %3615
        %3617 = vrot.lane.b32.xlu0 %v3608, 64
        %v3618 = vpop.permute.xlu0 %3617
        %3619 = vrot.lane.b32.xlu0 %v3609, 64
        %v3620 = vpop.permute.xlu0 %3619
        %3621 = vrot.lane.b32.xlu0 %v3610, 64
        %v3622 = vpop.permute.xlu0 %3621
        %3623 = vrot.lane.b32.xlu0 %v3611, 64
        %v3624 = vpop.permute.xlu0 %3623
        %3625 = vrot.lane.b32.xlu0 %v3612, 64
        %v3626 = vpop.permute.xlu0 %3625
        %3627 = vrot.lane.b32.xlu0 %v3613, 64
        %v3628 = vpop.permute.xlu0 %3627
        %3629 = vrot.lane.b32.xlu0 %v3614, 64
        %v3630 = vpop.permute.xlu0 %3629
        %v3631 = vadd.f32 %v3607, %v3616
        %v3632 = vadd.f32 %v3608, %v3618
        %v3633 = vadd.f32 %v3609, %v3620
        %v3634 = vadd.f32 %v3610, %v3622
        %v3635 = vadd.f32 %v3611, %v3624
        %v3636 = vadd.f32 %v3612, %v3626
        %v3637 = vadd.f32 %v3613, %v3628
        %v3638 = vadd.f32 %v3614, %v3630
        %3639 = vrot.lane.b32.xlu0 %v3583, 32
        %v3640 = vpop.permute.xlu0 %3639
        %3641 = vrot.lane.b32.xlu0 %v3584, 32
        %v3642 = vpop.permute.xlu0 %3641
        %3643 = vrot.lane.b32.xlu0 %v3585, 32
        %v3644 = vpop.permute.xlu0 %3643
        %3645 = vrot.lane.b32.xlu0 %v3586, 32
        %v3646 = vpop.permute.xlu0 %3645
        %3647 = vrot.lane.b32.xlu0 %v3587, 32
        %v3648 = vpop.permute.xlu0 %3647
        %3649 = vrot.lane.b32.xlu0 %v3588, 32
        %v3650 = vpop.permute.xlu0 %3649
        %3651 = vrot.lane.b32.xlu0 %v3589, 32
        %v3652 = vpop.permute.xlu0 %3651
        %3653 = vrot.lane.b32.xlu0 %v3590, 32
        %v3654 = vpop.permute.xlu0 %3653
        %v3655 = vadd.f32 %v3583, %v3640
        %v3656 = vadd.f32 %v3584, %v3642
        %v3657 = vadd.f32 %v3585, %v3644
        %v3658 = vadd.f32 %v3586, %v3646
        %v3659 = vadd.f32 %v3587, %v3648
        %v3660 = vadd.f32 %v3588, %v3650
        %v3661 = vadd.f32 %v3589, %v3652
        %v3662 = vadd.f32 %v3590, %v3654
        %3663 = vrot.lane.b32.xlu0 %v3655, 64
        %v3664 = vpop.permute.xlu0 %3663
        %3665 = vrot.lane.b32.xlu0 %v3656, 64
        %v3666 = vpop.permute.xlu0 %3665
        %3667 = vrot.lane.b32.xlu0 %v3657, 64
        %v3668 = vpop.permute.xlu0 %3667
        %3669 = vrot.lane.b32.xlu0 %v3658, 64
        %v3670 = vpop.permute.xlu0 %3669
        %3671 = vrot.lane.b32.xlu0 %v3659, 64
        %v3672 = vpop.permute.xlu0 %3671
        %3673 = vrot.lane.b32.xlu0 %v3660, 64
        %v3674 = vpop.permute.xlu0 %3673
        %3675 = vrot.lane.b32.xlu0 %v3661, 64
        %v3676 = vpop.permute.xlu0 %3675
        %3677 = vrot.lane.b32.xlu0 %v3662, 64
        %v3678 = vpop.permute.xlu0 %3677
        %v3679 = vadd.f32 %v3655, %v3664
        %v3680 = vadd.f32 %v3656, %v3666
        %v3681 = vadd.f32 %v3657, %v3668
        %v3682 = vadd.f32 %v3658, %v3670
        %v3683 = vadd.f32 %v3659, %v3672
        %v3684 = vadd.f32 %v3660, %v3674
        %v3685 = vadd.f32 %v3661, %v3676
        %v3686 = vadd.f32 %v3662, %v3678
        %v3687 = vrcp.pop %v3631
        %v3688 = vrcp.pop %v3632
        %v3689 = vrcp.pop %v3633
        %v3690 = vrcp.pop %v3634
        %v3691 = vrcp.pop %v3635
        %v3692 = vrcp.pop %v3636
        %v3693 = vrcp.pop %v3637
        %v3694 = vrcp.pop %v3638
        %v3695 = vmul.f32 %v3679, %v3687
        %v3696 = vmul.f32 %v3680, %v3688
        %v3697 = vmul.f32 %v3681, %v3689
        %v3698 = vmul.f32 %v3682, %v3690
        %v3699 = vmul.f32 %v3683, %v3691
        %v3700 = vmul.f32 %v3684, %v3692
        %v3701 = vmul.f32 %v3685, %v3693
        %v3702 = vmul.f32 %v3686, %v3694
        %3703 = vxpose.xlu0.b32.start [1/16] %v3695, 128
        %3704 = vxpose.xlu0.b32.cont [2/16] %v3696, 128
        %3705 = vxpose.xlu0.b32.cont [3/16] %v3697, 128
        %3706 = vxpose.xlu0.b32.cont [4/16] %v3698, 128
        %3707 = vxpose.xlu0.b32.cont [5/16] %v3699, 128
        %3708 = vxpose.xlu0.b32.cont [6/16] %v3700, 128
        %3709 = vxpose.xlu0.b32.cont [7/16] %v3701, 128
        %3710 = vxpose.xlu0.b32.cont [8/16] %v3702, 128
        %3711 = vxpose.xlu0.b32.cont [9/16] 0.0, 128
        %3712 = vxpose.xlu0.b32.cont [10/16] 0.0, 128
        %3713 = vxpose.xlu0.b32.cont [11/16] 0.0, 128
        %3714 = vxpose.xlu0.b32.cont [12/16] 0.0, 128
        %3715 = vxpose.xlu0.b32.cont [13/16] 0.0, 128
        %3716 = vxpose.xlu0.b32.cont [14/16] 0.0, 128
        %3717 = vxpose.xlu0.b32.cont [15/16] 0.0, 128
        %3718 = vxpose.xlu0.b32.end [16/16] 0.0, 128
        %v3719 = vpop.trf.xlu0
        %v3720 = vpop.trf.xlu0
        %v3721 = vpop.trf.xlu0
        %v3722 = vpop.trf.xlu0
        %v3723 = vpop.trf.xlu0
        %v3724 = vpop.trf.xlu0
        %v3725 = vpop.trf.xlu0
        %v3726 = vpop.trf.xlu0
        %v3727 = vpop.trf.xlu0
        %v3728 = vpop.trf.xlu0
        %v3729 = vpop.trf.xlu0
        %v3730 = vpop.trf.xlu0
        %v3731 = vpop.trf.xlu0
        %v3732 = vpop.trf.xlu0
        %v3733 = vpop.trf.xlu0
        %v3734 = vpop.trf.xlu0
        %vm3735 = vcmask 523264
        %3736 = vst.msk [vmem:[%s590] sm:$0xff] %vm3735, %v3719
        %3737 = vst.msk [vmem:[%s590 + $0x8] sm:$0xff] %vm3735, %v3720
        %3738 = vst.msk [vmem:[%s590 + $0x10] sm:$0xff] %vm3735, %v3721
        %3739 = vst.msk [vmem:[%s590 + $0x18] sm:$0xff] %vm3735, %v3722
        %p3740 = scmp.lt.s32.totalorder %s19, 5
        %s3741 = scalar_select %p3740, %s19, 5
        %s3742 = smul.addr %s3741, 4
        %s3743 = smul.addr %s3742, 8
        %s3744 = scalar_lea.vmem %s8, %s3743
        // Predicated region
        $region94: #{gct_forward.1} parent=88 // pred_check
          %p3745 = pneg %p215
        $region95: #{gct_forward.1} parent=88 // pred_check_branch
          %3747 = sbr.rel (%p3745) target = $region97
        $region96: #{gct_forward.1} parent=88 // pred_region
          _
        $region97: #{gct_forward.1} parent=88 // pred_fallthru
          _
      $region89: #{gct_forward.1} parent=5 // pred_fallthru
        _
      %p3748 = scmp.le.s32.totalorder 2, %s14
      // Predicated region
      $region98: #{gct_forward.1} parent=5 // pred_check
        %p3749 = pneg %p3748
      $region99: #{gct_forward.1} parent=5 // pred_check_branch
        %3751 = sbr.rel (%p3749) target = $region101
      $region100: #{gct_forward.1} parent=5 // pred_region
        %s3752 = ssub.s32 %s14, 2
        // Predicated region
        $region102: #{gct_forward.1} parent=100 // pred_check
          %p3753 = pneg %p221
        $region103: #{gct_forward.1} parent=100 // pred_check_branch
          %3755 = sbr.rel (%p3753) target = $region105
        $region104: #{gct_forward.1} parent=100 // pred_region
          %p3756 = scmp.lt.s32.totalorder %s20, 5
          %s3757 = scalar_select %p3756, %s20, 5
          %s3758 = smul.addr %s3757, 4
          %s3759 = smul.addr %s3758, 8
          %s3760 = scalar_lea.vmem %s8, %s3759
        $region105: #{gct_forward.1} parent=100 // pred_fallthru
          _
      $region101: #{gct_forward.1} parent=5 // pred_fallthru
        _
    $region6: #{gct_forward.1} parent=1 // loop_footer
      %s18 = sadd.s32 1, %s14
    $region7: #{gct_forward.1} parent=1 // loop_footer_branch
      %13 = sbr.rel target = $region3
    $region8: #{gct_forward.1} parent=1 // loop_exit
      _

</llo_original>
